<compile_context>
chip_gen: v5e
topology: v5e:2x2
jax: 0.10.0
libtpu: 0.0.40
codegen_flags: <defaults>
</compile_context>

<pallas_src>
import numpy as np
import jax
import jax.numpy as jnp
from jax.experimental import pallas as pl
from jax.experimental.pallas import tpu as pltpu


# ---------------------------------------------------------------------------
# Single fused kernel: stem + bn1 + act1 + blocks[0] + blocks[1]
# ---------------------------------------------------------------------------
def _fused_kernel(x_ref, ws_ref, sb_ref, w1_ref, b1_ref, we_ref, be_ref,
                  w2_ref, b2_ref, wp_ref, bp_ref, o_ref, s1, s2):
    f32 = jnp.float32
    bt, Hq, Wq, cinp = x_ref.shape          # parity-packed padded input
    H, W = Hq - 1, Wq - 1                   # stem output spatial size (8, 8)
    Ho, Wo = H // 2, W // 2                 # final spatial size (4, 4)
    C1 = w1_ref.shape[1]                    # 32
    CE = w2_ref.shape[1]                    # 96
    CO = wp_ref.shape[1]                    # 24
    M = bt * H * W

    # ---- conv_stem (3x3 stride 2, pad 1) + bn1 + act1 ------------------------
    # x_ref[n, hq, wq, 4c*hp + c*wp + ch] = xpad[n, 2hq+hp, 2wq+wp, ch]; the 9
    # stride-2 taps are covered by four contiguous 2x2-window slices, folded
    # into four accumulating MXU matmuls against a re-indexed (48, 32) weight.
    ws = ws_ref[...]                        # hoisted single load
    acc0 = jnp.zeros((M, C1), f32)
    for m, (a, b) in enumerate(((0, 0), (0, 1), (1, 0), (1, 1))):
        tap = x_ref[:, a:a + H, b:b + W, :].reshape(M, cinp)
        acc0 = acc0 + jnp.dot(tap, ws[cinp * m:cinp * (m + 1), :],
                              preferred_element_type=f32)
    y0 = acc0 + sb_ref[0, :]
    y0 = y0 * jax.nn.sigmoid(y0)            # SiLU

    # ---- blocks[0]: depthwise 3x3 s1 + BN + SiLU (halo via VMEM scratch) -----
    # Zero only the 1-wide halo border (no full-scratch sweep; safe under any
    # megacore grid sharding since it runs every step).
    s1[:, 0:1, :, :] = jnp.zeros((bt, 1, W + 2, C1), f32)
    s1[:, H + 1:H + 2, :, :] = jnp.zeros((bt, 1, W + 2, C1), f32)
    s1[:, :, 0:1, :] = jnp.zeros((bt, H + 2, 1, C1), f32)
    s1[:, :, W + 1:W + 2, :] = jnp.zeros((bt, H + 2, 1, C1), f32)
    s1[:, 1:H + 1, 1:W + 1, :] = y0.reshape(bt, H, W, C1)
    w1 = w1_ref[...]                        # hoisted out of the tap loop
    acc1 = jnp.zeros((bt, H, W, C1), f32)
    for kh in range(3):
        for kw in range(3):
            acc1 = acc1 + s1[:, kh:kh + H, kw:kw + W, :] * w1[3 * kh + kw, :]
    y1 = acc1 + b1_ref[0, :]
    y1 = y1 * jax.nn.sigmoid(y1)

    # ---- blocks[0].pw + BN fused with blocks[1].expand + BN, then SiLU -------
    ye = jnp.dot(y1.reshape(M, C1), we_ref[...], preferred_element_type=f32)
    ye = ye + be_ref[0, :]
    ye = ye * jax.nn.sigmoid(ye)            # expanded (M, 96) stays in VMEM

    # ---- blocks[1]: depthwise 3x3 stride 2 + BN + SiLU ------------------------
    s2[:, 0:1, :, :] = jnp.zeros((bt, 1, W + 2, CE), f32)
    s2[:, H + 1:H + 2, :, :] = jnp.zeros((bt, 1, W + 2, CE), f32)
    s2[:, :, 0:1, :] = jnp.zeros((bt, H + 2, 1, CE), f32)
    s2[:, :, W + 1:W + 2, :] = jnp.zeros((bt, H + 2, 1, CE), f32)
    s2[:, 1:H + 1, 1:W + 1, :] = ye.reshape(bt, H, W, CE)
    w2 = w2_ref[...]                        # hoisted
    acc2 = jnp.zeros((bt, H, W, CE), f32)
    for kh in range(3):
        for kw in range(3):
            acc2 = acc2 + s2[:, kh:kh + H, kw:kw + W, :] * w2[3 * kh + kw, :]

    # Stride-2 decimation BEFORE bias/SiLU/projection/store, using only
    # layout-safe ops (outer-dim reshape, contiguous slices, sublane concat).
    ev = acc2.reshape(bt, Ho, 2, W, CE)[:, :, 0, :, :]          # even rows
    y2 = jnp.concatenate([ev[:, :, 2 * j:2 * j + 1, :] for j in range(Wo)],
                         axis=2)                                # even cols
    y2 = y2 + b2_ref[0, :]
    y2 = y2 * jax.nn.sigmoid(y2)

    # ---- blocks[1]: pointwise projection + BN (no activation) ----------------
    out = jnp.dot(y2.reshape(bt * Ho * Wo, CE), wp_ref[...],
                  preferred_element_type=f32) + bp_ref[0, :]
    o_ref[...] = out.reshape(bt, Ho * Wo, CO).astype(o_ref.dtype)


# ---------------------------------------------------------------------------
# Grid / VMEM heuristics (generation-aware per the perf review)
# ---------------------------------------------------------------------------
def _pick_bt(n, rows_per_image=64, max_images_per_block=32):
    """Images per grid step.  Single step unless a split keeps >=128 rows/step."""
    divs = [d for d in range(1, n + 1) if n % d == 0 and d <= max_images_per_block]
    full = max(divs)
    if full < n:                       # VMEM cap forces a multi-step grid
        return full
    half = [d for d in divs if d < n and d * rows_per_image >= 128]
    return max(half) if half else full


def _vmem_limit(bt, Hs, Ws, cinp, C1, CE, CO):
    f = 4  # f32 bytes
    io_blocks = 2 * f * (bt * (Hs + 1) * (Ws + 1) * cinp
                         + bt * (Hs // 2) * (Ws // 2) * CO)          # dbl-buffered
    scratch = f * bt * (Hs + 2) * (Ws + 2) * (C1 + CE)
    weights = 2 * f * (4 * cinp * C1 + 10 * C1 + 2 * C1 + C1 * CE
                       + 10 * CE + 2 * CE + CE * CO + CO)
    est = io_blocks + scratch + weights
    return int(min(32 * 2 ** 20, max(16 * 2 ** 20, 8 * est)))


# ---------------------------------------------------------------------------
# Fused pallas_call wrapper
# ---------------------------------------------------------------------------
def efficientnet_features_fused(xpp, fp):
    N, Hq, Wq, cinp = xpp.shape
    Hs, Ws = Hq - 1, Wq - 1
    Ho, Wo = Hs // 2, Ws // 2
    C1 = fp["w1"].shape[1]
    CE = fp["w2"].shape[1]
    CO = fp["wp"].shape[1]
    bt = _pick_bt(N, rows_per_image=Hs * Ws)

    out = pl.pallas_call(
        _fused_kernel,
        out_shape=jax.ShapeDtypeStruct((N, Ho * Wo, CO), jnp.float32),
        grid=(N // bt,),
        in_specs=[
            pl.BlockSpec((bt, Hq, Wq, cinp), lambda i: (i, 0, 0, 0)),
            pl.BlockSpec((4 * cinp, C1), lambda i: (0, 0)),
            pl.BlockSpec((1, C1), lambda i: (0, 0)),
            pl.BlockSpec((9, C1), lambda i: (0, 0)),
            pl.BlockSpec((1, C1), lambda i: (0, 0)),
            pl.BlockSpec((C1, CE), lambda i: (0, 0)),
            pl.BlockSpec((1, CE), lambda i: (0, 0)),
            pl.BlockSpec((9, CE), lambda i: (0, 0)),
            pl.BlockSpec((1, CE), lambda i: (0, 0)),
            pl.BlockSpec((CE, CO), lambda i: (0, 0)),
            pl.BlockSpec((1, CO), lambda i: (0, 0)),
        ],
        out_specs=pl.BlockSpec((bt, Ho * Wo, CO), lambda i: (i, 0, 0)),
        scratch_shapes=[
            pltpu.VMEM((bt, Hs + 2, Ws + 2, C1), jnp.float32),   # dw1 halo
            pltpu.VMEM((bt, Hs + 2, Ws + 2, CE), jnp.float32),   # dw2 halo
        ],
        compiler_params=pltpu.CompilerParams(
            dimension_semantics=("parallel",),
            vmem_limit_bytes=_vmem_limit(bt, Hs, Ws, cinp, C1, CE, CO)),
    )(xpp,
      fp["ws"], fp["sb"][None, :],
      fp["w1"], fp["b1"][None, :],
      fp["we"], fp["be"][None, :],
      fp["w2"], fp["b2"][None, :],
      fp["wp"], fp["bp"][None, :])
    return out


# ---------------------------------------------------------------------------
# Parameter folding (once, outside jit): BN folded into weights, the stem
# weight re-indexed for the parity-packed input, pw+expand fused affinely.
# ---------------------------------------------------------------------------
def fold_params(P):
    fp = {}
    # conv_stem: fold BN scale, re-index (3,3,cin,32) -> (4*4*cin, 32) so that
    # window offset m=(2a+b) block rows [4*cin*m + cin*(2hp+wp) + c] hold
    # W[2a+hp, 2b+wp, c, :] (zero where kh/kw would be 3).
    w = np.asarray(P["stem_w"]) * np.asarray(P["stem_scale"])
    cin, cout = w.shape[2], w.shape[3]
    ws = np.zeros((4 * 4 * cin, cout), np.float32)
    for a in range(2):
        for b in range(2):
            for hp in range(2):
                for wp in range(2):
                    kh, kw = 2 * a + hp, 2 * b + wp
                    if kh < 3 and kw < 3:
                        r0 = 4 * cin * (2 * a + b) + cin * (2 * hp + wp)
                        ws[r0:r0 + cin, :] = w[kh, kw, :, :]
    fp["ws"] = jnp.asarray(ws)
    fp["sb"] = P["stem_bias"]
    # blocks[0] depthwise (scale folded into the 9 taps)
    fp["w1"] = P["b0_dw_w"].reshape(9, -1) * P["b0_dw_scale"][None, :]
    fp["b1"] = P["b0_dw_bias"]
    # blocks[0] pw (affine) fused with blocks[1] expand (affine): one 32->96 matmul
    wpw = P["b0_pw_w"] * P["b0_pw_scale"][None, :]
    wexp = P["b1_exp_w"] * P["b1_exp_scale"][None, :]
    fp["we"] = wpw @ wexp
    fp["be"] = P["b0_pw_bias"] @ wexp + P["b1_exp_bias"]
    # blocks[1] depthwise
    fp["w2"] = P["b1_dw_w"].reshape(9, -1) * P["b1_dw_scale"][None, :]
    fp["b2"] = P["b1_dw_bias"]
    # blocks[1] project
    fp["wp"] = P["b1_pw_w"] * P["b1_pw_scale"][None, :]
    fp["bp"] = P["b1_pw_bias"]
    return fp


# ---------------------------------------------------------------------------
# Forward pass (matches VariableLengthEfficientNetFeatures.forward)
# ---------------------------------------------------------------------------
def variable_length_efficientnet_features(x_nchw, fp):
    N, C, Hin, Win = x_nchw.shape
    assert Hin % 4 == 0 and Win % 4 == 0, "toy impl needs H, W divisible by 4"
    # Parity-pack (space-to-depth) the padded input so the stride-2 stem taps
    # are contiguous in-kernel: xpp[n, hq, wq, 4C*hp + C*wp + c] = xpad[n, 2hq+hp, 2wq+wp, c]
    xp = jnp.pad(x_nchw.astype(jnp.float32), ((0, 0), (0, 0), (1, 1), (1, 1)))
    xp = xp.reshape(N, C, (Hin + 2) // 2, 2, (Win + 2) // 2, 2)
    xp = jnp.transpose(xp, (0, 2, 4, 3, 5, 1))
    xpp = xp.reshape(N, (Hin + 2) // 2, (Win + 2) // 2, 4 * C)
    # x = blocks(act1(bn1(conv_stem(x)))) -- fully fused single kernel
    out = efficientnet_features_fused(xpp, fp)               # (N, Ho*Wo, 24)
    CO = fp["wp"].shape[1]
    out = out.reshape(N, Hin // 4, Win // 4, CO)
    # TODO(synk): drop_rate / feature_hooks / feature_info are stored by the
    # module but unused in this forward(); list-of-tensors input not supported.
    return jnp.transpose(out, (0, 3, 1, 2))                   # back to NCHW


# ---------------------------------------------------------------------------
# Pure-JAX reference (correctness check only)
# ---------------------------------------------------------------------------
def _ref_forward(x_nchw, P):
    x = jnp.transpose(x_nchw, (0, 2, 3, 1)).astype(jnp.float32)

    def bn_act(y, s, b, act):
        y = y * s + b
        return y * jax.nn.sigmoid(y) if act else y

    def conv(y, w, stride):
        return jax.lax.conv_general_dilated(
            y, w, (stride, stride), ((1, 1), (1, 1)),
            dimension_numbers=("NHWC", "HWIO", "NHWC"))

    def dwconv(y, w_hwc, stride):
        C = y.shape[-1]
        return jax.lax.conv_general_dilated(
            y, w_hwc.reshape(3, 3, 1, C), (stride, stride), ((1, 1), (1, 1)),
            dimension_numbers=("NHWC", "HWIO", "NHWC"), feature_group_count=C)

    x = bn_act(conv(x, P["stem_w"], 2), P["stem_scale"], P["stem_bias"], True)
    x = bn_act(dwconv(x, P["b0_dw_w"], 1), P["b0_dw_scale"], P["b0_dw_bias"], True)
    x = bn_act(jnp.einsum("nhwc,cd->nhwd", x, P["b0_pw_w"]),
               P["b0_pw_scale"], P["b0_pw_bias"], False)
    x = bn_act(jnp.einsum("nhwc,cd->nhwd", x, P["b1_exp_w"]),
               P["b1_exp_scale"], P["b1_exp_bias"], True)
    x = bn_act(dwconv(x, P["b1_dw_w"], 2), P["b1_dw_scale"], P["b1_dw_bias"], True)
    x = bn_act(jnp.einsum("nhwc,cd->nhwd", x, P["b1_pw_w"]),
               P["b1_pw_scale"], P["b1_pw_bias"], False)
    return jnp.transpose(x, (0, 3, 1, 2))


# ---------------------------------------------------------------------------
# Deterministic parameter init (synthetic config above)
# ---------------------------------------------------------------------------
def init_params(key):
    CIN, STEM, B0, B1E, B1 = 3, 32, 16, 96, 24
    keys = iter(jax.random.split(key, 16))

    def w(shape, scale=0.1):
        return jax.random.normal(next(keys), shape, jnp.float32) * scale

    def bn(c):  # eval-mode BN folded to (scale, bias)
        k1, k2, k3, k4 = jax.random.split(next(keys), 4)
        gamma = jax.random.uniform(k1, (c,), jnp.float32, 0.5, 1.5)
        beta = jax.random.normal(k2, (c,), jnp.float32) * 0.1
        mean = jax.random.normal(k3, (c,), jnp.float32) * 0.1
        var = jax.random.uniform(k4, (c,), jnp.float32, 0.5, 1.5)
        s = gamma * jax.lax.rsqrt(var + 1e-5)
        return s, beta - mean * s

    P = {}
    P["stem_w"] = w((3, 3, CIN, STEM))
    P["stem_scale"], P["stem_bias"] = bn(STEM)
    P["b0_dw_w"] = w((3, 3, STEM))
    P["b0_dw_scale"], P["b0_dw_bias"] = bn(STEM)
    P["b0_pw_w"] = w((STEM, B0))
    P["b0_pw_scale"], P["b0_pw_bias"] = bn(B0)
    P["b1_exp_w"] = w((B0, B1E))
    P["b1_exp_scale"], P["b1_exp_bias"] = bn(B1E)
    P["b1_dw_w"] = w((3, 3, B1E))
    P["b1_dw_scale"], P["b1_dw_bias"] = bn(B1E)
    P["b1_pw_w"] = w((B1E, B1))
    P["b1_pw_scale"], P["b1_pw_bias"] = bn(B1)
    return P


if __name__ == "__main__":
    key = jax.random.PRNGKey(0)
    pkey, xkey = jax.random.split(key)
    P = init_params(pkey)
    fp = fold_params(P)
    x = jax.random.normal(xkey, (2, 3, 16, 16), jnp.float32)  # NCHW, like PyTorch

    fwd = jax.jit(variable_length_efficientnet_features)
    out = jax.block_until_ready(fwd(x, fp))

    assert out.shape == (2, 24, 4, 4), out.shape
    ref = _ref_forward(x, P)
    np.testing.assert_allclose(np.asarray(out, dtype=np.float32), np.asarray(ref),
                               rtol=2e-2, atol=2e-2)
    print("KERNEL_OK")
</pallas_src>

<mosaic_0001>
module attributes {stable_mosaic.version = 11 : i64} {
  func.func @_fused_kernel(%arg0: i32, %arg1: memref<2x9x9x12xf32, #tpu.memory_space<vmem>>, %arg2: memref<48x32xf32, #tpu.memory_space<vmem>>, %arg3: memref<1x32xf32, #tpu.memory_space<vmem>>, %arg4: memref<9x32xf32, #tpu.memory_space<vmem>>, %arg5: memref<1x32xf32, #tpu.memory_space<vmem>>, %arg6: memref<32x96xf32, #tpu.memory_space<vmem>>, %arg7: memref<1x96xf32, #tpu.memory_space<vmem>>, %arg8: memref<9x96xf32, #tpu.memory_space<vmem>>, %arg9: memref<1x96xf32, #tpu.memory_space<vmem>>, %arg10: memref<96x24xf32, #tpu.memory_space<vmem>>, %arg11: memref<1x24xf32, #tpu.memory_space<vmem>>, %arg12: memref<2x16x24xf32, #tpu.memory_space<vmem>>, %arg13: memref<2x10x10x32xf32, #tpu.memory_space<vmem>>, %arg14: memref<2x10x10x96xf32, #tpu.memory_space<vmem>>) attributes {dimension_semantics = [#tpu.dimension_semantics<parallel>], iteration_bounds = array<i64: 1>, scalar_prefetch = 0 : i64, scratch_operands = 2 : i64, tpu.core_type = #tpu.core_type<tc>, window_params = [{transform_indices = @transform_0, window_bounds = array<i64: 2, 9, 9, 12>}, {pipeline_mode = #tpu.pipeline_mode<synchronous>, transform_indices = @transform_1, window_bounds = array<i64: 48, 32>}, {pipeline_mode = #tpu.pipeline_mode<synchronous>, transform_indices = @transform_2, window_bounds = array<i64: 1, 32>}, {pipeline_mode = #tpu.pipeline_mode<synchronous>, transform_indices = @transform_3, window_bounds = array<i64: 9, 32>}, {pipeline_mode = #tpu.pipeline_mode<synchronous>, transform_indices = @transform_4, window_bounds = array<i64: 1, 32>}, {pipeline_mode = #tpu.pipeline_mode<synchronous>, transform_indices = @transform_5, window_bounds = array<i64: 32, 96>}, {pipeline_mode = #tpu.pipeline_mode<synchronous>, transform_indices = @transform_6, window_bounds = array<i64: 1, 96>}, {pipeline_mode = #tpu.pipeline_mode<synchronous>, transform_indices = @transform_7, window_bounds = array<i64: 9, 96>}, {pipeline_mode = #tpu.pipeline_mode<synchronous>, transform_indices = @transform_8, window_bounds = array<i64: 1, 96>}, {pipeline_mode = #tpu.pipeline_mode<synchronous>, transform_indices = @transform_9, window_bounds = array<i64: 96, 24>}, {pipeline_mode = #tpu.pipeline_mode<synchronous>, transform_indices = @transform_10, window_bounds = array<i64: 1, 24>}, {transform_indices = @transform_11, window_bounds = array<i64: 2, 16, 24>}]} {
    %c0 = arith.constant 0 : index
    %c0_0 = arith.constant 0 : index
    %0 = vector.load %arg2[%c0, %c0_0] : memref<48x32xf32, #tpu.memory_space<vmem>>, vector<48x32xf32>
    %cst = arith.constant 0.000000e+00 : f32
    %1 = vector.broadcast %cst : f32 to vector<128x32xf32>
    %c0_1 = arith.constant 0 : index
    %c0_2 = arith.constant 0 : index
    %c0_3 = arith.constant 0 : index
    %c0_4 = arith.constant 0 : index
    %2 = vector.load %arg1[%c0_1, %c0_2, %c0_3, %c0_4] : memref<2x9x9x12xf32, #tpu.memory_space<vmem>>, vector<2x8x8x12xf32>
    %3 = vector.shape_cast %2 : vector<2x8x8x12xf32> to vector<128x12xf32>
    %4 = vector.extract_strided_slice %0 {offsets = [0, 0], sizes = [12, 32], strides = [1, 1]} : vector<48x32xf32> to vector<12x32xf32>
    %cst_5 = arith.constant dense<0.000000e+00> : vector<128x32xf32>
    %5 = tpu.matmul %3, %4, %cst_5 {dimension_numbers = #tpu.dot_dimension_numbers<[1], [0], [0], [1], [0, 0, 1, 1], [], []>} : vector<128x12xf32>, vector<12x32xf32>, vector<128x32xf32> -> vector<128x32xf32>
    %6 = arith.addf %1, %5 : vector<128x32xf32>
    %c0_6 = arith.constant 0 : index
    %c0_7 = arith.constant 0 : index
    %c1 = arith.constant 1 : index
    %c0_8 = arith.constant 0 : index
    %7 = vector.load %arg1[%c0_6, %c0_7, %c1, %c0_8] : memref<2x9x9x12xf32, #tpu.memory_space<vmem>>, vector<2x8x8x12xf32>
    %8 = vector.shape_cast %7 : vector<2x8x8x12xf32> to vector<128x12xf32>
    %9 = vector.extract_strided_slice %0 {offsets = [12, 0], sizes = [12, 32], strides = [1, 1]} : vector<48x32xf32> to vector<12x32xf32>
    %cst_9 = arith.constant dense<0.000000e+00> : vector<128x32xf32>
    %10 = tpu.matmul %8, %9, %cst_9 {dimension_numbers = #tpu.dot_dimension_numbers<[1], [0], [0], [1], [0, 0, 1, 1], [], []>} : vector<128x12xf32>, vector<12x32xf32>, vector<128x32xf32> -> vector<128x32xf32>
    %11 = arith.addf %6, %10 : vector<128x32xf32>
    %c0_10 = arith.constant 0 : index
    %c1_11 = arith.constant 1 : index
    %c0_12 = arith.constant 0 : index
    %c0_13 = arith.constant 0 : index
    %12 = vector.load %arg1[%c0_10, %c1_11, %c0_12, %c0_13] : memref<2x9x9x12xf32, #tpu.memory_space<vmem>>, vector<2x8x8x12xf32>
    %13 = vector.shape_cast %12 : vector<2x8x8x12xf32> to vector<128x12xf32>
    %14 = vector.extract_strided_slice %0 {offsets = [24, 0], sizes = [12, 32], strides = [1, 1]} : vector<48x32xf32> to vector<12x32xf32>
    %cst_14 = arith.constant dense<0.000000e+00> : vector<128x32xf32>
    %15 = tpu.matmul %13, %14, %cst_14 {dimension_numbers = #tpu.dot_dimension_numbers<[1], [0], [0], [1], [0, 0, 1, 1], [], []>} : vector<128x12xf32>, vector<12x32xf32>, vector<128x32xf32> -> vector<128x32xf32>
    %16 = arith.addf %11, %15 : vector<128x32xf32>
    %c0_15 = arith.constant 0 : index
    %c1_16 = arith.constant 1 : index
    %c1_17 = arith.constant 1 : index
    %c0_18 = arith.constant 0 : index
    %17 = vector.load %arg1[%c0_15, %c1_16, %c1_17, %c0_18] : memref<2x9x9x12xf32, #tpu.memory_space<vmem>>, vector<2x8x8x12xf32>
    %18 = vector.shape_cast %17 : vector<2x8x8x12xf32> to vector<128x12xf32>
    %19 = vector.extract_strided_slice %0 {offsets = [36, 0], sizes = [12, 32], strides = [1, 1]} : vector<48x32xf32> to vector<12x32xf32>
    %cst_19 = arith.constant dense<0.000000e+00> : vector<128x32xf32>
    %20 = tpu.matmul %18, %19, %cst_19 {dimension_numbers = #tpu.dot_dimension_numbers<[1], [0], [0], [1], [0, 0, 1, 1], [], []>} : vector<128x12xf32>, vector<12x32xf32>, vector<128x32xf32> -> vector<128x32xf32>
    %21 = arith.addf %16, %20 : vector<128x32xf32>
    %c0_20 = arith.constant 0 : index
    %c0_21 = arith.constant 0 : index
    %22 = vector.load %arg3[%c0_20, %c0_21] : memref<1x32xf32, #tpu.memory_space<vmem>>, vector<1x32xf32>
    %23 = vector.shape_cast %22 : vector<1x32xf32> to vector<32xf32>
    %24 = vector.shape_cast %23 : vector<32xf32> to vector<1x32xf32>
    %25 = vector.broadcast %24 : vector<1x32xf32> to vector<128x32xf32>
    %26 = arith.addf %21, %25 : vector<128x32xf32>
    %27 = arith.negf %26 : vector<128x32xf32>
    %28 = math.exp %27 : vector<128x32xf32>
    %cst_22 = arith.constant 1.000000e+00 : f32
    %29 = vector.broadcast %cst_22 : f32 to vector<128x32xf32>
    %30 = arith.addf %29, %28 : vector<128x32xf32>
    %31 = arith.divf %29, %30 : vector<128x32xf32>
    %32 = arith.mulf %26, %31 : vector<128x32xf32>
    %cst_23 = arith.constant 0.000000e+00 : f32
    %33 = vector.broadcast %cst_23 : f32 to vector<2x1x10x32xf32>
    %c0_24 = arith.constant 0 : index
    %c0_25 = arith.constant 0 : index
    %c0_26 = arith.constant 0 : index
    %c0_27 = arith.constant 0 : index
    %34 = vector.load %arg13[%c0_24, %c0_25, %c0_26, %c0_27] : memref<2x10x10x32xf32, #tpu.memory_space<vmem>>, vector<2x1x10x32xf32>
    tpu.vector_store %arg13[%c0_24, %c0_25, %c0_26, %c0_27], %33 {strides = array<i32>} : memref<2x10x10x32xf32, #tpu.memory_space<vmem>>, vector<2x1x10x32xf32>,
    %cst_28 = arith.constant 0.000000e+00 : f32
    %35 = vector.broadcast %cst_28 : f32 to vector<2x1x10x32xf32>
    %c0_29 = arith.constant 0 : index
    %c9 = arith.constant 9 : index
    %c0_30 = arith.constant 0 : index
    %c0_31 = arith.constant 0 : index
    %36 = vector.load %arg13[%c0_29, %c9, %c0_30, %c0_31] : memref<2x10x10x32xf32, #tpu.memory_space<vmem>>, vector<2x1x10x32xf32>
    tpu.vector_store %arg13[%c0_29, %c9, %c0_30, %c0_31], %35 {strides = array<i32>} : memref<2x10x10x32xf32, #tpu.memory_space<vmem>>, vector<2x1x10x32xf32>,
    %cst_32 = arith.constant 0.000000e+00 : f32
    %37 = vector.broadcast %cst_32 : f32 to vector<2x10x1x32xf32>
    %c0_33 = arith.constant 0 : index
    %c0_34 = arith.constant 0 : index
    %c0_35 = arith.constant 0 : index
    %c0_36 = arith.constant 0 : index
    %38 = vector.load %arg13[%c0_33, %c0_34, %c0_35, %c0_36] : memref<2x10x10x32xf32, #tpu.memory_space<vmem>>, vector<2x10x1x32xf32>
    tpu.vector_store %arg13[%c0_33, %c0_34, %c0_35, %c0_36], %37 {strides = array<i32>} : memref<2x10x10x32xf32, #tpu.memory_space<vmem>>, vector<2x10x1x32xf32>,
    %cst_37 = arith.constant 0.000000e+00 : f32
    %39 = vector.broadcast %cst_37 : f32 to vector<2x10x1x32xf32>
    %c0_38 = arith.constant 0 : index
    %c0_39 = arith.constant 0 : index
    %c9_40 = arith.constant 9 : index
    %c0_41 = arith.constant 0 : index
    %40 = vector.load %arg13[%c0_38, %c0_39, %c9_40, %c0_41] : memref<2x10x10x32xf32, #tpu.memory_space<vmem>>, vector<2x10x1x32xf32>
    tpu.vector_store %arg13[%c0_38, %c0_39, %c9_40, %c0_41], %39 {strides = array<i32>} : memref<2x10x10x32xf32, #tpu.memory_space<vmem>>, vector<2x10x1x32xf32>,
    %41 = vector.shape_cast %32 : vector<128x32xf32> to vector<2x8x8x32xf32>
    %c0_42 = arith.constant 0 : index
    %c1_43 = arith.constant 1 : index
    %c1_44 = arith.constant 1 : index
    %c0_45 = arith.constant 0 : index
    %42 = vector.load %arg13[%c0_42, %c1_43, %c1_44, %c0_45] : memref<2x10x10x32xf32, #tpu.memory_space<vmem>>, vector<2x8x8x32xf32>
    tpu.vector_store %arg13[%c0_42, %c1_43, %c1_44, %c0_45], %41 {strides = array<i32>} : memref<2x10x10x32xf32, #tpu.memory_space<vmem>>, vector<2x8x8x32xf32>,
    %c0_46 = arith.constant 0 : index
    %c0_47 = arith.constant 0 : index
    %43 = vector.load %arg4[%c0_46, %c0_47] : memref<9x32xf32, #tpu.memory_space<vmem>>, vector<9x32xf32>
    %cst_48 = arith.constant 0.000000e+00 : f32
    %44 = vector.broadcast %cst_48 : f32 to vector<2x8x8x32xf32>
    %c0_49 = arith.constant 0 : index
    %c0_50 = arith.constant 0 : index
    %c0_51 = arith.constant 0 : index
    %c0_52 = arith.constant 0 : index
    %45 = vector.load %arg13[%c0_49, %c0_50, %c0_51, %c0_52] : memref<2x10x10x32xf32, #tpu.memory_space<vmem>>, vector<2x8x8x32xf32>
    %46 = vector.extract_strided_slice %43 {offsets = [0, 0], sizes = [1, 32], strides = [1, 1]} : vector<9x32xf32> to vector<1x32xf32>
    %47 = vector.shape_cast %46 : vector<1x32xf32> to vector<32xf32>
    %48 = vector.shape_cast %47 : vector<32xf32> to vector<1x1x1x32xf32>
    %49 = vector.broadcast %48 : vector<1x1x1x32xf32> to vector<2x8x8x32xf32>
    %50 = arith.mulf %45, %49 : vector<2x8x8x32xf32>
    %51 = arith.addf %44, %50 : vector<2x8x8x32xf32>
    %c0_53 = arith.constant 0 : index
    %c0_54 = arith.constant 0 : index
    %c1_55 = arith.constant 1 : index
    %c0_56 = arith.constant 0 : index
    %52 = vector.load %arg13[%c0_53, %c0_54, %c1_55, %c0_56] : memref<2x10x10x32xf32, #tpu.memory_space<vmem>>, vector<2x8x8x32xf32>
    %53 = vector.extract_strided_slice %43 {offsets = [1, 0], sizes = [1, 32], strides = [1, 1]} : vector<9x32xf32> to vector<1x32xf32>
    %54 = vector.shape_cast %53 : vector<1x32xf32> to vector<32xf32>
    %55 = vector.shape_cast %54 : vector<32xf32> to vector<1x1x1x32xf32>
    %56 = vector.broadcast %55 : vector<1x1x1x32xf32> to vector<2x8x8x32xf32>
    %57 = arith.mulf %52, %56 : vector<2x8x8x32xf32>
    %58 = arith.addf %51, %57 : vector<2x8x8x32xf32>
    %c0_57 = arith.constant 0 : index
    %c0_58 = arith.constant 0 : index
    %c2 = arith.constant 2 : index
    %c0_59 = arith.constant 0 : index
    %59 = vector.load %arg13[%c0_57, %c0_58, %c2, %c0_59] : memref<2x10x10x32xf32, #tpu.memory_space<vmem>>, vector<2x8x8x32xf32>
    %60 = vector.extract_strided_slice %43 {offsets = [2, 0], sizes = [1, 32], strides = [1, 1]} : vector<9x32xf32> to vector<1x32xf32>
    %61 = vector.shape_cast %60 : vector<1x32xf32> to vector<32xf32>
    %62 = vector.shape_cast %61 : vector<32xf32> to vector<1x1x1x32xf32>
    %63 = vector.broadcast %62 : vector<1x1x1x32xf32> to vector<2x8x8x32xf32>
    %64 = arith.mulf %59, %63 : vector<2x8x8x32xf32>
    %65 = arith.addf %58, %64 : vector<2x8x8x32xf32>
    %c0_60 = arith.constant 0 : index
    %c1_61 = arith.constant 1 : index
    %c0_62 = arith.constant 0 : index
    %c0_63 = arith.constant 0 : index
    %66 = vector.load %arg13[%c0_60, %c1_61, %c0_62, %c0_63] : memref<2x10x10x32xf32, #tpu.memory_space<vmem>>, vector<2x8x8x32xf32>
    %67 = vector.extract_strided_slice %43 {offsets = [3, 0], sizes = [1, 32], strides = [1, 1]} : vector<9x32xf32> to vector<1x32xf32>
    %68 = vector.shape_cast %67 : vector<1x32xf32> to vector<32xf32>
    %69 = vector.shape_cast %68 : vector<32xf32> to vector<1x1x1x32xf32>
    %70 = vector.broadcast %69 : vector<1x1x1x32xf32> to vector<2x8x8x32xf32>
    %71 = arith.mulf %66, %70 : vector<2x8x8x32xf32>
    %72 = arith.addf %65, %71 : vector<2x8x8x32xf32>
    %c0_64 = arith.constant 0 : index
    %c1_65 = arith.constant 1 : index
    %c1_66 = arith.constant 1 : index
    %c0_67 = arith.constant 0 : index
    %73 = vector.load %arg13[%c0_64, %c1_65, %c1_66, %c0_67] : memref<2x10x10x32xf32, #tpu.memory_space<vmem>>, vector<2x8x8x32xf32>
    %74 = vector.extract_strided_slice %43 {offsets = [4, 0], sizes = [1, 32], strides = [1, 1]} : vector<9x32xf32> to vector<1x32xf32>
    %75 = vector.shape_cast %74 : vector<1x32xf32> to vector<32xf32>
    %76 = vector.shape_cast %75 : vector<32xf32> to vector<1x1x1x32xf32>
    %77 = vector.broadcast %76 : vector<1x1x1x32xf32> to vector<2x8x8x32xf32>
    %78 = arith.mulf %73, %77 : vector<2x8x8x32xf32>
    %79 = arith.addf %72, %78 : vector<2x8x8x32xf32>
    %c0_68 = arith.constant 0 : index
    %c1_69 = arith.constant 1 : index
    %c2_70 = arith.constant 2 : index
    %c0_71 = arith.constant 0 : index
    %80 = vector.load %arg13[%c0_68, %c1_69, %c2_70, %c0_71] : memref<2x10x10x32xf32, #tpu.memory_space<vmem>>, vector<2x8x8x32xf32>
    %81 = vector.extract_strided_slice %43 {offsets = [5, 0], sizes = [1, 32], strides = [1, 1]} : vector<9x32xf32> to vector<1x32xf32>
    %82 = vector.shape_cast %81 : vector<1x32xf32> to vector<32xf32>
    %83 = vector.shape_cast %82 : vector<32xf32> to vector<1x1x1x32xf32>
    %84 = vector.broadcast %83 : vector<1x1x1x32xf32> to vector<2x8x8x32xf32>
    %85 = arith.mulf %80, %84 : vector<2x8x8x32xf32>
    %86 = arith.addf %79, %85 : vector<2x8x8x32xf32>
    %c0_72 = arith.constant 0 : index
    %c2_73 = arith.constant 2 : index
    %c0_74 = arith.constant 0 : index
    %c0_75 = arith.constant 0 : index
    %87 = vector.load %arg13[%c0_72, %c2_73, %c0_74, %c0_75] : memref<2x10x10x32xf32, #tpu.memory_space<vmem>>, vector<2x8x8x32xf32>
    %88 = vector.extract_strided_slice %43 {offsets = [6, 0], sizes = [1, 32], strides = [1, 1]} : vector<9x32xf32> to vector<1x32xf32>
    %89 = vector.shape_cast %88 : vector<1x32xf32> to vector<32xf32>
    %90 = vector.shape_cast %89 : vector<32xf32> to vector<1x1x1x32xf32>
    %91 = vector.broadcast %90 : vector<1x1x1x32xf32> to vector<2x8x8x32xf32>
    %92 = arith.mulf %87, %91 : vector<2x8x8x32xf32>
    %93 = arith.addf %86, %92 : vector<2x8x8x32xf32>
    %c0_76 = arith.constant 0 : index
    %c2_77 = arith.constant 2 : index
    %c1_78 = arith.constant 1 : index
    %c0_79 = arith.constant 0 : index
    %94 = vector.load %arg13[%c0_76, %c2_77, %c1_78, %c0_79] : memref<2x10x10x32xf32, #tpu.memory_space<vmem>>, vector<2x8x8x32xf32>
    %95 = vector.extract_strided_slice %43 {offsets = [7, 0], sizes = [1, 32], strides = [1, 1]} : vector<9x32xf32> to vector<1x32xf32>
    %96 = vector.shape_cast %95 : vector<1x32xf32> to vector<32xf32>
    %97 = vector.shape_cast %96 : vector<32xf32> to vector<1x1x1x32xf32>
    %98 = vector.broadcast %97 : vector<1x1x1x32xf32> to vector<2x8x8x32xf32>
    %99 = arith.mulf %94, %98 : vector<2x8x8x32xf32>
    %100 = arith.addf %93, %99 : vector<2x8x8x32xf32>
    %c0_80 = arith.constant 0 : index
    %c2_81 = arith.constant 2 : index
    %c2_82 = arith.constant 2 : index
    %c0_83 = arith.constant 0 : index
    %101 = vector.load %arg13[%c0_80, %c2_81, %c2_82, %c0_83] : memref<2x10x10x32xf32, #tpu.memory_space<vmem>>, vector<2x8x8x32xf32>
    %102 = vector.extract_strided_slice %43 {offsets = [8, 0], sizes = [1, 32], strides = [1, 1]} : vector<9x32xf32> to vector<1x32xf32>
    %103 = vector.shape_cast %102 : vector<1x32xf32> to vector<32xf32>
    %104 = vector.shape_cast %103 : vector<32xf32> to vector<1x1x1x32xf32>
    %105 = vector.broadcast %104 : vector<1x1x1x32xf32> to vector<2x8x8x32xf32>
    %106 = arith.mulf %101, %105 : vector<2x8x8x32xf32>
    %107 = arith.addf %100, %106 : vector<2x8x8x32xf32>
    %c0_84 = arith.constant 0 : index
    %c0_85 = arith.constant 0 : index
    %108 = vector.load %arg5[%c0_84, %c0_85] : memref<1x32xf32, #tpu.memory_space<vmem>>, vector<1x32xf32>
    %109 = vector.shape_cast %108 : vector<1x32xf32> to vector<32xf32>
    %110 = vector.shape_cast %109 : vector<32xf32> to vector<1x1x1x32xf32>
    %111 = vector.broadcast %110 : vector<1x1x1x32xf32> to vector<2x8x8x32xf32>
    %112 = arith.addf %107, %111 : vector<2x8x8x32xf32>
    %113 = arith.negf %112 : vector<2x8x8x32xf32>
    %114 = math.exp %113 : vector<2x8x8x32xf32>
    %cst_86 = arith.constant 1.000000e+00 : f32
    %115 = vector.broadcast %cst_86 : f32 to vector<2x8x8x32xf32>
    %116 = arith.addf %115, %114 : vector<2x8x8x32xf32>
    %117 = arith.divf %115, %116 : vector<2x8x8x32xf32>
    %118 = arith.mulf %112, %117 : vector<2x8x8x32xf32>
    %119 = vector.shape_cast %118 : vector<2x8x8x32xf32> to vector<128x32xf32>
    %c0_87 = arith.constant 0 : index
    %c0_88 = arith.constant 0 : index
    %120 = vector.load %arg6[%c0_87, %c0_88] : memref<32x96xf32, #tpu.memory_space<vmem>>, vector<32x96xf32>
    %cst_89 = arith.constant dense<0.000000e+00> : vector<128x96xf32>
    %121 = tpu.matmul %119, %120, %cst_89 {dimension_numbers = #tpu.dot_dimension_numbers<[1], [0], [0], [1], [0, 0, 1, 1], [], []>} : vector<128x32xf32>, vector<32x96xf32>, vector<128x96xf32> -> vector<128x96xf32>
    %c0_90 = arith.constant 0 : index
    %c0_91 = arith.constant 0 : index
    %122 = vector.load %arg7[%c0_90, %c0_91] : memref<1x96xf32, #tpu.memory_space<vmem>>, vector<1x96xf32>
    %123 = vector.shape_cast %122 : vector<1x96xf32> to vector<96xf32>
    %124 = vector.shape_cast %123 : vector<96xf32> to vector<1x96xf32>
    %125 = vector.broadcast %124 : vector<1x96xf32> to vector<128x96xf32>
    %126 = arith.addf %121, %125 : vector<128x96xf32>
    %127 = arith.negf %126 : vector<128x96xf32>
    %128 = math.exp %127 : vector<128x96xf32>
    %cst_92 = arith.constant 1.000000e+00 : f32
    %129 = vector.broadcast %cst_92 : f32 to vector<128x96xf32>
    %130 = arith.addf %129, %128 : vector<128x96xf32>
    %131 = arith.divf %129, %130 : vector<128x96xf32>
    %132 = arith.mulf %126, %131 : vector<128x96xf32>
    %cst_93 = arith.constant 0.000000e+00 : f32
    %133 = vector.broadcast %cst_93 : f32 to vector<2x1x10x96xf32>
    %c0_94 = arith.constant 0 : index
    %c0_95 = arith.constant 0 : index
    %c0_96 = arith.constant 0 : index
    %c0_97 = arith.constant 0 : index
    %134 = vector.load %arg14[%c0_94, %c0_95, %c0_96, %c0_97] : memref<2x10x10x96xf32, #tpu.memory_space<vmem>>, vector<2x1x10x96xf32>
    tpu.vector_store %arg14[%c0_94, %c0_95, %c0_96, %c0_97], %133 {strides = array<i32>} : memref<2x10x10x96xf32, #tpu.memory_space<vmem>>, vector<2x1x10x96xf32>,
    %cst_98 = arith.constant 0.000000e+00 : f32
    %135 = vector.broadcast %cst_98 : f32 to vector<2x1x10x96xf32>
    %c0_99 = arith.constant 0 : index
    %c9_100 = arith.constant 9 : index
    %c0_101 = arith.constant 0 : index
    %c0_102 = arith.constant 0 : index
    %136 = vector.load %arg14[%c0_99, %c9_100, %c0_101, %c0_102] : memref<2x10x10x96xf32, #tpu.memory_space<vmem>>, vector<2x1x10x96xf32>
    tpu.vector_store %arg14[%c0_99, %c9_100, %c0_101, %c0_102], %135 {strides = array<i32>} : memref<2x10x10x96xf32, #tpu.memory_space<vmem>>, vector<2x1x10x96xf32>,
    %cst_103 = arith.constant 0.000000e+00 : f32
    %137 = vector.broadcast %cst_103 : f32 to vector<2x10x1x96xf32>
    %c0_104 = arith.constant 0 : index
    %c0_105 = arith.constant 0 : index
    %c0_106 = arith.constant 0 : index
    %c0_107 = arith.constant 0 : index
    %138 = vector.load %arg14[%c0_104, %c0_105, %c0_106, %c0_107] : memref<2x10x10x96xf32, #tpu.memory_space<vmem>>, vector<2x10x1x96xf32>
    tpu.vector_store %arg14[%c0_104, %c0_105, %c0_106, %c0_107], %137 {strides = array<i32>} : memref<2x10x10x96xf32, #tpu.memory_space<vmem>>, vector<2x10x1x96xf32>,
    %cst_108 = arith.constant 0.000000e+00 : f32
    %139 = vector.broadcast %cst_108 : f32 to vector<2x10x1x96xf32>
    %c0_109 = arith.constant 0 : index
    %c0_110 = arith.constant 0 : index
    %c9_111 = arith.constant 9 : index
    %c0_112 = arith.constant 0 : index
    %140 = vector.load %arg14[%c0_109, %c0_110, %c9_111, %c0_112] : memref<2x10x10x96xf32, #tpu.memory_space<vmem>>, vector<2x10x1x96xf32>
    tpu.vector_store %arg14[%c0_109, %c0_110, %c9_111, %c0_112], %139 {strides = array<i32>} : memref<2x10x10x96xf32, #tpu.memory_space<vmem>>, vector<2x10x1x96xf32>,
    %141 = vector.shape_cast %132 : vector<128x96xf32> to vector<2x8x8x96xf32>
    %c0_113 = arith.constant 0 : index
    %c1_114 = arith.constant 1 : index
    %c1_115 = arith.constant 1 : index
    %c0_116 = arith.constant 0 : index
    %142 = vector.load %arg14[%c0_113, %c1_114, %c1_115, %c0_116] : memref<2x10x10x96xf32, #tpu.memory_space<vmem>>, vector<2x8x8x96xf32>
    tpu.vector_store %arg14[%c0_113, %c1_114, %c1_115, %c0_116], %141 {strides = array<i32>} : memref<2x10x10x96xf32, #tpu.memory_space<vmem>>, vector<2x8x8x96xf32>,
    %c0_117 = arith.constant 0 : index
    %c0_118 = arith.constant 0 : index
    %143 = vector.load %arg8[%c0_117, %c0_118] : memref<9x96xf32, #tpu.memory_space<vmem>>, vector<9x96xf32>
    %cst_119 = arith.constant 0.000000e+00 : f32
    %144 = vector.broadcast %cst_119 : f32 to vector<2x8x8x96xf32>
    %c0_120 = arith.constant 0 : index
    %c0_121 = arith.constant 0 : index
    %c0_122 = arith.constant 0 : index
    %c0_123 = arith.constant 0 : index
    %145 = vector.load %arg14[%c0_120, %c0_121, %c0_122, %c0_123] : memref<2x10x10x96xf32, #tpu.memory_space<vmem>>, vector<2x8x8x96xf32>
    %146 = vector.extract_strided_slice %143 {offsets = [0, 0], sizes = [1, 96], strides = [1, 1]} : vector<9x96xf32> to vector<1x96xf32>
    %147 = vector.shape_cast %146 : vector<1x96xf32> to vector<96xf32>
    %148 = vector.shape_cast %147 : vector<96xf32> to vector<1x1x1x96xf32>
    %149 = vector.broadcast %148 : vector<1x1x1x96xf32> to vector<2x8x8x96xf32>
    %150 = arith.mulf %145, %149 : vector<2x8x8x96xf32>
    %151 = arith.addf %144, %150 : vector<2x8x8x96xf32>
    %c0_124 = arith.constant 0 : index
    %c0_125 = arith.constant 0 : index
    %c1_126 = arith.constant 1 : index
    %c0_127 = arith.constant 0 : index
    %152 = vector.load %arg14[%c0_124, %c0_125, %c1_126, %c0_127] : memref<2x10x10x96xf32, #tpu.memory_space<vmem>>, vector<2x8x8x96xf32>
    %153 = vector.extract_strided_slice %143 {offsets = [1, 0], sizes = [1, 96], strides = [1, 1]} : vector<9x96xf32> to vector<1x96xf32>
    %154 = vector.shape_cast %153 : vector<1x96xf32> to vector<96xf32>
    %155 = vector.shape_cast %154 : vector<96xf32> to vector<1x1x1x96xf32>
    %156 = vector.broadcast %155 : vector<1x1x1x96xf32> to vector<2x8x8x96xf32>
    %157 = arith.mulf %152, %156 : vector<2x8x8x96xf32>
    %158 = arith.addf %151, %157 : vector<2x8x8x96xf32>
    %c0_128 = arith.constant 0 : index
    %c0_129 = arith.constant 0 : index
    %c2_130 = arith.constant 2 : index
    %c0_131 = arith.constant 0 : index
    %159 = vector.load %arg14[%c0_128, %c0_129, %c2_130, %c0_131] : memref<2x10x10x96xf32, #tpu.memory_space<vmem>>, vector<2x8x8x96xf32>
    %160 = vector.extract_strided_slice %143 {offsets = [2, 0], sizes = [1, 96], strides = [1, 1]} : vector<9x96xf32> to vector<1x96xf32>
    %161 = vector.shape_cast %160 : vector<1x96xf32> to vector<96xf32>
    %162 = vector.shape_cast %161 : vector<96xf32> to vector<1x1x1x96xf32>
    %163 = vector.broadcast %162 : vector<1x1x1x96xf32> to vector<2x8x8x96xf32>
    %164 = arith.mulf %159, %163 : vector<2x8x8x96xf32>
    %165 = arith.addf %158, %164 : vector<2x8x8x96xf32>
    %c0_132 = arith.constant 0 : index
    %c1_133 = arith.constant 1 : index
    %c0_134 = arith.constant 0 : index
    %c0_135 = arith.constant 0 : index
    %166 = vector.load %arg14[%c0_132, %c1_133, %c0_134, %c0_135] : memref<2x10x10x96xf32, #tpu.memory_space<vmem>>, vector<2x8x8x96xf32>
    %167 = vector.extract_strided_slice %143 {offsets = [3, 0], sizes = [1, 96], strides = [1, 1]} : vector<9x96xf32> to vector<1x96xf32>
    %168 = vector.shape_cast %167 : vector<1x96xf32> to vector<96xf32>
    %169 = vector.shape_cast %168 : vector<96xf32> to vector<1x1x1x96xf32>
    %170 = vector.broadcast %169 : vector<1x1x1x96xf32> to vector<2x8x8x96xf32>
    %171 = arith.mulf %166, %170 : vector<2x8x8x96xf32>
    %172 = arith.addf %165, %171 : vector<2x8x8x96xf32>
    %c0_136 = arith.constant 0 : index
    %c1_137 = arith.constant 1 : index
    %c1_138 = arith.constant 1 : index
    %c0_139 = arith.constant 0 : index
    %173 = vector.load %arg14[%c0_136, %c1_137, %c1_138, %c0_139] : memref<2x10x10x96xf32, #tpu.memory_space<vmem>>, vector<2x8x8x96xf32>
    %174 = vector.extract_strided_slice %143 {offsets = [4, 0], sizes = [1, 96], strides = [1, 1]} : vector<9x96xf32> to vector<1x96xf32>
    %175 = vector.shape_cast %174 : vector<1x96xf32> to vector<96xf32>
    %176 = vector.shape_cast %175 : vector<96xf32> to vector<1x1x1x96xf32>
    %177 = vector.broadcast %176 : vector<1x1x1x96xf32> to vector<2x8x8x96xf32>
    %178 = arith.mulf %173, %177 : vector<2x8x8x96xf32>
    %179 = arith.addf %172, %178 : vector<2x8x8x96xf32>
    %c0_140 = arith.constant 0 : index
    %c1_141 = arith.constant 1 : index
    %c2_142 = arith.constant 2 : index
    %c0_143 = arith.constant 0 : index
    %180 = vector.load %arg14[%c0_140, %c1_141, %c2_142, %c0_143] : memref<2x10x10x96xf32, #tpu.memory_space<vmem>>, vector<2x8x8x96xf32>
    %181 = vector.extract_strided_slice %143 {offsets = [5, 0], sizes = [1, 96], strides = [1, 1]} : vector<9x96xf32> to vector<1x96xf32>
    %182 = vector.shape_cast %181 : vector<1x96xf32> to vector<96xf32>
    %183 = vector.shape_cast %182 : vector<96xf32> to vector<1x1x1x96xf32>
    %184 = vector.broadcast %183 : vector<1x1x1x96xf32> to vector<2x8x8x96xf32>
    %185 = arith.mulf %180, %184 : vector<2x8x8x96xf32>
    %186 = arith.addf %179, %185 : vector<2x8x8x96xf32>
    %c0_144 = arith.constant 0 : index
    %c2_145 = arith.constant 2 : index
    %c0_146 = arith.constant 0 : index
    %c0_147 = arith.constant 0 : index
    %187 = vector.load %arg14[%c0_144, %c2_145, %c0_146, %c0_147] : memref<2x10x10x96xf32, #tpu.memory_space<vmem>>, vector<2x8x8x96xf32>
    %188 = vector.extract_strided_slice %143 {offsets = [6, 0], sizes = [1, 96], strides = [1, 1]} : vector<9x96xf32> to vector<1x96xf32>
    %189 = vector.shape_cast %188 : vector<1x96xf32> to vector<96xf32>
    %190 = vector.shape_cast %189 : vector<96xf32> to vector<1x1x1x96xf32>
    %191 = vector.broadcast %190 : vector<1x1x1x96xf32> to vector<2x8x8x96xf32>
    %192 = arith.mulf %187, %191 : vector<2x8x8x96xf32>
    %193 = arith.addf %186, %192 : vector<2x8x8x96xf32>
    %c0_148 = arith.constant 0 : index
    %c2_149 = arith.constant 2 : index
    %c1_150 = arith.constant 1 : index
    %c0_151 = arith.constant 0 : index
    %194 = vector.load %arg14[%c0_148, %c2_149, %c1_150, %c0_151] : memref<2x10x10x96xf32, #tpu.memory_space<vmem>>, vector<2x8x8x96xf32>
    %195 = vector.extract_strided_slice %143 {offsets = [7, 0], sizes = [1, 96], strides = [1, 1]} : vector<9x96xf32> to vector<1x96xf32>
    %196 = vector.shape_cast %195 : vector<1x96xf32> to vector<96xf32>
    %197 = vector.shape_cast %196 : vector<96xf32> to vector<1x1x1x96xf32>
    %198 = vector.broadcast %197 : vector<1x1x1x96xf32> to vector<2x8x8x96xf32>
    %199 = arith.mulf %194, %198 : vector<2x8x8x96xf32>
    %200 = arith.addf %193, %199 : vector<2x8x8x96xf32>
    %c0_152 = arith.constant 0 : index
    %c2_153 = arith.constant 2 : index
    %c2_154 = arith.constant 2 : index
    %c0_155 = arith.constant 0 : index
    %201 = vector.load %arg14[%c0_152, %c2_153, %c2_154, %c0_155] : memref<2x10x10x96xf32, #tpu.memory_space<vmem>>, vector<2x8x8x96xf32>
    %202 = vector.extract_strided_slice %143 {offsets = [8, 0], sizes = [1, 96], strides = [1, 1]} : vector<9x96xf32> to vector<1x96xf32>
    %203 = vector.shape_cast %202 : vector<1x96xf32> to vector<96xf32>
    %204 = vector.shape_cast %203 : vector<96xf32> to vector<1x1x1x96xf32>
    %205 = vector.broadcast %204 : vector<1x1x1x96xf32> to vector<2x8x8x96xf32>
    %206 = arith.mulf %201, %205 : vector<2x8x8x96xf32>
    %207 = arith.addf %200, %206 : vector<2x8x8x96xf32>
    %208 = vector.shape_cast %207 : vector<2x8x8x96xf32> to vector<2x4x2x8x96xf32>
    %209 = vector.extract_strided_slice %208 {offsets = [0, 0, 0, 0, 0], sizes = [2, 4, 1, 8, 96], strides = [1, 1, 1, 1, 1]} : vector<2x4x2x8x96xf32> to vector<2x4x1x8x96xf32>
    %210 = vector.shape_cast %209 : vector<2x4x1x8x96xf32> to vector<2x4x8x96xf32>
    %211 = vector.extract_strided_slice %210 {offsets = [0, 0, 0, 0], sizes = [2, 4, 1, 96], strides = [1, 1, 1, 1]} : vector<2x4x8x96xf32> to vector<2x4x1x96xf32>
    %212 = vector.extract_strided_slice %210 {offsets = [0, 0, 2, 0], sizes = [2, 4, 1, 96], strides = [1, 1, 1, 1]} : vector<2x4x8x96xf32> to vector<2x4x1x96xf32>
    %213 = vector.extract_strided_slice %210 {offsets = [0, 0, 4, 0], sizes = [2, 4, 1, 96], strides = [1, 1, 1, 1]} : vector<2x4x8x96xf32> to vector<2x4x1x96xf32>
    %214 = vector.extract_strided_slice %210 {offsets = [0, 0, 6, 0], sizes = [2, 4, 1, 96], strides = [1, 1, 1, 1]} : vector<2x4x8x96xf32> to vector<2x4x1x96xf32>
    %215 = tpu.concatenate %211, %212, %213, %214 in 2 : vector<2x4x1x96xf32>, vector<2x4x1x96xf32>, vector<2x4x1x96xf32>, vector<2x4x1x96xf32> -> vector<2x4x4x96xf32>
    %c0_156 = arith.constant 0 : index
    %c0_157 = arith.constant 0 : index
    %216 = vector.load %arg9[%c0_156, %c0_157] : memref<1x96xf32, #tpu.memory_space<vmem>>, vector<1x96xf32>
    %217 = vector.shape_cast %216 : vector<1x96xf32> to vector<96xf32>
    %218 = vector.shape_cast %217 : vector<96xf32> to vector<1x1x1x96xf32>
    %219 = vector.broadcast %218 : vector<1x1x1x96xf32> to vector<2x4x4x96xf32>
    %220 = arith.addf %215, %219 : vector<2x4x4x96xf32>
    %221 = arith.negf %220 : vector<2x4x4x96xf32>
    %222 = math.exp %221 : vector<2x4x4x96xf32>
    %cst_158 = arith.constant 1.000000e+00 : f32
    %223 = vector.broadcast %cst_158 : f32 to vector<2x4x4x96xf32>
    %224 = arith.addf %223, %222 : vector<2x4x4x96xf32>
    %225 = arith.divf %223, %224 : vector<2x4x4x96xf32>
    %226 = arith.mulf %220, %225 : vector<2x4x4x96xf32>
    %227 = vector.shape_cast %226 : vector<2x4x4x96xf32> to vector<32x96xf32>
    %c0_159 = arith.constant 0 : index
    %c0_160 = arith.constant 0 : index
    %228 = vector.load %arg10[%c0_159, %c0_160] : memref<96x24xf32, #tpu.memory_space<vmem>>, vector<96x24xf32>
    %cst_161 = arith.constant dense<0.000000e+00> : vector<32x24xf32>
    %229 = tpu.matmul %227, %228, %cst_161 {dimension_numbers = #tpu.dot_dimension_numbers<[1], [0], [0], [1], [0, 0, 1, 1], [], []>} : vector<32x96xf32>, vector<96x24xf32>, vector<32x24xf32> -> vector<32x24xf32>
    %c0_162 = arith.constant 0 : index
    %c0_163 = arith.constant 0 : index
    %230 = vector.load %arg11[%c0_162, %c0_163] : memref<1x24xf32, #tpu.memory_space<vmem>>, vector<1x24xf32>
    %231 = vector.shape_cast %230 : vector<1x24xf32> to vector<24xf32>
    %232 = vector.shape_cast %231 : vector<24xf32> to vector<1x24xf32>
    %233 = vector.broadcast %232 : vector<1x24xf32> to vector<32x24xf32>
    %234 = arith.addf %229, %233 : vector<32x24xf32>
    %235 = vector.shape_cast %234 : vector<32x24xf32> to vector<2x16x24xf32>
    %c0_164 = arith.constant 0 : index
    %c0_165 = arith.constant 0 : index
    %c0_166 = arith.constant 0 : index
    %236 = vector.load %arg12[%c0_164, %c0_165, %c0_166] : memref<2x16x24xf32, #tpu.memory_space<vmem>>, vector<2x16x24xf32>
    tpu.vector_store %arg12[%c0_164, %c0_165, %c0_166], %235 {strides = array<i32>} : memref<2x16x24xf32, #tpu.memory_space<vmem>>, vector<2x16x24xf32>,
    return
  }
  func.func @transform_0(%arg0: i32) -> (i32, i32, i32, i32) {
    %c0_i32 = arith.constant 0 : i32
    %c0_i32_0 = arith.constant 0 : i32
    %c0_i32_1 = arith.constant 0 : i32
    %c0_i32_2 = arith.constant 0 : i32
    return %arg0, %c0_i32, %c0_i32_0, %c0_i32_1 : i32, i32, i32, i32
  }
  func.func @transform_1(%arg0: i32) -> (i32, i32) {
    %c0_i32 = arith.constant 0 : i32
    %c0_i32_0 = arith.constant 0 : i32
    %c0_i32_1 = arith.constant 0 : i32
    return %c0_i32, %c0_i32_0 : i32, i32
  }
  func.func @transform_2(%arg0: i32) -> (i32, i32) {
    %c0_i32 = arith.constant 0 : i32
    %c0_i32_0 = arith.constant 0 : i32
    %c0_i32_1 = arith.constant 0 : i32
    return %c0_i32, %c0_i32_0 : i32, i32
  }
  func.func @transform_3(%arg0: i32) -> (i32, i32) {
    %c0_i32 = arith.constant 0 : i32
    %c0_i32_0 = arith.constant 0 : i32
    %c0_i32_1 = arith.constant 0 : i32
    return %c0_i32, %c0_i32_0 : i32, i32
  }
  func.func @transform_4(%arg0: i32) -> (i32, i32) {
    %c0_i32 = arith.constant 0 : i32
    %c0_i32_0 = arith.constant 0 : i32
    %c0_i32_1 = arith.constant 0 : i32
    return %c0_i32, %c0_i32_0 : i32, i32
  }
  func.func @transform_5(%arg0: i32) -> (i32, i32) {
    %c0_i32 = arith.constant 0 : i32
    %c0_i32_0 = arith.constant 0 : i32
    %c0_i32_1 = arith.constant 0 : i32
    return %c0_i32, %c0_i32_0 : i32, i32
  }
  func.func @transform_6(%arg0: i32) -> (i32, i32) {
    %c0_i32 = arith.constant 0 : i32
    %c0_i32_0 = arith.constant 0 : i32
    %c0_i32_1 = arith.constant 0 : i32
    return %c0_i32, %c0_i32_0 : i32, i32
  }
  func.func @transform_7(%arg0: i32) -> (i32, i32) {
    %c0_i32 = arith.constant 0 : i32
    %c0_i32_0 = arith.constant 0 : i32
    %c0_i32_1 = arith.constant 0 : i32
    return %c0_i32, %c0_i32_0 : i32, i32
  }
  func.func @transform_8(%arg0: i32) -> (i32, i32) {
    %c0_i32 = arith.constant 0 : i32
    %c0_i32_0 = arith.constant 0 : i32
    %c0_i32_1 = arith.constant 0 : i32
    return %c0_i32, %c0_i32_0 : i32, i32
  }
  func.func @transform_9(%arg0: i32) -> (i32, i32) {
    %c0_i32 = arith.constant 0 : i32
    %c0_i32_0 = arith.constant 0 : i32
    %c0_i32_1 = arith.constant 0 : i32
    return %c0_i32, %c0_i32_0 : i32, i32
  }
  func.func @transform_10(%arg0: i32) -> (i32, i32) {
    %c0_i32 = arith.constant 0 : i32
    %c0_i32_0 = arith.constant 0 : i32
    %c0_i32_1 = arith.constant 0 : i32
    return %c0_i32, %c0_i32_0 : i32, i32
  }
  func.func @transform_11(%arg0: i32) -> (i32, i32, i32) {
    %c0_i32 = arith.constant 0 : i32
    %c0_i32_0 = arith.constant 0 : i32
    %c0_i32_1 = arith.constant 0 : i32
    return %arg0, %c0_i32, %c0_i32_0 : i32, i32, i32
  }
}

</mosaic_0001>

<llo_original>
// kernel: variable_length_efficientnet_features.1
$region0: #{variable_length_efficientnet_features.1}
  #allocation0 [shape = 'u32[]', space=smem, size = 0x4, offset = 0x4, fixed_abs, tag = 'smem constant byte address 0x4 - core index']
  #allocation1 [shape = 'u32[72,128]{1,0:T(1,128)}', space=vmem, size = 0x9000, scoped, tag = 'internal scratch']
  #allocation2 [shape = 'f32[2,10,10,32]{3,2,1,0:T(8,128)}', space=vmem, size = 0x28000, scoped, tag = 'scratch operand']
  #allocation3 [shape = 'f32[2,10,10,96]{3,2,1,0:T(8,128)}', space=vmem, size = 0x28000, scoped, tag = 'scratch operand']
  %s0 = inlined_call_operand.vmem [shape: f32[2,9,9,12], index: 0, kind: input, shape index: {}]
  %s1 = inlined_call_operand.vmem [shape: f32[48,32], index: 1, kind: input, shape index: {}]
  %s2 = inlined_call_operand.vmem [shape: f32[1,32], index: 2, kind: input, shape index: {}]
  %s3 = inlined_call_operand.vmem [shape: f32[9,32], index: 3, kind: input, shape index: {}]
  %s4 = inlined_call_operand.vmem [shape: f32[1,32], index: 4, kind: input, shape index: {}]
  %s5 = inlined_call_operand.vmem [shape: f32[32,96], index: 5, kind: input, shape index: {}]
  %s6 = inlined_call_operand.vmem [shape: f32[1,96], index: 6, kind: input, shape index: {}]
  %s7 = inlined_call_operand.vmem [shape: f32[9,96], index: 7, kind: input, shape index: {}]
  %s8 = inlined_call_operand.vmem [shape: f32[1,96], index: 8, kind: input, shape index: {}]
  %s9 = inlined_call_operand.vmem [shape: f32[96,24], index: 9, kind: input, shape index: {}]
  %s10 = inlined_call_operand.vmem [shape: f32[1,24], index: 10, kind: input, shape index: {}]
  %s11 = inlined_call_operand.hbm [shape: f32[2,16,24], index: 11, kind: output, shape index: {}]
  %s12 = sld [smem:[#allocation0]]
  $region54: #{variable_length_efficientnet_features.1} parent=0
    _
  %s14 = ssub.s32 1, %s12
  %s15 = scalar_select 0, %s14, %s12
  $region1: #{variable_length_efficientnet_features.1} parent=0
    #allocation4 [shape = 'u8[16384]{0}', space=vmem, size = 0x4000, scoped, tag = 'output window, operand 0, single buffered']
    #allocation5 [shape = 's32[1]{0}', space=sflag, size = 0x4, scoped, tag = 'scoped memory for variable_length_efficientnet_features.1']
    %16 = vsyncpa [#allocation5], 0
    // Predicated region
    $region2: #{variable_length_efficientnet_features.1} parent=1 // pred_check
      _
    $region3: #{variable_length_efficientnet_features.1} parent=1 // pred_check_branch
      %18 = sbr.rel (0) target = $region5
    $region4: #{variable_length_efficientnet_features.1} parent=1 // pred_region
      _
    $region5: #{variable_length_efficientnet_features.1} parent=1 // pred_fallthru
      _
    // Predicated region
    $region6: #{variable_length_efficientnet_features.1} parent=1 // pred_check
      _
    $region7: #{variable_length_efficientnet_features.1} parent=1 // pred_check_branch
      %20 = sbr.rel (0) target = $region9
    $region8: #{variable_length_efficientnet_features.1} parent=1 // pred_region
      _
    $region9: #{variable_length_efficientnet_features.1} parent=1 // pred_fallthru
      _
    // Predicated region
    $region10: #{variable_length_efficientnet_features.1} parent=1 // pred_check
      _
    $region11: #{variable_length_efficientnet_features.1} parent=1 // pred_check_branch
      %22 = sbr.rel (0) target = $region13
    $region12: #{variable_length_efficientnet_features.1} parent=1 // pred_region
      _
    $region13: #{variable_length_efficientnet_features.1} parent=1 // pred_fallthru
      _
    // Predicated region
    $region14: #{variable_length_efficientnet_features.1} parent=1 // pred_check
      _
    $region15: #{variable_length_efficientnet_features.1} parent=1 // pred_check_branch
      %24 = sbr.rel (0) target = $region17
    $region16: #{variable_length_efficientnet_features.1} parent=1 // pred_region
      _
    $region17: #{variable_length_efficientnet_features.1} parent=1 // pred_fallthru
      _
    // Predicated region
    $region18: #{variable_length_efficientnet_features.1} parent=1 // pred_check
      _
    $region19: #{variable_length_efficientnet_features.1} parent=1 // pred_check_branch
      %26 = sbr.rel (0) target = $region21
    $region20: #{variable_length_efficientnet_features.1} parent=1 // pred_region
      _
    $region21: #{variable_length_efficientnet_features.1} parent=1 // pred_fallthru
      _
    // Predicated region
    $region22: #{variable_length_efficientnet_features.1} parent=1 // pred_check
      _
    $region23: #{variable_length_efficientnet_features.1} parent=1 // pred_check_branch
      %28 = sbr.rel (0) target = $region25
    $region24: #{variable_length_efficientnet_features.1} parent=1 // pred_region
      _
    $region25: #{variable_length_efficientnet_features.1} parent=1 // pred_fallthru
      _
    // Predicated region
    $region26: #{variable_length_efficientnet_features.1} parent=1 // pred_check
      _
    $region27: #{variable_length_efficientnet_features.1} parent=1 // pred_check_branch
      %30 = sbr.rel (0) target = $region29
    $region28: #{variable_length_efficientnet_features.1} parent=1 // pred_region
      _
    $region29: #{variable_length_efficientnet_features.1} parent=1 // pred_fallthru
      _
    // Predicated region
    $region30: #{variable_length_efficientnet_features.1} parent=1 // pred_check
      _
    $region31: #{variable_length_efficientnet_features.1} parent=1 // pred_check_branch
      %32 = sbr.rel (0) target = $region33
    $region32: #{variable_length_efficientnet_features.1} parent=1 // pred_region
      _
    $region33: #{variable_length_efficientnet_features.1} parent=1 // pred_fallthru
      _
    // Predicated region
    $region34: #{variable_length_efficientnet_features.1} parent=1 // pred_check
      _
    $region35: #{variable_length_efficientnet_features.1} parent=1 // pred_check_branch
      %34 = sbr.rel (0) target = $region37
    $region36: #{variable_length_efficientnet_features.1} parent=1 // pred_region
      _
    $region37: #{variable_length_efficientnet_features.1} parent=1 // pred_fallthru
      _
    // Predicated region
    $region38: #{variable_length_efficientnet_features.1} parent=1 // pred_check
      _
    $region39: #{variable_length_efficientnet_features.1} parent=1 // pred_check_branch
      %36 = sbr.rel (0) target = $region41
    $region40: #{variable_length_efficientnet_features.1} parent=1 // pred_region
      _
    $region41: #{variable_length_efficientnet_features.1} parent=1 // pred_fallthru
      _
    // Predicated region
    $region42: #{variable_length_efficientnet_features.1} parent=1 // pred_check
      _
    $region43: #{variable_length_efficientnet_features.1} parent=1 // pred_check_branch
      %38 = sbr.rel (0) target = $region45
    $region44: #{variable_length_efficientnet_features.1} parent=1 // pred_region
      _
    $region45: #{variable_length_efficientnet_features.1} parent=1 // pred_fallthru
      _
    %v39 = vld [vmem:[%s1] sm:$0xff]
    %v40 = vld [vmem:[%s1 + $0x8] sm:$0xff]
    %v41 = vld [vmem:[%s1 + $0x10] sm:$0xff]
    %v42 = vld [vmem:[%s1 + $0x18] sm:$0xff]
    %v43 = vld [vmem:[%s1 + $0x20] sm:$0xff]
    %v44 = vld [vmem:[%s1 + $0x28] sm:$0xff]
    %v45 = vld [vmem:[%s0] sm:$0xff]
    %v46 = vld [vmem:[%s0 + $0x10] sm:$0xff]
    %v47 = vld [vmem:[%s0 + $0x20] sm:$0xff]
    %v48 = vld [vmem:[%s0 + $0x30] sm:$0xff]
    %v49 = vld [vmem:[%s0 + $0x40] sm:$0xff]
    %v50 = vld [vmem:[%s0 + $0x50] sm:$0xff]
    %v51 = vld [vmem:[%s0 + $0x60] sm:$0xff]
    %v52 = vld [vmem:[%s0 + $0x70] sm:$0xff]
    %v53 = vld [vmem:[%s0 + $0x90] sm:$0xff]
    %v54 = vld [vmem:[%s0 + $0xa0] sm:$0xff]
    %v55 = vld [vmem:[%s0 + $0xb0] sm:$0xff]
    %v56 = vld [vmem:[%s0 + $0xc0] sm:$0xff]
    %v57 = vld [vmem:[%s0 + $0xd0] sm:$0xff]
    %v58 = vld [vmem:[%s0 + $0xe0] sm:$0xff]
    %v59 = vld [vmem:[%s0 + $0xf0] sm:$0xff]
    %v60 = vld [vmem:[%s0 + $0x100] sm:$0xff]
    %v61 = vld [vmem:[%s0 + $0x1] sm:$0xff]
    %v62 = vld [vmem:[%s0 + $0x11] sm:$0xff]
    %v63 = vld [vmem:[%s0 + $0x21] sm:$0xff]
    %v64 = vld [vmem:[%s0 + $0x31] sm:$0xff]
    %v65 = vld [vmem:[%s0 + $0x41] sm:$0xff]
    %v66 = vld [vmem:[%s0 + $0x51] sm:$0xff]
    %v67 = vld [vmem:[%s0 + $0x61] sm:$0xff]
    %v68 = vld [vmem:[%s0 + $0x71] sm:$0xff]
    %v69 = vld [vmem:[%s0 + $0x91] sm:$0xff]
    %v70 = vld [vmem:[%s0 + $0xa1] sm:$0xff]
    %v71 = vld [vmem:[%s0 + $0xb1] sm:$0xff]
    %v72 = vld [vmem:[%s0 + $0xc1] sm:$0xff]
    %v73 = vld [vmem:[%s0 + $0xd1] sm:$0xff]
    %v74 = vld [vmem:[%s0 + $0xe1] sm:$0xff]
    %v75 = vld [vmem:[%s0 + $0xf1] sm:$0xff]
    %v76 = vld [vmem:[%s0 + $0x101] sm:$0xff]
    %vm79 = vcmask 1043456
    %v80 = vrot.slane %v40, 4
    %v81 = vrot.slane %v41, 4
    %v82 = vsel %vm79, %v80, %v81
    %vm84 = vcmask 97280
    %v86 = vsel %vm84, %v61, 0
    %v89 = vsel %vm84, %v62, 0
    %v92 = vsel %vm84, %v63, 0
    %v95 = vsel %vm84, %v64, 0
    %v98 = vsel %vm84, %v65, 0
    %v101 = vsel %vm84, %v66, 0
    %v104 = vsel %vm84, %v67, 0
    %v107 = vsel %vm84, %v68, 0
    %v110 = vsel %vm84, %v69, 0
    %v113 = vsel %vm84, %v70, 0
    %v116 = vsel %vm84, %v71, 0
    %v119 = vsel %vm84, %v72, 0
    %v122 = vsel %vm84, %v73, 0
    %v125 = vsel %vm84, %v74, 0
    %v128 = vsel %vm84, %v75, 0
    %v131 = vsel %vm84, %v76, 0
    %v133 = vsel %vm79, %v81, 0
    %135 = vmatpush.msra.mxu0 0.0
    %136 = vmatpush.msra.mxu0 0.0
    %137 = vmatpush.msra.mxu0 0.0
    %138 = vmatpush.msra.mxu0 0.0
    %139 = vmatpush.msra.mxu0 0.0
    %140 = vmatpush.msra.mxu0 0.0
    %141 = vmatpush.msra.mxu0 0.0
    %142 = vmatpush.msra.mxu0 0.0
    %143 = vmatpush.msra.mxu0 0.0
    %144 = vmatpush.msra.mxu0 0.0
    %145 = vmatpush.msra.mxu0 0.0
    %146 = vmatpush.msra.mxu0 0.0
    %147 = vmatpush.msra.mxu0 0.0
    %148 = vmatpush.msra.mxu0 0.0
    %149 = vmatpush.msra.mxu0 %v133
    %150 = vmatpush.msra.mxu0 %v82
    %151 = vmatmul.f32.gmra.mxu0 %v86
    %v152 = vpop.f32.mrf.mxu0
    %v153 = vadd.f32 0.0, %v152
    %154 = vmatmul.f32.gmra.mxu0 %v89
    %v155 = vpop.f32.mrf.mxu0
    %v156 = vadd.f32 0.0, %v155
    %157 = vmatmul.f32.gmra.mxu0 %v92
    %v158 = vpop.f32.mrf.mxu0
    %v159 = vadd.f32 0.0, %v158
    %160 = vmatmul.f32.gmra.mxu0 %v95
    %v161 = vpop.f32.mrf.mxu0
    %v162 = vadd.f32 0.0, %v161
    %163 = vmatmul.f32.gmra.mxu0 %v98
    %v164 = vpop.f32.mrf.mxu0
    %v165 = vadd.f32 0.0, %v164
    %166 = vmatmul.f32.gmra.mxu0 %v101
    %v167 = vpop.f32.mrf.mxu0
    %v168 = vadd.f32 0.0, %v167
    %169 = vmatmul.f32.gmra.mxu0 %v104
    %v170 = vpop.f32.mrf.mxu0
    %v171 = vadd.f32 0.0, %v170
    %172 = vmatmul.f32.gmra.mxu0 %v107
    %v173 = vpop.f32.mrf.mxu0
    %v174 = vadd.f32 0.0, %v173
    %175 = vmatmul.f32.gmra.mxu0 %v110
    %v176 = vpop.f32.mrf.mxu0
    %v177 = vadd.f32 0.0, %v176
    %178 = vmatmul.f32.gmra.mxu0 %v113
    %v179 = vpop.f32.mrf.mxu0
    %v180 = vadd.f32 0.0, %v179
    %181 = vmatmul.f32.gmra.mxu0 %v116
    %v182 = vpop.f32.mrf.mxu0
    %v183 = vadd.f32 0.0, %v182
    %184 = vmatmul.f32.gmra.mxu0 %v119
    %v185 = vpop.f32.mrf.mxu0
    %v186 = vadd.f32 0.0, %v185
    %187 = vmatmul.f32.gmra.mxu0 %v122
    %v188 = vpop.f32.mrf.mxu0
    %v189 = vadd.f32 0.0, %v188
    %190 = vmatmul.f32.gmra.mxu0 %v125
    %v191 = vpop.f32.mrf.mxu0
    %v192 = vadd.f32 0.0, %v191
    %193 = vmatmul.f32.gmra.mxu0 %v128
    %v194 = vpop.f32.mrf.mxu0
    %v195 = vadd.f32 0.0, %v194
    %196 = vmatmul.f32.gmra.mxu0 %v131
    %v197 = vpop.f32.mrf.mxu0
    %v198 = vadd.f32 0.0, %v197
    %199 = vdwg.mxu0
    %v201 = vsel %vm84, %v45, 0
    %v204 = vsel %vm84, %v46, 0
    %v207 = vsel %vm84, %v47, 0
    %v210 = vsel %vm84, %v48, 0
    %v213 = vsel %vm84, %v49, 0
    %v216 = vsel %vm84, %v50, 0
    %v219 = vsel %vm84, %v51, 0
    %v222 = vsel %vm84, %v52, 0
    %v225 = vsel %vm84, %v53, 0
    %v228 = vsel %vm84, %v54, 0
    %v231 = vsel %vm84, %v55, 0
    %v234 = vsel %vm84, %v56, 0
    %v237 = vsel %vm84, %v57, 0
    %v240 = vsel %vm84, %v58, 0
    %v243 = vsel %vm84, %v59, 0
    %v246 = vsel %vm84, %v60, 0
    %v248 = vsel %vm79, %v40, 0
    %250 = vmatpush.msra.mxu0 0.0
    %251 = vmatpush.msra.mxu0 0.0
    %252 = vmatpush.msra.mxu0 0.0
    %253 = vmatpush.msra.mxu0 0.0
    %254 = vmatpush.msra.mxu0 0.0
    %255 = vmatpush.msra.mxu0 0.0
    %256 = vmatpush.msra.mxu0 0.0
    %257 = vmatpush.msra.mxu0 0.0
    %258 = vmatpush.msra.mxu0 0.0
    %259 = vmatpush.msra.mxu0 0.0
    %260 = vmatpush.msra.mxu0 0.0
    %261 = vmatpush.msra.mxu0 0.0
    %262 = vmatpush.msra.mxu0 0.0
    %263 = vmatpush.msra.mxu0 0.0
    %264 = vmatpush.msra.mxu0 %v248
    %265 = vmatpush.msra.mxu0 %v39
    %266 = vmatmul.f32.gmra.mxu0 %v201
    %v267 = vpop.f32.mrf.mxu0
    %v268 = vadd.f32 %v153, %v267
    %269 = vmatmul.f32.gmra.mxu0 %v204
    %v270 = vpop.f32.mrf.mxu0
    %v271 = vadd.f32 %v156, %v270
    %272 = vmatmul.f32.gmra.mxu0 %v207
    %v273 = vpop.f32.mrf.mxu0
    %v274 = vadd.f32 %v159, %v273
    %275 = vmatmul.f32.gmra.mxu0 %v210
    %v276 = vpop.f32.mrf.mxu0
    %v277 = vadd.f32 %v162, %v276
    %278 = vmatmul.f32.gmra.mxu0 %v213
    %v279 = vpop.f32.mrf.mxu0
    %v280 = vadd.f32 %v165, %v279
    %281 = vmatmul.f32.gmra.mxu0 %v216
    %v282 = vpop.f32.mrf.mxu0
    %v283 = vadd.f32 %v168, %v282
    %284 = vmatmul.f32.gmra.mxu0 %v219
    %v285 = vpop.f32.mrf.mxu0
    %v286 = vadd.f32 %v171, %v285
    %287 = vmatmul.f32.gmra.mxu0 %v222
    %v288 = vpop.f32.mrf.mxu0
    %v289 = vadd.f32 %v174, %v288
    %290 = vmatmul.f32.gmra.mxu0 %v225
    %v291 = vpop.f32.mrf.mxu0
    %v292 = vadd.f32 %v177, %v291
    %293 = vmatmul.f32.gmra.mxu0 %v228
    %v294 = vpop.f32.mrf.mxu0
    %v295 = vadd.f32 %v180, %v294
    %296 = vmatmul.f32.gmra.mxu0 %v231
    %v297 = vpop.f32.mrf.mxu0
    %v298 = vadd.f32 %v183, %v297
    %299 = vmatmul.f32.gmra.mxu0 %v234
    %v300 = vpop.f32.mrf.mxu0
    %v301 = vadd.f32 %v186, %v300
    %302 = vmatmul.f32.gmra.mxu0 %v237
    %v303 = vpop.f32.mrf.mxu0
    %v304 = vadd.f32 %v189, %v303
    %305 = vmatmul.f32.gmra.mxu0 %v240
    %v306 = vpop.f32.mrf.mxu0
    %v307 = vadd.f32 %v192, %v306
    %308 = vmatmul.f32.gmra.mxu0 %v243
    %v309 = vpop.f32.mrf.mxu0
    %v310 = vadd.f32 %v195, %v309
    %311 = vmatmul.f32.gmra.mxu0 %v246
    %v312 = vpop.f32.mrf.mxu0
    %v313 = vadd.f32 %v198, %v312
    %314 = vdwg.mxu0
    %s315 = scalar_lea.vmem %s0, 16
    %v316 = vld [vmem:[%s315] sm:$0xff]
    %v317 = vld [vmem:[%s315 + $0x10] sm:$0xff]
    %v318 = vld [vmem:[%s315 + $0x20] sm:$0xff]
    %v319 = vld [vmem:[%s315 + $0x30] sm:$0xff]
    %v320 = vld [vmem:[%s315 + $0x40] sm:$0xff]
    %v321 = vld [vmem:[%s315 + $0x50] sm:$0xff]
    %v322 = vld [vmem:[%s315 + $0x60] sm:$0xff]
    %v323 = vld [vmem:[%s315 + $0x70] sm:$0xff]
    %v324 = vld [vmem:[%s315 + $0x90] sm:$0xff]
    %v325 = vld [vmem:[%s315 + $0xa0] sm:$0xff]
    %v326 = vld [vmem:[%s315 + $0xb0] sm:$0xff]
    %v327 = vld [vmem:[%s315 + $0xc0] sm:$0xff]
    %v328 = vld [vmem:[%s315 + $0xd0] sm:$0xff]
    %v329 = vld [vmem:[%s315 + $0xe0] sm:$0xff]
    %v330 = vld [vmem:[%s315 + $0xf0] sm:$0xff]
    %v331 = vld [vmem:[%s315 + $0x100] sm:$0xff]
    %v333 = vsel %vm84, %v316, 0
    %v336 = vsel %vm84, %v317, 0
    %v339 = vsel %vm84, %v318, 0
    %v342 = vsel %vm84, %v319, 0
    %v345 = vsel %vm84, %v320, 0
    %v348 = vsel %vm84, %v321, 0
    %v351 = vsel %vm84, %v322, 0
    %v354 = vsel %vm84, %v323, 0
    %v357 = vsel %vm84, %v324, 0
    %v360 = vsel %vm84, %v325, 0
    %v363 = vsel %vm84, %v326, 0
    %v366 = vsel %vm84, %v327, 0
    %v369 = vsel %vm84, %v328, 0
    %v372 = vsel %vm84, %v329, 0
    %v375 = vsel %vm84, %v330, 0
    %v378 = vsel %vm84, %v331, 0
    %v381 = vsel %vm79, %v43, 0
    %383 = vmatpush.msra.mxu0 0.0
    %384 = vmatpush.msra.mxu0 0.0
    %385 = vmatpush.msra.mxu0 0.0
    %386 = vmatpush.msra.mxu0 0.0
    %387 = vmatpush.msra.mxu0 0.0
    %388 = vmatpush.msra.mxu0 0.0
    %389 = vmatpush.msra.mxu0 0.0
    %390 = vmatpush.msra.mxu0 0.0
    %391 = vmatpush.msra.mxu0 0.0
    %392 = vmatpush.msra.mxu0 0.0
    %393 = vmatpush.msra.mxu0 0.0
    %394 = vmatpush.msra.mxu0 0.0
    %395 = vmatpush.msra.mxu0 0.0
    %396 = vmatpush.msra.mxu0 0.0
    %397 = vmatpush.msra.mxu0 %v381
    %398 = vmatpush.msra.mxu0 %v42
    %399 = vmatmul.f32.gmra.mxu0 %v333
    %v400 = vpop.f32.mrf.mxu0
    %v401 = vadd.f32 0.0, %v400
    %402 = vmatmul.f32.gmra.mxu0 %v336
    %v403 = vpop.f32.mrf.mxu0
    %v404 = vadd.f32 0.0, %v403
    %405 = vmatmul.f32.gmra.mxu0 %v339
    %v406 = vpop.f32.mrf.mxu0
    %v407 = vadd.f32 0.0, %v406
    %408 = vmatmul.f32.gmra.mxu0 %v342
    %v409 = vpop.f32.mrf.mxu0
    %v410 = vadd.f32 0.0, %v409
    %411 = vmatmul.f32.gmra.mxu0 %v345
    %v412 = vpop.f32.mrf.mxu0
    %v413 = vadd.f32 0.0, %v412
    %414 = vmatmul.f32.gmra.mxu0 %v348
    %v415 = vpop.f32.mrf.mxu0
    %v416 = vadd.f32 0.0, %v415
    %417 = vmatmul.f32.gmra.mxu0 %v351
    %v418 = vpop.f32.mrf.mxu0
    %v419 = vadd.f32 0.0, %v418
    %420 = vmatmul.f32.gmra.mxu0 %v354
    %v421 = vpop.f32.mrf.mxu0
    %v422 = vadd.f32 0.0, %v421
    %423 = vmatmul.f32.gmra.mxu0 %v357
    %v424 = vpop.f32.mrf.mxu0
    %v425 = vadd.f32 0.0, %v424
    %426 = vmatmul.f32.gmra.mxu0 %v360
    %v427 = vpop.f32.mrf.mxu0
    %v428 = vadd.f32 0.0, %v427
    %429 = vmatmul.f32.gmra.mxu0 %v363
    %v430 = vpop.f32.mrf.mxu0
    %v431 = vadd.f32 0.0, %v430
    %432 = vmatmul.f32.gmra.mxu0 %v366
    %v433 = vpop.f32.mrf.mxu0
    %v434 = vadd.f32 0.0, %v433
    %435 = vmatmul.f32.gmra.mxu0 %v369
    %v436 = vpop.f32.mrf.mxu0
    %v437 = vadd.f32 0.0, %v436
    %438 = vmatmul.f32.gmra.mxu0 %v372
    %v439 = vpop.f32.mrf.mxu0
    %v440 = vadd.f32 0.0, %v439
    %441 = vmatmul.f32.gmra.mxu0 %v375
    %v442 = vpop.f32.mrf.mxu0
    %v443 = vadd.f32 0.0, %v442
    %444 = vmatmul.f32.gmra.mxu0 %v378
    %v445 = vpop.f32.mrf.mxu0
    %v446 = vadd.f32 0.0, %v445
    %447 = vdwg.mxu0
    %v448 = vadd.f32 %v268, %v401
    %v449 = vadd.f32 %v271, %v404
    %v450 = vadd.f32 %v274, %v407
    %v451 = vadd.f32 %v277, %v410
    %v452 = vadd.f32 %v280, %v413
    %v453 = vadd.f32 %v283, %v416
    %v454 = vadd.f32 %v286, %v419
    %v455 = vadd.f32 %v289, %v422
    %v456 = vadd.f32 %v292, %v425
    %v457 = vadd.f32 %v295, %v428
    %v458 = vadd.f32 %v298, %v431
    %v459 = vadd.f32 %v301, %v434
    %v460 = vadd.f32 %v304, %v437
    %v461 = vadd.f32 %v307, %v440
    %v462 = vadd.f32 %v310, %v443
    %v463 = vadd.f32 %v313, %v446
    %v464 = vld [vmem:[%s315 + $0x1] sm:$0xff]
    %v465 = vld [vmem:[%s315 + $0x11] sm:$0xff]
    %v466 = vld [vmem:[%s315 + $0x21] sm:$0xff]
    %v467 = vld [vmem:[%s315 + $0x31] sm:$0xff]
    %v468 = vld [vmem:[%s315 + $0x41] sm:$0xff]
    %v469 = vld [vmem:[%s315 + $0x51] sm:$0xff]
    %v470 = vld [vmem:[%s315 + $0x61] sm:$0xff]
    %v471 = vld [vmem:[%s315 + $0x71] sm:$0xff]
    %v472 = vld [vmem:[%s315 + $0x91] sm:$0xff]
    %v473 = vld [vmem:[%s315 + $0xa1] sm:$0xff]
    %v474 = vld [vmem:[%s315 + $0xb1] sm:$0xff]
    %v475 = vld [vmem:[%s315 + $0xc1] sm:$0xff]
    %v476 = vld [vmem:[%s315 + $0xd1] sm:$0xff]
    %v477 = vld [vmem:[%s315 + $0xe1] sm:$0xff]
    %v478 = vld [vmem:[%s315 + $0xf1] sm:$0xff]
    %v479 = vld [vmem:[%s315 + $0x101] sm:$0xff]
    %v481 = vrot.slane %v43, 4
    %v482 = vrot.slane %v44, 4
    %v483 = vsel %vm79, %v481, %v482
    %v486 = vsel %vm84, %v464, 0
    %v489 = vsel %vm84, %v465, 0
    %v492 = vsel %vm84, %v466, 0
    %v495 = vsel %vm84, %v467, 0
    %v498 = vsel %vm84, %v468, 0
    %v501 = vsel %vm84, %v469, 0
    %v504 = vsel %vm84, %v470, 0
    %v507 = vsel %vm84, %v471, 0
    %v510 = vsel %vm84, %v472, 0
    %v513 = vsel %vm84, %v473, 0
    %v516 = vsel %vm84, %v474, 0
    %v519 = vsel %vm84, %v475, 0
    %v522 = vsel %vm84, %v476, 0
    %v525 = vsel %vm84, %v477, 0
    %v528 = vsel %vm84, %v478, 0
    %v531 = vsel %vm84, %v479, 0
    %v533 = vsel %vm79, %v482, 0
    %535 = vmatpush.msra.mxu0 0.0
    %536 = vmatpush.msra.mxu0 0.0
    %537 = vmatpush.msra.mxu0 0.0
    %538 = vmatpush.msra.mxu0 0.0
    %539 = vmatpush.msra.mxu0 0.0
    %540 = vmatpush.msra.mxu0 0.0
    %541 = vmatpush.msra.mxu0 0.0
    %542 = vmatpush.msra.mxu0 0.0
    %543 = vmatpush.msra.mxu0 0.0
    %544 = vmatpush.msra.mxu0 0.0
    %545 = vmatpush.msra.mxu0 0.0
    %546 = vmatpush.msra.mxu0 0.0
    %547 = vmatpush.msra.mxu0 0.0
    %548 = vmatpush.msra.mxu0 0.0
    %549 = vmatpush.msra.mxu0 %v533
    %550 = vmatpush.msra.mxu0 %v483
    %551 = vmatmul.f32.gmra.mxu0 %v486
    %v552 = vpop.f32.mrf.mxu0
    %v553 = vadd.f32 0.0, %v552
    %554 = vmatmul.f32.gmra.mxu0 %v489
    %v555 = vpop.f32.mrf.mxu0
    %v556 = vadd.f32 0.0, %v555
    %557 = vmatmul.f32.gmra.mxu0 %v492
    %v558 = vpop.f32.mrf.mxu0
    %v559 = vadd.f32 0.0, %v558
    %560 = vmatmul.f32.gmra.mxu0 %v495
    %v561 = vpop.f32.mrf.mxu0
    %v562 = vadd.f32 0.0, %v561
    %563 = vmatmul.f32.gmra.mxu0 %v498
    %v564 = vpop.f32.mrf.mxu0
    %v565 = vadd.f32 0.0, %v564
    %566 = vmatmul.f32.gmra.mxu0 %v501
    %v567 = vpop.f32.mrf.mxu0
    %v568 = vadd.f32 0.0, %v567
    %569 = vmatmul.f32.gmra.mxu0 %v504
    %v570 = vpop.f32.mrf.mxu0
    %v571 = vadd.f32 0.0, %v570
    %572 = vmatmul.f32.gmra.mxu0 %v507
    %v573 = vpop.f32.mrf.mxu0
    %v574 = vadd.f32 0.0, %v573
    %575 = vmatmul.f32.gmra.mxu0 %v510
    %v576 = vpop.f32.mrf.mxu0
    %v577 = vadd.f32 0.0, %v576
    %578 = vmatmul.f32.gmra.mxu0 %v513
    %v579 = vpop.f32.mrf.mxu0
    %v580 = vadd.f32 0.0, %v579
    %581 = vmatmul.f32.gmra.mxu0 %v516
    %v582 = vpop.f32.mrf.mxu0
    %v583 = vadd.f32 0.0, %v582
    %584 = vmatmul.f32.gmra.mxu0 %v519
    %v585 = vpop.f32.mrf.mxu0
    %v586 = vadd.f32 0.0, %v585
    %587 = vmatmul.f32.gmra.mxu0 %v522
    %v588 = vpop.f32.mrf.mxu0
    %v589 = vadd.f32 0.0, %v588
    %590 = vmatmul.f32.gmra.mxu0 %v525
    %v591 = vpop.f32.mrf.mxu0
    %v592 = vadd.f32 0.0, %v591
    %593 = vmatmul.f32.gmra.mxu0 %v528
    %v594 = vpop.f32.mrf.mxu0
    %v595 = vadd.f32 0.0, %v594
    %596 = vmatmul.f32.gmra.mxu0 %v531
    %v597 = vpop.f32.mrf.mxu0
    %v598 = vadd.f32 0.0, %v597
    %599 = vdwg.mxu0
    %v600 = vadd.f32 %v448, %v553
    %v601 = vadd.f32 %v449, %v556
    %v602 = vadd.f32 %v450, %v559
    %v603 = vadd.f32 %v451, %v562
    %v604 = vadd.f32 %v452, %v565
    %v605 = vadd.f32 %v453, %v568
    %v606 = vadd.f32 %v454, %v571
    %v607 = vadd.f32 %v455, %v574
    %v608 = vadd.f32 %v456, %v577
    %v609 = vadd.f32 %v457, %v580
    %v610 = vadd.f32 %v458, %v583
    %v611 = vadd.f32 %v459, %v586
    %v612 = vadd.f32 %v460, %v589
    %v613 = vadd.f32 %v461, %v592
    %v614 = vadd.f32 %v462, %v595
    %v615 = vadd.f32 %v463, %v598
    %v616 = vld [vmem:[%s2] sm:$0x1]
    %v618 = vperm.slane %v616, 0
    %v620 = vadd.f32 %v600, %v618
    %v621 = vadd.f32 %v601, %v618
    %v622 = vadd.f32 %v602, %v618
    %v623 = vadd.f32 %v603, %v618
    %v624 = vadd.f32 %v604, %v618
    %v625 = vadd.f32 %v605, %v618
    %v626 = vadd.f32 %v606, %v618
    %v627 = vadd.f32 %v607, %v618
    %v628 = vadd.f32 %v608, %v618
    %v629 = vadd.f32 %v609, %v618
    %v630 = vadd.f32 %v610, %v618
    %v631 = vadd.f32 %v611, %v618
    %v632 = vadd.f32 %v612, %v618
    %v633 = vadd.f32 %v613, %v618
    %v634 = vadd.f32 %v614, %v618
    %v635 = vadd.f32 %v615, %v618
    %v636 = vxor.u32 %v620, 2147483648
    %v637 = vxor.u32 %v621, 2147483648
    %v638 = vxor.u32 %v622, 2147483648
    %v639 = vxor.u32 %v623, 2147483648
    %v640 = vxor.u32 %v624, 2147483648
    %v641 = vxor.u32 %v625, 2147483648
    %v642 = vxor.u32 %v626, 2147483648
    %v643 = vxor.u32 %v627, 2147483648
    %v644 = vxor.u32 %v628, 2147483648
    %v645 = vxor.u32 %v629, 2147483648
    %v646 = vxor.u32 %v630, 2147483648
    %v647 = vxor.u32 %v631, 2147483648
    %v648 = vxor.u32 %v632, 2147483648
    %v649 = vxor.u32 %v633, 2147483648
    %v650 = vxor.u32 %v634, 2147483648
    %v651 = vxor.u32 %v635, 2147483648
    %v652 = vmul.f32 %v636, 1.442695
    %v653 = vpow.pop %v652
    %v654 = vmul.f32 %v637, 1.442695
    %v655 = vpow.pop %v654
    %v656 = vmul.f32 %v638, 1.442695
    %v657 = vpow.pop %v656
    %v658 = vmul.f32 %v639, 1.442695
    %v659 = vpow.pop %v658
    %v660 = vmul.f32 %v640, 1.442695
    %v661 = vpow.pop %v660
    %v662 = vmul.f32 %v641, 1.442695
    %v663 = vpow.pop %v662
    %v664 = vmul.f32 %v642, 1.442695
    %v665 = vpow.pop %v664
    %v666 = vmul.f32 %v643, 1.442695
    %v667 = vpow.pop %v666
    %v668 = vmul.f32 %v644, 1.442695
    %v669 = vpow.pop %v668
    %v670 = vmul.f32 %v645, 1.442695
    %v671 = vpow.pop %v670
    %v672 = vmul.f32 %v646, 1.442695
    %v673 = vpow.pop %v672
    %v674 = vmul.f32 %v647, 1.442695
    %v675 = vpow.pop %v674
    %v676 = vmul.f32 %v648, 1.442695
    %v677 = vpow.pop %v676
    %v678 = vmul.f32 %v649, 1.442695
    %v679 = vpow.pop %v678
    %v680 = vmul.f32 %v650, 1.442695
    %v681 = vpow.pop %v680
    %v682 = vmul.f32 %v651, 1.442695
    %v683 = vpow.pop %v682
    %v684 = vadd.f32 %v653, 1.0
    %v685 = vadd.f32 %v655, 1.0
    %v686 = vadd.f32 %v657, 1.0
    %v687 = vadd.f32 %v659, 1.0
    %v688 = vadd.f32 %v661, 1.0
    %v689 = vadd.f32 %v663, 1.0
    %v690 = vadd.f32 %v665, 1.0
    %v691 = vadd.f32 %v667, 1.0
    %v692 = vadd.f32 %v669, 1.0
    %v693 = vadd.f32 %v671, 1.0
    %v694 = vadd.f32 %v673, 1.0
    %v695 = vadd.f32 %v675, 1.0
    %v696 = vadd.f32 %v677, 1.0
    %v697 = vadd.f32 %v679, 1.0
    %v698 = vadd.f32 %v681, 1.0
    %v699 = vadd.f32 %v683, 1.0
    %v700 = vrcp.pop %v684
    %v701 = vmul.f32 %v684, %v700
    %v702 = vsub.f32 1.0, %v701
    %v703 = vmul.f32 %v700, %v702
    %v704 = vadd.f32 %v700, %v703
    %vm705 = vweird.f32 %v684
    %vm706 = vweird.f32 %v700
    %vm707 = vmor %vm705, %vm706
    %v708 = vsel %vm707, %v700, %v704
    %v709 = vand.u32 2147483647, %v684
    %vm710 = vcmp.eq.f32.partialorder %v709, 8.507059e+37
    %v711 = vand.u32 %v684, 2147483648
    %v712 = vor.u32 1.1754944e-38, %v711
    %v713 = vsel %vm710, %v712, %v708
    %v714 = vmul.f32 1.0, %v713
    %v715 = vrcp.pop %v685
    %v716 = vmul.f32 %v685, %v715
    %v717 = vsub.f32 1.0, %v716
    %v718 = vmul.f32 %v715, %v717
    %v719 = vadd.f32 %v715, %v718
    %vm720 = vweird.f32 %v685
    %vm721 = vweird.f32 %v715
    %vm722 = vmor %vm720, %vm721
    %v723 = vsel %vm722, %v715, %v719
    %v724 = vand.u32 2147483647, %v685
    %vm725 = vcmp.eq.f32.partialorder %v724, 8.507059e+37
    %v726 = vand.u32 %v685, 2147483648
    %v727 = vor.u32 1.1754944e-38, %v726
    %v728 = vsel %vm725, %v727, %v723
    %v729 = vmul.f32 1.0, %v728
    %v730 = vrcp.pop %v686
    %v731 = vmul.f32 %v686, %v730
    %v732 = vsub.f32 1.0, %v731
    %v733 = vmul.f32 %v730, %v732
    %v734 = vadd.f32 %v730, %v733
    %vm735 = vweird.f32 %v686
    %vm736 = vweird.f32 %v730
    %vm737 = vmor %vm735, %vm736
    %v738 = vsel %vm737, %v730, %v734
    %v739 = vand.u32 2147483647, %v686
    %vm740 = vcmp.eq.f32.partialorder %v739, 8.507059e+37
    %v741 = vand.u32 %v686, 2147483648
    %v742 = vor.u32 1.1754944e-38, %v741
    %v743 = vsel %vm740, %v742, %v738
    %v744 = vmul.f32 1.0, %v743
    %v745 = vrcp.pop %v687
    %v746 = vmul.f32 %v687, %v745
    %v747 = vsub.f32 1.0, %v746
    %v748 = vmul.f32 %v745, %v747
    %v749 = vadd.f32 %v745, %v748
    %vm750 = vweird.f32 %v687
    %vm751 = vweird.f32 %v745
    %vm752 = vmor %vm750, %vm751
    %v753 = vsel %vm752, %v745, %v749
    %v754 = vand.u32 2147483647, %v687
    %vm755 = vcmp.eq.f32.partialorder %v754, 8.507059e+37
    %v756 = vand.u32 %v687, 2147483648
    %v757 = vor.u32 1.1754944e-38, %v756
    %v758 = vsel %vm755, %v757, %v753
    %v759 = vmul.f32 1.0, %v758
    %v760 = vrcp.pop %v688
    %v761 = vmul.f32 %v688, %v760
    %v762 = vsub.f32 1.0, %v761
    %v763 = vmul.f32 %v760, %v762
    %v764 = vadd.f32 %v760, %v763
    %vm765 = vweird.f32 %v688
    %vm766 = vweird.f32 %v760
    %vm767 = vmor %vm765, %vm766
    %v768 = vsel %vm767, %v760, %v764
    %v769 = vand.u32 2147483647, %v688
    %vm770 = vcmp.eq.f32.partialorder %v769, 8.507059e+37
    %v771 = vand.u32 %v688, 2147483648
    %v772 = vor.u32 1.1754944e-38, %v771
    %v773 = vsel %vm770, %v772, %v768
    %v774 = vmul.f32 1.0, %v773
    %v775 = vrcp.pop %v689
    %v776 = vmul.f32 %v689, %v775
    %v777 = vsub.f32 1.0, %v776
    %v778 = vmul.f32 %v775, %v777
    %v779 = vadd.f32 %v775, %v778
    %vm780 = vweird.f32 %v689
    %vm781 = vweird.f32 %v775
    %vm782 = vmor %vm780, %vm781
    %v783 = vsel %vm782, %v775, %v779
    %v784 = vand.u32 2147483647, %v689
    %vm785 = vcmp.eq.f32.partialorder %v784, 8.507059e+37
    %v786 = vand.u32 %v689, 2147483648
    %v787 = vor.u32 1.1754944e-38, %v786
    %v788 = vsel %vm785, %v787, %v783
    %v789 = vmul.f32 1.0, %v788
    %v790 = vrcp.pop %v690
    %v791 = vmul.f32 %v690, %v790
    %v792 = vsub.f32 1.0, %v791
    %v793 = vmul.f32 %v790, %v792
    %v794 = vadd.f32 %v790, %v793
    %vm795 = vweird.f32 %v690
    %vm796 = vweird.f32 %v790
    %vm797 = vmor %vm795, %vm796
    %v798 = vsel %vm797, %v790, %v794
    %v799 = vand.u32 2147483647, %v690
    %vm800 = vcmp.eq.f32.partialorder %v799, 8.507059e+37
    %v801 = vand.u32 %v690, 2147483648
    %v802 = vor.u32 1.1754944e-38, %v801
    %v803 = vsel %vm800, %v802, %v798
    %v804 = vmul.f32 1.0, %v803
    %v805 = vrcp.pop %v691
    %v806 = vmul.f32 %v691, %v805
    %v807 = vsub.f32 1.0, %v806
    %v808 = vmul.f32 %v805, %v807
    %v809 = vadd.f32 %v805, %v808
    %vm810 = vweird.f32 %v691
    %vm811 = vweird.f32 %v805
    %vm812 = vmor %vm810, %vm811
    %v813 = vsel %vm812, %v805, %v809
    %v814 = vand.u32 2147483647, %v691
    %vm815 = vcmp.eq.f32.partialorder %v814, 8.507059e+37
    %v816 = vand.u32 %v691, 2147483648
    %v817 = vor.u32 1.1754944e-38, %v816
    %v818 = vsel %vm815, %v817, %v813
    %v819 = vmul.f32 1.0, %v818
    %v820 = vrcp.pop %v692
    %v821 = vmul.f32 %v692, %v820
    %v822 = vsub.f32 1.0, %v821
    %v823 = vmul.f32 %v820, %v822
    %v824 = vadd.f32 %v820, %v823
    %vm825 = vweird.f32 %v692
    %vm826 = vweird.f32 %v820
    %vm827 = vmor %vm825, %vm826
    %v828 = vsel %vm827, %v820, %v824
    %v829 = vand.u32 2147483647, %v692
    %vm830 = vcmp.eq.f32.partialorder %v829, 8.507059e+37
    %v831 = vand.u32 %v692, 2147483648
    %v832 = vor.u32 1.1754944e-38, %v831
    %v833 = vsel %vm830, %v832, %v828
    %v834 = vmul.f32 1.0, %v833
    %v835 = vrcp.pop %v693
    %v836 = vmul.f32 %v693, %v835
    %v837 = vsub.f32 1.0, %v836
    %v838 = vmul.f32 %v835, %v837
    %v839 = vadd.f32 %v835, %v838
    %vm840 = vweird.f32 %v693
    %vm841 = vweird.f32 %v835
    %vm842 = vmor %vm840, %vm841
    %v843 = vsel %vm842, %v835, %v839
    %v844 = vand.u32 2147483647, %v693
    %vm845 = vcmp.eq.f32.partialorder %v844, 8.507059e+37
    %v846 = vand.u32 %v693, 2147483648
    %v847 = vor.u32 1.1754944e-38, %v846
    %v848 = vsel %vm845, %v847, %v843
    %v849 = vmul.f32 1.0, %v848
    %v850 = vrcp.pop %v694
    %v851 = vmul.f32 %v694, %v850
    %v852 = vsub.f32 1.0, %v851
    %v853 = vmul.f32 %v850, %v852
    %v854 = vadd.f32 %v850, %v853
    %vm855 = vweird.f32 %v694
    %vm856 = vweird.f32 %v850
    %vm857 = vmor %vm855, %vm856
    %v858 = vsel %vm857, %v850, %v854
    %v859 = vand.u32 2147483647, %v694
    %vm860 = vcmp.eq.f32.partialorder %v859, 8.507059e+37
    %v861 = vand.u32 %v694, 2147483648
    %v862 = vor.u32 1.1754944e-38, %v861
    %v863 = vsel %vm860, %v862, %v858
    %v864 = vmul.f32 1.0, %v863
    %v865 = vrcp.pop %v695
    %v866 = vmul.f32 %v695, %v865
    %v867 = vsub.f32 1.0, %v866
    %v868 = vmul.f32 %v865, %v867
    %v869 = vadd.f32 %v865, %v868
    %vm870 = vweird.f32 %v695
    %vm871 = vweird.f32 %v865
    %vm872 = vmor %vm870, %vm871
    %v873 = vsel %vm872, %v865, %v869
    %v874 = vand.u32 2147483647, %v695
    %vm875 = vcmp.eq.f32.partialorder %v874, 8.507059e+37
    %v876 = vand.u32 %v695, 2147483648
    %v877 = vor.u32 1.1754944e-38, %v876
    %v878 = vsel %vm875, %v877, %v873
    %v879 = vmul.f32 1.0, %v878
    %v880 = vrcp.pop %v696
    %v881 = vmul.f32 %v696, %v880
    %v882 = vsub.f32 1.0, %v881
    %v883 = vmul.f32 %v880, %v882
    %v884 = vadd.f32 %v880, %v883
    %vm885 = vweird.f32 %v696
    %vm886 = vweird.f32 %v880
    %vm887 = vmor %vm885, %vm886
    %v888 = vsel %vm887, %v880, %v884
    %v889 = vand.u32 2147483647, %v696
    %vm890 = vcmp.eq.f32.partialorder %v889, 8.507059e+37
    %v891 = vand.u32 %v696, 2147483648
    %v892 = vor.u32 1.1754944e-38, %v891
    %v893 = vsel %vm890, %v892, %v888
    %v894 = vmul.f32 1.0, %v893
    %v895 = vrcp.pop %v697
    %v896 = vmul.f32 %v697, %v895
    %v897 = vsub.f32 1.0, %v896
    %v898 = vmul.f32 %v895, %v897
    %v899 = vadd.f32 %v895, %v898
    %vm900 = vweird.f32 %v697
    %vm901 = vweird.f32 %v895
    %vm902 = vmor %vm900, %vm901
    %v903 = vsel %vm902, %v895, %v899
    %v904 = vand.u32 2147483647, %v697
    %vm905 = vcmp.eq.f32.partialorder %v904, 8.507059e+37
    %v906 = vand.u32 %v697, 2147483648
    %v907 = vor.u32 1.1754944e-38, %v906
    %v908 = vsel %vm905, %v907, %v903
    %v909 = vmul.f32 1.0, %v908
    %v910 = vrcp.pop %v698
    %v911 = vmul.f32 %v698, %v910
    %v912 = vsub.f32 1.0, %v911
    %v913 = vmul.f32 %v910, %v912
    %v914 = vadd.f32 %v910, %v913
    %vm915 = vweird.f32 %v698
    %vm916 = vweird.f32 %v910
    %vm917 = vmor %vm915, %vm916
    %v918 = vsel %vm917, %v910, %v914
    %v919 = vand.u32 2147483647, %v698
    %vm920 = vcmp.eq.f32.partialorder %v919, 8.507059e+37
    %v921 = vand.u32 %v698, 2147483648
    %v922 = vor.u32 1.1754944e-38, %v921
    %v923 = vsel %vm920, %v922, %v918
    %v924 = vmul.f32 1.0, %v923
    %v925 = vrcp.pop %v699
    %v926 = vmul.f32 %v699, %v925
    %v927 = vsub.f32 1.0, %v926
    %v928 = vmul.f32 %v925, %v927
    %v929 = vadd.f32 %v925, %v928
    %vm930 = vweird.f32 %v699
    %vm931 = vweird.f32 %v925
    %vm932 = vmor %vm930, %vm931
    %v933 = vsel %vm932, %v925, %v929
    %v934 = vand.u32 2147483647, %v699
    %vm935 = vcmp.eq.f32.partialorder %v934, 8.507059e+37
    %v936 = vand.u32 %v699, 2147483648
    %v937 = vor.u32 1.1754944e-38, %v936
    %v938 = vsel %vm935, %v937, %v933
    %v939 = vmul.f32 1.0, %v938
    %v940 = vmul.f32 %v620, %v714
    %v941 = vmul.f32 %v621, %v729
    %v942 = vmul.f32 %v622, %v744
    %v943 = vmul.f32 %v623, %v759
    %v944 = vmul.f32 %v624, %v774
    %v945 = vmul.f32 %v625, %v789
    %v946 = vmul.f32 %v626, %v804
    %v947 = vmul.f32 %v627, %v819
    %v948 = vmul.f32 %v628, %v834
    %v949 = vmul.f32 %v629, %v849
    %v950 = vmul.f32 %v630, %v864
    %v951 = vmul.f32 %v631, %v879
    %v952 = vmul.f32 %v632, %v894
    %v953 = vmul.f32 %v633, %v909
    %v954 = vmul.f32 %v634, %v924
    %v955 = vmul.f32 %v635, %v939
    %vm956 = vcmask 261120
    %957 = vst.msk [vmem:[#allocation2] sm:$0xff] %vm956, 0.0
    %vm958 = vcmask 254976
    %959 = vst.msk [vmem:[#allocation2 + $0x8] sm:$0x3] %vm958, 0.0
    %960 = vst.msk [vmem:[#allocation2 + $0xa0] sm:$0xff] %vm956, 0.0
    %961 = vst.msk [vmem:[#allocation2 + $0xa8] sm:$0x3] %vm958, 0.0
    %s962 = scalar_lea.vmem [#allocation2], 144
    %963 = vst.msk [vmem:[%s962] sm:$0xff] %vm956, 0.0
    %964 = vst.msk [vmem:[%s962 + $0x8] sm:$0x3] %vm958, 0.0
    %965 = vst.msk [vmem:[%s962 + $0xa0] sm:$0xff] %vm956, 0.0
    %966 = vst.msk [vmem:[%s962 + $0xa8] sm:$0x3] %vm958, 0.0
    %vm967 = vcmask 253952
    %968 = vst.msk [vmem:[#allocation2] sm:$0x1] %vm967, 0.0
    %969 = vst.msk [vmem:[#allocation2 + $0x10] sm:$0x1] %vm967, 0.0
    %970 = vst.msk [vmem:[#allocation2 + $0x20] sm:$0x1] %vm967, 0.0
    %971 = vst.msk [vmem:[#allocation2 + $0x30] sm:$0x1] %vm967, 0.0
    %972 = vst.msk [vmem:[#allocation2 + $0x40] sm:$0x1] %vm967, 0.0
    %973 = vst.msk [vmem:[#allocation2 + $0x50] sm:$0x1] %vm967, 0.0
    %974 = vst.msk [vmem:[#allocation2 + $0x60] sm:$0x1] %vm967, 0.0
    %975 = vst.msk [vmem:[#allocation2 + $0x70] sm:$0x1] %vm967, 0.0
    %976 = vst.msk [vmem:[#allocation2 + $0x80] sm:$0x1] %vm967, 0.0
    %977 = vst.msk [vmem:[#allocation2 + $0x90] sm:$0x1] %vm967, 0.0
    %978 = vst.msk [vmem:[#allocation2 + $0xa0] sm:$0x1] %vm967, 0.0
    %979 = vst.msk [vmem:[#allocation2 + $0xb0] sm:$0x1] %vm967, 0.0
    %980 = vst.msk [vmem:[#allocation2 + $0xc0] sm:$0x1] %vm967, 0.0
    %981 = vst.msk [vmem:[#allocation2 + $0xd0] sm:$0x1] %vm967, 0.0
    %982 = vst.msk [vmem:[#allocation2 + $0xe0] sm:$0x1] %vm967, 0.0
    %983 = vst.msk [vmem:[#allocation2 + $0xf0] sm:$0x1] %vm967, 0.0
    %984 = vst.msk [vmem:[#allocation2 + $0x100] sm:$0x1] %vm967, 0.0
    %985 = vst.msk [vmem:[#allocation2 + $0x110] sm:$0x1] %vm967, 0.0
    %986 = vst.msk [vmem:[#allocation2 + $0x120] sm:$0x1] %vm967, 0.0
    %987 = vst.msk [vmem:[#allocation2 + $0x130] sm:$0x1] %vm967, 0.0
    %988 = vst.msk [vmem:[#allocation2 + $0x9] sm:$0x1] %vm967, 0.0
    %989 = vst.msk [vmem:[#allocation2 + $0x19] sm:$0x1] %vm967, 0.0
    %990 = vst.msk [vmem:[#allocation2 + $0x29] sm:$0x1] %vm967, 0.0
    %991 = vst.msk [vmem:[#allocation2 + $0x39] sm:$0x1] %vm967, 0.0
    %992 = vst.msk [vmem:[#allocation2 + $0x49] sm:$0x1] %vm967, 0.0
    %993 = vst.msk [vmem:[#allocation2 + $0x59] sm:$0x1] %vm967, 0.0
    %994 = vst.msk [vmem:[#allocation2 + $0x69] sm:$0x1] %vm967, 0.0
    %995 = vst.msk [vmem:[#allocation2 + $0x79] sm:$0x1] %vm967, 0.0
    %996 = vst.msk [vmem:[#allocation2 + $0x89] sm:$0x1] %vm967, 0.0
    %997 = vst.msk [vmem:[#allocation2 + $0x99] sm:$0x1] %vm967, 0.0
    %998 = vst.msk [vmem:[#allocation2 + $0xa9] sm:$0x1] %vm967, 0.0
    %999 = vst.msk [vmem:[#allocation2 + $0xb9] sm:$0x1] %vm967, 0.0
    %1000 = vst.msk [vmem:[#allocation2 + $0xc9] sm:$0x1] %vm967, 0.0
    %1001 = vst.msk [vmem:[#allocation2 + $0xd9] sm:$0x1] %vm967, 0.0
    %1002 = vst.msk [vmem:[#allocation2 + $0xe9] sm:$0x1] %vm967, 0.0
    %1003 = vst.msk [vmem:[#allocation2 + $0xf9] sm:$0x1] %vm967, 0.0
    %1004 = vst.msk [vmem:[#allocation2 + $0x109] sm:$0x1] %vm967, 0.0
    %1005 = vst.msk [vmem:[#allocation2 + $0x119] sm:$0x1] %vm967, 0.0
    %1006 = vst.msk [vmem:[#allocation2 + $0x129] sm:$0x1] %vm967, 0.0
    %1007 = vst.msk [vmem:[#allocation2 + $0x139] sm:$0x1] %vm967, 0.0
    %s1008 = scalar_lea.vmem [#allocation2], 16
    %1009 = vst.msk [vmem:[%s1008 + $0x1] sm:$0xff] %vm956, %v940
    %1010 = vst.msk [vmem:[%s1008 + $0x11] sm:$0xff] %vm956, %v941
    %1011 = vst.msk [vmem:[%s1008 + $0x21] sm:$0xff] %vm956, %v942
    %1012 = vst.msk [vmem:[%s1008 + $0x31] sm:$0xff] %vm956, %v943
    %1013 = vst.msk [vmem:[%s1008 + $0x41] sm:$0xff] %vm956, %v944
    %1014 = vst.msk [vmem:[%s1008 + $0x51] sm:$0xff] %vm956, %v945
    %1015 = vst.msk [vmem:[%s1008 + $0x61] sm:$0xff] %vm956, %v946
    %1016 = vst.msk [vmem:[%s1008 + $0x71] sm:$0xff] %vm956, %v947
    %1017 = vst.msk [vmem:[%s1008 + $0xa1] sm:$0xff] %vm956, %v948
    %1018 = vst.msk [vmem:[%s1008 + $0xb1] sm:$0xff] %vm956, %v949
    %1019 = vst.msk [vmem:[%s1008 + $0xc1] sm:$0xff] %vm956, %v950
    %1020 = vst.msk [vmem:[%s1008 + $0xd1] sm:$0xff] %vm956, %v951
    %1021 = vst.msk [vmem:[%s1008 + $0xe1] sm:$0xff] %vm956, %v952
    %1022 = vst.msk [vmem:[%s1008 + $0xf1] sm:$0xff] %vm956, %v953
    %1023 = vst.msk [vmem:[%s1008 + $0x101] sm:$0xff] %vm956, %v954
    %1024 = vst.msk [vmem:[%s1008 + $0x111] sm:$0xff] %vm956, %v955
    %v1025 = vld [vmem:[%s3] sm:$0xff]
    %v1026 = vld [vmem:[%s3 + $0x8] sm:$0x1]
    %v1027 = vld [vmem:[#allocation2] sm:$0xff]
    %v1028 = vld [vmem:[#allocation2 + $0x10] sm:$0xff]
    %v1029 = vld [vmem:[#allocation2 + $0x20] sm:$0xff]
    %v1030 = vld [vmem:[#allocation2 + $0x30] sm:$0xff]
    %v1031 = vld [vmem:[#allocation2 + $0x40] sm:$0xff]
    %v1032 = vld [vmem:[#allocation2 + $0x50] sm:$0xff]
    %v1033 = vld [vmem:[#allocation2 + $0x60] sm:$0xff]
    %v1034 = vld [vmem:[#allocation2 + $0x70] sm:$0xff]
    %v1035 = vld [vmem:[#allocation2 + $0xa0] sm:$0xff]
    %v1036 = vld [vmem:[#allocation2 + $0xb0] sm:$0xff]
    %v1037 = vld [vmem:[#allocation2 + $0xc0] sm:$0xff]
    %v1038 = vld [vmem:[#allocation2 + $0xd0] sm:$0xff]
    %v1039 = vld [vmem:[#allocation2 + $0xe0] sm:$0xff]
    %v1040 = vld [vmem:[#allocation2 + $0xf0] sm:$0xff]
    %v1041 = vld [vmem:[#allocation2 + $0x100] sm:$0xff]
    %v1042 = vld [vmem:[#allocation2 + $0x110] sm:$0xff]
    %v1043 = vperm.slane %v1025, 0
    %v1044 = vmul.f32 %v1027, %v1043
    %v1045 = vmul.f32 %v1028, %v1043
    %v1046 = vmul.f32 %v1029, %v1043
    %v1047 = vmul.f32 %v1030, %v1043
    %v1048 = vmul.f32 %v1031, %v1043
    %v1049 = vmul.f32 %v1032, %v1043
    %v1050 = vmul.f32 %v1033, %v1043
    %v1051 = vmul.f32 %v1034, %v1043
    %v1052 = vmul.f32 %v1035, %v1043
    %v1053 = vmul.f32 %v1036, %v1043
    %v1054 = vmul.f32 %v1037, %v1043
    %v1055 = vmul.f32 %v1038, %v1043
    %v1056 = vmul.f32 %v1039, %v1043
    %v1057 = vmul.f32 %v1040, %v1043
    %v1058 = vmul.f32 %v1041, %v1043
    %v1059 = vmul.f32 %v1042, %v1043
    %v1060 = vadd.f32 %v1044, 0.0
    %v1061 = vadd.f32 %v1045, 0.0
    %v1062 = vadd.f32 %v1046, 0.0
    %v1063 = vadd.f32 %v1047, 0.0
    %v1064 = vadd.f32 %v1048, 0.0
    %v1065 = vadd.f32 %v1049, 0.0
    %v1066 = vadd.f32 %v1050, 0.0
    %v1067 = vadd.f32 %v1051, 0.0
    %v1068 = vadd.f32 %v1052, 0.0
    %v1069 = vadd.f32 %v1053, 0.0
    %v1070 = vadd.f32 %v1054, 0.0
    %v1071 = vadd.f32 %v1055, 0.0
    %v1072 = vadd.f32 %v1056, 0.0
    %v1073 = vadd.f32 %v1057, 0.0
    %v1074 = vadd.f32 %v1058, 0.0
    %v1075 = vadd.f32 %v1059, 0.0
    %v1076 = vld [vmem:[#allocation2 + $0x1] sm:$0xff]
    %v1077 = vld [vmem:[#allocation2 + $0x11] sm:$0xff]
    %v1078 = vld [vmem:[#allocation2 + $0x21] sm:$0xff]
    %v1079 = vld [vmem:[#allocation2 + $0x31] sm:$0xff]
    %v1080 = vld [vmem:[#allocation2 + $0x41] sm:$0xff]
    %v1081 = vld [vmem:[#allocation2 + $0x51] sm:$0xff]
    %v1082 = vld [vmem:[#allocation2 + $0x61] sm:$0xff]
    %v1083 = vld [vmem:[#allocation2 + $0x71] sm:$0xff]
    %v1084 = vld [vmem:[#allocation2 + $0xa1] sm:$0xff]
    %v1085 = vld [vmem:[#allocation2 + $0xb1] sm:$0xff]
    %v1086 = vld [vmem:[#allocation2 + $0xc1] sm:$0xff]
    %v1087 = vld [vmem:[#allocation2 + $0xd1] sm:$0xff]
    %v1088 = vld [vmem:[#allocation2 + $0xe1] sm:$0xff]
    %v1089 = vld [vmem:[#allocation2 + $0xf1] sm:$0xff]
    %v1090 = vld [vmem:[#allocation2 + $0x101] sm:$0xff]
    %v1091 = vld [vmem:[#allocation2 + $0x111] sm:$0xff]
    %v1092 = vperm.slane %v1025, 1
    %v1093 = vmul.f32 %v1076, %v1092
    %v1094 = vmul.f32 %v1077, %v1092
    %v1095 = vmul.f32 %v1078, %v1092
    %v1096 = vmul.f32 %v1079, %v1092
    %v1097 = vmul.f32 %v1080, %v1092
    %v1098 = vmul.f32 %v1081, %v1092
    %v1099 = vmul.f32 %v1082, %v1092
    %v1100 = vmul.f32 %v1083, %v1092
    %v1101 = vmul.f32 %v1084, %v1092
    %v1102 = vmul.f32 %v1085, %v1092
    %v1103 = vmul.f32 %v1086, %v1092
    %v1104 = vmul.f32 %v1087, %v1092
    %v1105 = vmul.f32 %v1088, %v1092
    %v1106 = vmul.f32 %v1089, %v1092
    %v1107 = vmul.f32 %v1090, %v1092
    %v1108 = vmul.f32 %v1091, %v1092
    %v1109 = vadd.f32 %v1060, %v1093
    %v1110 = vadd.f32 %v1061, %v1094
    %v1111 = vadd.f32 %v1062, %v1095
    %v1112 = vadd.f32 %v1063, %v1096
    %v1113 = vadd.f32 %v1064, %v1097
    %v1114 = vadd.f32 %v1065, %v1098
    %v1115 = vadd.f32 %v1066, %v1099
    %v1116 = vadd.f32 %v1067, %v1100
    %v1117 = vadd.f32 %v1068, %v1101
    %v1118 = vadd.f32 %v1069, %v1102
    %v1119 = vadd.f32 %v1070, %v1103
    %v1120 = vadd.f32 %v1071, %v1104
    %v1121 = vadd.f32 %v1072, %v1105
    %v1122 = vadd.f32 %v1073, %v1106
    %v1123 = vadd.f32 %v1074, %v1107
    %v1124 = vadd.f32 %v1075, %v1108
    %v1125 = vld [vmem:[#allocation2 + $0x2] sm:$0xff]
    %v1126 = vld [vmem:[#allocation2 + $0x12] sm:$0xff]
    %v1127 = vld [vmem:[#allocation2 + $0x22] sm:$0xff]
    %v1128 = vld [vmem:[#allocation2 + $0x32] sm:$0xff]
    %v1129 = vld [vmem:[#allocation2 + $0x42] sm:$0xff]
    %v1130 = vld [vmem:[#allocation2 + $0x52] sm:$0xff]
    %v1131 = vld [vmem:[#allocation2 + $0x62] sm:$0xff]
    %v1132 = vld [vmem:[#allocation2 + $0x72] sm:$0xff]
    %v1133 = vld [vmem:[#allocation2 + $0xa2] sm:$0xff]
    %v1134 = vld [vmem:[#allocation2 + $0xb2] sm:$0xff]
    %v1135 = vld [vmem:[#allocation2 + $0xc2] sm:$0xff]
    %v1136 = vld [vmem:[#allocation2 + $0xd2] sm:$0xff]
    %v1137 = vld [vmem:[#allocation2 + $0xe2] sm:$0xff]
    %v1138 = vld [vmem:[#allocation2 + $0xf2] sm:$0xff]
    %v1139 = vld [vmem:[#allocation2 + $0x102] sm:$0xff]
    %v1140 = vld [vmem:[#allocation2 + $0x112] sm:$0xff]
    %v1141 = vperm.slane %v1025, 2
    %v1142 = vmul.f32 %v1125, %v1141
    %v1143 = vmul.f32 %v1126, %v1141
    %v1144 = vmul.f32 %v1127, %v1141
    %v1145 = vmul.f32 %v1128, %v1141
    %v1146 = vmul.f32 %v1129, %v1141
    %v1147 = vmul.f32 %v1130, %v1141
    %v1148 = vmul.f32 %v1131, %v1141
    %v1149 = vmul.f32 %v1132, %v1141
    %v1150 = vmul.f32 %v1133, %v1141
    %v1151 = vmul.f32 %v1134, %v1141
    %v1152 = vmul.f32 %v1135, %v1141
    %v1153 = vmul.f32 %v1136, %v1141
    %v1154 = vmul.f32 %v1137, %v1141
    %v1155 = vmul.f32 %v1138, %v1141
    %v1156 = vmul.f32 %v1139, %v1141
    %v1157 = vmul.f32 %v1140, %v1141
    %v1158 = vadd.f32 %v1109, %v1142
    %v1159 = vadd.f32 %v1110, %v1143
    %v1160 = vadd.f32 %v1111, %v1144
    %v1161 = vadd.f32 %v1112, %v1145
    %v1162 = vadd.f32 %v1113, %v1146
    %v1163 = vadd.f32 %v1114, %v1147
    %v1164 = vadd.f32 %v1115, %v1148
    %v1165 = vadd.f32 %v1116, %v1149
    %v1166 = vadd.f32 %v1117, %v1150
    %v1167 = vadd.f32 %v1118, %v1151
    %v1168 = vadd.f32 %v1119, %v1152
    %v1169 = vadd.f32 %v1120, %v1153
    %v1170 = vadd.f32 %v1121, %v1154
    %v1171 = vadd.f32 %v1122, %v1155
    %v1172 = vadd.f32 %v1123, %v1156
    %v1173 = vadd.f32 %v1124, %v1157
    %v1174 = vld [vmem:[%s1008] sm:$0xff]
    %v1175 = vld [vmem:[%s1008 + $0x10] sm:$0xff]
    %v1176 = vld [vmem:[%s1008 + $0x20] sm:$0xff]
    %v1177 = vld [vmem:[%s1008 + $0x30] sm:$0xff]
    %v1178 = vld [vmem:[%s1008 + $0x40] sm:$0xff]
    %v1179 = vld [vmem:[%s1008 + $0x50] sm:$0xff]
    %v1180 = vld [vmem:[%s1008 + $0x60] sm:$0xff]
    %v1181 = vld [vmem:[%s1008 + $0x70] sm:$0xff]
    %v1182 = vld [vmem:[%s1008 + $0xa0] sm:$0xff]
    %v1183 = vld [vmem:[%s1008 + $0xb0] sm:$0xff]
    %v1184 = vld [vmem:[%s1008 + $0xc0] sm:$0xff]
    %v1185 = vld [vmem:[%s1008 + $0xd0] sm:$0xff]
    %v1186 = vld [vmem:[%s1008 + $0xe0] sm:$0xff]
    %v1187 = vld [vmem:[%s1008 + $0xf0] sm:$0xff]
    %v1188 = vld [vmem:[%s1008 + $0x100] sm:$0xff]
    %v1189 = vld [vmem:[%s1008 + $0x110] sm:$0xff]
    %v1190 = vperm.slane %v1025, 3
    %v1191 = vmul.f32 %v1174, %v1190
    %v1192 = vmul.f32 %v1175, %v1190
    %v1193 = vmul.f32 %v1176, %v1190
    %v1194 = vmul.f32 %v1177, %v1190
    %v1195 = vmul.f32 %v1178, %v1190
    %v1196 = vmul.f32 %v1179, %v1190
    %v1197 = vmul.f32 %v1180, %v1190
    %v1198 = vmul.f32 %v1181, %v1190
    %v1199 = vmul.f32 %v1182, %v1190
    %v1200 = vmul.f32 %v1183, %v1190
    %v1201 = vmul.f32 %v1184, %v1190
    %v1202 = vmul.f32 %v1185, %v1190
    %v1203 = vmul.f32 %v1186, %v1190
    %v1204 = vmul.f32 %v1187, %v1190
    %v1205 = vmul.f32 %v1188, %v1190
    %v1206 = vmul.f32 %v1189, %v1190
    %v1207 = vadd.f32 %v1158, %v1191
    %v1208 = vadd.f32 %v1159, %v1192
    %v1209 = vadd.f32 %v1160, %v1193
    %v1210 = vadd.f32 %v1161, %v1194
    %v1211 = vadd.f32 %v1162, %v1195
    %v1212 = vadd.f32 %v1163, %v1196
    %v1213 = vadd.f32 %v1164, %v1197
    %v1214 = vadd.f32 %v1165, %v1198
    %v1215 = vadd.f32 %v1166, %v1199
    %v1216 = vadd.f32 %v1167, %v1200
    %v1217 = vadd.f32 %v1168, %v1201
    %v1218 = vadd.f32 %v1169, %v1202
    %v1219 = vadd.f32 %v1170, %v1203
    %v1220 = vadd.f32 %v1171, %v1204
    %v1221 = vadd.f32 %v1172, %v1205
    %v1222 = vadd.f32 %v1173, %v1206
    %v1223 = vld [vmem:[%s1008 + $0x1] sm:$0xff]
    %v1224 = vld [vmem:[%s1008 + $0x11] sm:$0xff]
    %v1225 = vld [vmem:[%s1008 + $0x21] sm:$0xff]
    %v1226 = vld [vmem:[%s1008 + $0x31] sm:$0xff]
    %v1227 = vld [vmem:[%s1008 + $0x41] sm:$0xff]
    %v1228 = vld [vmem:[%s1008 + $0x51] sm:$0xff]
    %v1229 = vld [vmem:[%s1008 + $0x61] sm:$0xff]
    %v1230 = vld [vmem:[%s1008 + $0x71] sm:$0xff]
    %v1231 = vld [vmem:[%s1008 + $0xa1] sm:$0xff]
    %v1232 = vld [vmem:[%s1008 + $0xb1] sm:$0xff]
    %v1233 = vld [vmem:[%s1008 + $0xc1] sm:$0xff]
    %v1234 = vld [vmem:[%s1008 + $0xd1] sm:$0xff]
    %v1235 = vld [vmem:[%s1008 + $0xe1] sm:$0xff]
    %v1236 = vld [vmem:[%s1008 + $0xf1] sm:$0xff]
    %v1237 = vld [vmem:[%s1008 + $0x101] sm:$0xff]
    %v1238 = vld [vmem:[%s1008 + $0x111] sm:$0xff]
    %v1239 = vperm.slane %v1025, 4
    %v1240 = vmul.f32 %v1223, %v1239
    %v1241 = vmul.f32 %v1224, %v1239
    %v1242 = vmul.f32 %v1225, %v1239
    %v1243 = vmul.f32 %v1226, %v1239
    %v1244 = vmul.f32 %v1227, %v1239
    %v1245 = vmul.f32 %v1228, %v1239
    %v1246 = vmul.f32 %v1229, %v1239
    %v1247 = vmul.f32 %v1230, %v1239
    %v1248 = vmul.f32 %v1231, %v1239
    %v1249 = vmul.f32 %v1232, %v1239
    %v1250 = vmul.f32 %v1233, %v1239
    %v1251 = vmul.f32 %v1234, %v1239
    %v1252 = vmul.f32 %v1235, %v1239
    %v1253 = vmul.f32 %v1236, %v1239
    %v1254 = vmul.f32 %v1237, %v1239
    %v1255 = vmul.f32 %v1238, %v1239
    %v1256 = vadd.f32 %v1207, %v1240
    %v1257 = vadd.f32 %v1208, %v1241
    %v1258 = vadd.f32 %v1209, %v1242
    %v1259 = vadd.f32 %v1210, %v1243
    %v1260 = vadd.f32 %v1211, %v1244
    %v1261 = vadd.f32 %v1212, %v1245
    %v1262 = vadd.f32 %v1213, %v1246
    %v1263 = vadd.f32 %v1214, %v1247
    %v1264 = vadd.f32 %v1215, %v1248
    %v1265 = vadd.f32 %v1216, %v1249
    %v1266 = vadd.f32 %v1217, %v1250
    %v1267 = vadd.f32 %v1218, %v1251
    %v1268 = vadd.f32 %v1219, %v1252
    %v1269 = vadd.f32 %v1220, %v1253
    %v1270 = vadd.f32 %v1221, %v1254
    %v1271 = vadd.f32 %v1222, %v1255
    %v1272 = vld [vmem:[%s1008 + $0x2] sm:$0xff]
    %v1273 = vld [vmem:[%s1008 + $0x12] sm:$0xff]
    %v1274 = vld [vmem:[%s1008 + $0x22] sm:$0xff]
    %v1275 = vld [vmem:[%s1008 + $0x32] sm:$0xff]
    %v1276 = vld [vmem:[%s1008 + $0x42] sm:$0xff]
    %v1277 = vld [vmem:[%s1008 + $0x52] sm:$0xff]
    %v1278 = vld [vmem:[%s1008 + $0x62] sm:$0xff]
    %v1279 = vld [vmem:[%s1008 + $0x72] sm:$0xff]
    %v1280 = vld [vmem:[%s1008 + $0xa2] sm:$0xff]
    %v1281 = vld [vmem:[%s1008 + $0xb2] sm:$0xff]
    %v1282 = vld [vmem:[%s1008 + $0xc2] sm:$0xff]
    %v1283 = vld [vmem:[%s1008 + $0xd2] sm:$0xff]
    %v1284 = vld [vmem:[%s1008 + $0xe2] sm:$0xff]
    %v1285 = vld [vmem:[%s1008 + $0xf2] sm:$0xff]
    %v1286 = vld [vmem:[%s1008 + $0x102] sm:$0xff]
    %v1287 = vld [vmem:[%s1008 + $0x112] sm:$0xff]
    %v1288 = vperm.slane %v1025, 5
    %v1289 = vmul.f32 %v1272, %v1288
    %v1290 = vmul.f32 %v1273, %v1288
    %v1291 = vmul.f32 %v1274, %v1288
    %v1292 = vmul.f32 %v1275, %v1288
    %v1293 = vmul.f32 %v1276, %v1288
    %v1294 = vmul.f32 %v1277, %v1288
    %v1295 = vmul.f32 %v1278, %v1288
    %v1296 = vmul.f32 %v1279, %v1288
    %v1297 = vmul.f32 %v1280, %v1288
    %v1298 = vmul.f32 %v1281, %v1288
    %v1299 = vmul.f32 %v1282, %v1288
    %v1300 = vmul.f32 %v1283, %v1288
    %v1301 = vmul.f32 %v1284, %v1288
    %v1302 = vmul.f32 %v1285, %v1288
    %v1303 = vmul.f32 %v1286, %v1288
    %v1304 = vmul.f32 %v1287, %v1288
    %v1305 = vadd.f32 %v1256, %v1289
    %v1306 = vadd.f32 %v1257, %v1290
    %v1307 = vadd.f32 %v1258, %v1291
    %v1308 = vadd.f32 %v1259, %v1292
    %v1309 = vadd.f32 %v1260, %v1293
    %v1310 = vadd.f32 %v1261, %v1294
    %v1311 = vadd.f32 %v1262, %v1295
    %v1312 = vadd.f32 %v1263, %v1296
    %v1313 = vadd.f32 %v1264, %v1297
    %v1314 = vadd.f32 %v1265, %v1298
    %v1315 = vadd.f32 %v1266, %v1299
    %v1316 = vadd.f32 %v1267, %v1300
    %v1317 = vadd.f32 %v1268, %v1301
    %v1318 = vadd.f32 %v1269, %v1302
    %v1319 = vadd.f32 %v1270, %v1303
    %v1320 = vadd.f32 %v1271, %v1304
    %s1321 = scalar_lea.vmem [#allocation2], 32
    %v1322 = vld [vmem:[%s1321] sm:$0xff]
    %v1323 = vld [vmem:[%s1321 + $0x10] sm:$0xff]
    %v1324 = vld [vmem:[%s1321 + $0x20] sm:$0xff]
    %v1325 = vld [vmem:[%s1321 + $0x30] sm:$0xff]
    %v1326 = vld [vmem:[%s1321 + $0x40] sm:$0xff]
    %v1327 = vld [vmem:[%s1321 + $0x50] sm:$0xff]
    %v1328 = vld [vmem:[%s1321 + $0x60] sm:$0xff]
    %v1329 = vld [vmem:[%s1321 + $0x70] sm:$0xff]
    %v1330 = vld [vmem:[%s1321 + $0xa0] sm:$0xff]
    %v1331 = vld [vmem:[%s1321 + $0xb0] sm:$0xff]
    %v1332 = vld [vmem:[%s1321 + $0xc0] sm:$0xff]
    %v1333 = vld [vmem:[%s1321 + $0xd0] sm:$0xff]
    %v1334 = vld [vmem:[%s1321 + $0xe0] sm:$0xff]
    %v1335 = vld [vmem:[%s1321 + $0xf0] sm:$0xff]
    %v1336 = vld [vmem:[%s1321 + $0x100] sm:$0xff]
    %v1337 = vld [vmem:[%s1321 + $0x110] sm:$0xff]
    %v1338 = vperm.slane %v1025, 6
    %v1339 = vmul.f32 %v1322, %v1338
    %v1340 = vmul.f32 %v1323, %v1338
    %v1341 = vmul.f32 %v1324, %v1338
    %v1342 = vmul.f32 %v1325, %v1338
    %v1343 = vmul.f32 %v1326, %v1338
    %v1344 = vmul.f32 %v1327, %v1338
    %v1345 = vmul.f32 %v1328, %v1338
    %v1346 = vmul.f32 %v1329, %v1338
    %v1347 = vmul.f32 %v1330, %v1338
    %v1348 = vmul.f32 %v1331, %v1338
    %v1349 = vmul.f32 %v1332, %v1338
    %v1350 = vmul.f32 %v1333, %v1338
    %v1351 = vmul.f32 %v1334, %v1338
    %v1352 = vmul.f32 %v1335, %v1338
    %v1353 = vmul.f32 %v1336, %v1338
    %v1354 = vmul.f32 %v1337, %v1338
    %v1355 = vadd.f32 %v1305, %v1339
    %v1356 = vadd.f32 %v1306, %v1340
    %v1357 = vadd.f32 %v1307, %v1341
    %v1358 = vadd.f32 %v1308, %v1342
    %v1359 = vadd.f32 %v1309, %v1343
    %v1360 = vadd.f32 %v1310, %v1344
    %v1361 = vadd.f32 %v1311, %v1345
    %v1362 = vadd.f32 %v1312, %v1346
    %v1363 = vadd.f32 %v1313, %v1347
    %v1364 = vadd.f32 %v1314, %v1348
    %v1365 = vadd.f32 %v1315, %v1349
    %v1366 = vadd.f32 %v1316, %v1350
    %v1367 = vadd.f32 %v1317, %v1351
    %v1368 = vadd.f32 %v1318, %v1352
    %v1369 = vadd.f32 %v1319, %v1353
    %v1370 = vadd.f32 %v1320, %v1354
    %v1371 = vld [vmem:[%s1321 + $0x1] sm:$0xff]
    %v1372 = vld [vmem:[%s1321 + $0x11] sm:$0xff]
    %v1373 = vld [vmem:[%s1321 + $0x21] sm:$0xff]
    %v1374 = vld [vmem:[%s1321 + $0x31] sm:$0xff]
    %v1375 = vld [vmem:[%s1321 + $0x41] sm:$0xff]
    %v1376 = vld [vmem:[%s1321 + $0x51] sm:$0xff]
    %v1377 = vld [vmem:[%s1321 + $0x61] sm:$0xff]
    %v1378 = vld [vmem:[%s1321 + $0x71] sm:$0xff]
    %v1379 = vld [vmem:[%s1321 + $0xa1] sm:$0xff]
    %v1380 = vld [vmem:[%s1321 + $0xb1] sm:$0xff]
    %v1381 = vld [vmem:[%s1321 + $0xc1] sm:$0xff]
    %v1382 = vld [vmem:[%s1321 + $0xd1] sm:$0xff]
    %v1383 = vld [vmem:[%s1321 + $0xe1] sm:$0xff]
    %v1384 = vld [vmem:[%s1321 + $0xf1] sm:$0xff]
    %v1385 = vld [vmem:[%s1321 + $0x101] sm:$0xff]
    %v1386 = vld [vmem:[%s1321 + $0x111] sm:$0xff]
    %v1387 = vperm.slane %v1025, 7
    %v1388 = vmul.f32 %v1371, %v1387
    %v1389 = vmul.f32 %v1372, %v1387
    %v1390 = vmul.f32 %v1373, %v1387
    %v1391 = vmul.f32 %v1374, %v1387
    %v1392 = vmul.f32 %v1375, %v1387
    %v1393 = vmul.f32 %v1376, %v1387
    %v1394 = vmul.f32 %v1377, %v1387
    %v1395 = vmul.f32 %v1378, %v1387
    %v1396 = vmul.f32 %v1379, %v1387
    %v1397 = vmul.f32 %v1380, %v1387
    %v1398 = vmul.f32 %v1381, %v1387
    %v1399 = vmul.f32 %v1382, %v1387
    %v1400 = vmul.f32 %v1383, %v1387
    %v1401 = vmul.f32 %v1384, %v1387
    %v1402 = vmul.f32 %v1385, %v1387
    %v1403 = vmul.f32 %v1386, %v1387
    %v1404 = vadd.f32 %v1355, %v1388
    %v1405 = vadd.f32 %v1356, %v1389
    %v1406 = vadd.f32 %v1357, %v1390
    %v1407 = vadd.f32 %v1358, %v1391
    %v1408 = vadd.f32 %v1359, %v1392
    %v1409 = vadd.f32 %v1360, %v1393
    %v1410 = vadd.f32 %v1361, %v1394
    %v1411 = vadd.f32 %v1362, %v1395
    %v1412 = vadd.f32 %v1363, %v1396
    %v1413 = vadd.f32 %v1364, %v1397
    %v1414 = vadd.f32 %v1365, %v1398
    %v1415 = vadd.f32 %v1366, %v1399
    %v1416 = vadd.f32 %v1367, %v1400
    %v1417 = vadd.f32 %v1368, %v1401
    %v1418 = vadd.f32 %v1369, %v1402
    %v1419 = vadd.f32 %v1370, %v1403
    %v1420 = vld [vmem:[%s1321 + $0x2] sm:$0xff]
    %v1421 = vld [vmem:[%s1321 + $0x12] sm:$0xff]
    %v1422 = vld [vmem:[%s1321 + $0x22] sm:$0xff]
    %v1423 = vld [vmem:[%s1321 + $0x32] sm:$0xff]
    %v1424 = vld [vmem:[%s1321 + $0x42] sm:$0xff]
    %v1425 = vld [vmem:[%s1321 + $0x52] sm:$0xff]
    %v1426 = vld [vmem:[%s1321 + $0x62] sm:$0xff]
    %v1427 = vld [vmem:[%s1321 + $0x72] sm:$0xff]
    %v1428 = vld [vmem:[%s1321 + $0xa2] sm:$0xff]
    %v1429 = vld [vmem:[%s1321 + $0xb2] sm:$0xff]
    %v1430 = vld [vmem:[%s1321 + $0xc2] sm:$0xff]
    %v1431 = vld [vmem:[%s1321 + $0xd2] sm:$0xff]
    %v1432 = vld [vmem:[%s1321 + $0xe2] sm:$0xff]
    %v1433 = vld [vmem:[%s1321 + $0xf2] sm:$0xff]
    %v1434 = vld [vmem:[%s1321 + $0x102] sm:$0xff]
    %v1435 = vld [vmem:[%s1321 + $0x112] sm:$0xff]
    %v1436 = vperm.slane %v1026, 0
    %v1437 = vmul.f32 %v1420, %v1436
    %v1438 = vmul.f32 %v1421, %v1436
    %v1439 = vmul.f32 %v1422, %v1436
    %v1440 = vmul.f32 %v1423, %v1436
    %v1441 = vmul.f32 %v1424, %v1436
    %v1442 = vmul.f32 %v1425, %v1436
    %v1443 = vmul.f32 %v1426, %v1436
    %v1444 = vmul.f32 %v1427, %v1436
    %v1445 = vmul.f32 %v1428, %v1436
    %v1446 = vmul.f32 %v1429, %v1436
    %v1447 = vmul.f32 %v1430, %v1436
    %v1448 = vmul.f32 %v1431, %v1436
    %v1449 = vmul.f32 %v1432, %v1436
    %v1450 = vmul.f32 %v1433, %v1436
    %v1451 = vmul.f32 %v1434, %v1436
    %v1452 = vmul.f32 %v1435, %v1436
    %v1453 = vadd.f32 %v1404, %v1437
    %v1454 = vadd.f32 %v1405, %v1438
    %v1455 = vadd.f32 %v1406, %v1439
    %v1456 = vadd.f32 %v1407, %v1440
    %v1457 = vadd.f32 %v1408, %v1441
    %v1458 = vadd.f32 %v1409, %v1442
    %v1459 = vadd.f32 %v1410, %v1443
    %v1460 = vadd.f32 %v1411, %v1444
    %v1461 = vadd.f32 %v1412, %v1445
    %v1462 = vadd.f32 %v1413, %v1446
    %v1463 = vadd.f32 %v1414, %v1447
    %v1464 = vadd.f32 %v1415, %v1448
    %v1465 = vadd.f32 %v1416, %v1449
    %v1466 = vadd.f32 %v1417, %v1450
    %v1467 = vadd.f32 %v1418, %v1451
    %v1468 = vadd.f32 %v1419, %v1452
    %v1469 = vld [vmem:[%s4] sm:$0x1]
    %v1471 = vperm.slane %v1469, 0
    %v1473 = vadd.f32 %v1453, %v1471
    %v1474 = vadd.f32 %v1454, %v1471
    %v1475 = vadd.f32 %v1455, %v1471
    %v1476 = vadd.f32 %v1456, %v1471
    %v1477 = vadd.f32 %v1457, %v1471
    %v1478 = vadd.f32 %v1458, %v1471
    %v1479 = vadd.f32 %v1459, %v1471
    %v1480 = vadd.f32 %v1460, %v1471
    %v1481 = vadd.f32 %v1461, %v1471
    %v1482 = vadd.f32 %v1462, %v1471
    %v1483 = vadd.f32 %v1463, %v1471
    %v1484 = vadd.f32 %v1464, %v1471
    %v1485 = vadd.f32 %v1465, %v1471
    %v1486 = vadd.f32 %v1466, %v1471
    %v1487 = vadd.f32 %v1467, %v1471
    %v1488 = vadd.f32 %v1468, %v1471
    %v1489 = vxor.u32 %v1473, 2147483648
    %v1490 = vxor.u32 %v1474, 2147483648
    %v1491 = vxor.u32 %v1475, 2147483648
    %v1492 = vxor.u32 %v1476, 2147483648
    %v1493 = vxor.u32 %v1477, 2147483648
    %v1494 = vxor.u32 %v1478, 2147483648
    %v1495 = vxor.u32 %v1479, 2147483648
    %v1496 = vxor.u32 %v1480, 2147483648
    %v1497 = vxor.u32 %v1481, 2147483648
    %v1498 = vxor.u32 %v1482, 2147483648
    %v1499 = vxor.u32 %v1483, 2147483648
    %v1500 = vxor.u32 %v1484, 2147483648
    %v1501 = vxor.u32 %v1485, 2147483648
    %v1502 = vxor.u32 %v1486, 2147483648
    %v1503 = vxor.u32 %v1487, 2147483648
    %v1504 = vxor.u32 %v1488, 2147483648
    %v1505 = vmul.f32 %v1489, 1.442695
    %v1506 = vpow.pop %v1505
    %v1507 = vmul.f32 %v1490, 1.442695
    %v1508 = vpow.pop %v1507
    %v1509 = vmul.f32 %v1491, 1.442695
    %v1510 = vpow.pop %v1509
    %v1511 = vmul.f32 %v1492, 1.442695
    %v1512 = vpow.pop %v1511
    %v1513 = vmul.f32 %v1493, 1.442695
    %v1514 = vpow.pop %v1513
    %v1515 = vmul.f32 %v1494, 1.442695
    %v1516 = vpow.pop %v1515
    %v1517 = vmul.f32 %v1495, 1.442695
    %v1518 = vpow.pop %v1517
    %v1519 = vmul.f32 %v1496, 1.442695
    %v1520 = vpow.pop %v1519
    %v1521 = vmul.f32 %v1497, 1.442695
    %v1522 = vpow.pop %v1521
    %v1523 = vmul.f32 %v1498, 1.442695
    %v1524 = vpow.pop %v1523
    %v1525 = vmul.f32 %v1499, 1.442695
    %v1526 = vpow.pop %v1525
    %v1527 = vmul.f32 %v1500, 1.442695
    %v1528 = vpow.pop %v1527
    %v1529 = vmul.f32 %v1501, 1.442695
    %v1530 = vpow.pop %v1529
    %v1531 = vmul.f32 %v1502, 1.442695
    %v1532 = vpow.pop %v1531
    %v1533 = vmul.f32 %v1503, 1.442695
    %v1534 = vpow.pop %v1533
    %v1535 = vmul.f32 %v1504, 1.442695
    %v1536 = vpow.pop %v1535
    %v1537 = vadd.f32 %v1506, 1.0
    %v1538 = vadd.f32 %v1508, 1.0
    %v1539 = vadd.f32 %v1510, 1.0
    %v1540 = vadd.f32 %v1512, 1.0
    %v1541 = vadd.f32 %v1514, 1.0
    %v1542 = vadd.f32 %v1516, 1.0
    %v1543 = vadd.f32 %v1518, 1.0
    %v1544 = vadd.f32 %v1520, 1.0
    %v1545 = vadd.f32 %v1522, 1.0
    %v1546 = vadd.f32 %v1524, 1.0
    %v1547 = vadd.f32 %v1526, 1.0
    %v1548 = vadd.f32 %v1528, 1.0
    %v1549 = vadd.f32 %v1530, 1.0
    %v1550 = vadd.f32 %v1532, 1.0
    %v1551 = vadd.f32 %v1534, 1.0
    %v1552 = vadd.f32 %v1536, 1.0
    %v1553 = vrcp.pop %v1537
    %v1554 = vmul.f32 %v1537, %v1553
    %v1555 = vsub.f32 1.0, %v1554
    %v1556 = vmul.f32 %v1553, %v1555
    %v1557 = vadd.f32 %v1553, %v1556
    %vm1558 = vweird.f32 %v1537
    %vm1559 = vweird.f32 %v1553
    %vm1560 = vmor %vm1558, %vm1559
    %v1561 = vsel %vm1560, %v1553, %v1557
    %v1562 = vand.u32 2147483647, %v1537
    %vm1563 = vcmp.eq.f32.partialorder %v1562, 8.507059e+37
    %v1564 = vand.u32 %v1537, 2147483648
    %v1565 = vor.u32 1.1754944e-38, %v1564
    %v1566 = vsel %vm1563, %v1565, %v1561
    %v1567 = vmul.f32 1.0, %v1566
    %v1568 = vrcp.pop %v1538
    %v1569 = vmul.f32 %v1538, %v1568
    %v1570 = vsub.f32 1.0, %v1569
    %v1571 = vmul.f32 %v1568, %v1570
    %v1572 = vadd.f32 %v1568, %v1571
    %vm1573 = vweird.f32 %v1538
    %vm1574 = vweird.f32 %v1568
    %vm1575 = vmor %vm1573, %vm1574
    %v1576 = vsel %vm1575, %v1568, %v1572
    %v1577 = vand.u32 2147483647, %v1538
    %vm1578 = vcmp.eq.f32.partialorder %v1577, 8.507059e+37
    %v1579 = vand.u32 %v1538, 2147483648
    %v1580 = vor.u32 1.1754944e-38, %v1579
    %v1581 = vsel %vm1578, %v1580, %v1576
    %v1582 = vmul.f32 1.0, %v1581
    %v1583 = vrcp.pop %v1539
    %v1584 = vmul.f32 %v1539, %v1583
    %v1585 = vsub.f32 1.0, %v1584
    %v1586 = vmul.f32 %v1583, %v1585
    %v1587 = vadd.f32 %v1583, %v1586
    %vm1588 = vweird.f32 %v1539
    %vm1589 = vweird.f32 %v1583
    %vm1590 = vmor %vm1588, %vm1589
    %v1591 = vsel %vm1590, %v1583, %v1587
    %v1592 = vand.u32 2147483647, %v1539
    %vm1593 = vcmp.eq.f32.partialorder %v1592, 8.507059e+37
    %v1594 = vand.u32 %v1539, 2147483648
    %v1595 = vor.u32 1.1754944e-38, %v1594
    %v1596 = vsel %vm1593, %v1595, %v1591
    %v1597 = vmul.f32 1.0, %v1596
    %v1598 = vrcp.pop %v1540
    %v1599 = vmul.f32 %v1540, %v1598
    %v1600 = vsub.f32 1.0, %v1599
    %v1601 = vmul.f32 %v1598, %v1600
    %v1602 = vadd.f32 %v1598, %v1601
    %vm1603 = vweird.f32 %v1540
    %vm1604 = vweird.f32 %v1598
    %vm1605 = vmor %vm1603, %vm1604
    %v1606 = vsel %vm1605, %v1598, %v1602
    %v1607 = vand.u32 2147483647, %v1540
    %vm1608 = vcmp.eq.f32.partialorder %v1607, 8.507059e+37
    %v1609 = vand.u32 %v1540, 2147483648
    %v1610 = vor.u32 1.1754944e-38, %v1609
    %v1611 = vsel %vm1608, %v1610, %v1606
    %v1612 = vmul.f32 1.0, %v1611
    %v1613 = vrcp.pop %v1541
    %v1614 = vmul.f32 %v1541, %v1613
    %v1615 = vsub.f32 1.0, %v1614
    %v1616 = vmul.f32 %v1613, %v1615
    %v1617 = vadd.f32 %v1613, %v1616
    %vm1618 = vweird.f32 %v1541
    %vm1619 = vweird.f32 %v1613
    %vm1620 = vmor %vm1618, %vm1619
    %v1621 = vsel %vm1620, %v1613, %v1617
    %v1622 = vand.u32 2147483647, %v1541
    %vm1623 = vcmp.eq.f32.partialorder %v1622, 8.507059e+37
    %v1624 = vand.u32 %v1541, 2147483648
    %v1625 = vor.u32 1.1754944e-38, %v1624
    %v1626 = vsel %vm1623, %v1625, %v1621
    %v1627 = vmul.f32 1.0, %v1626
    %v1628 = vrcp.pop %v1542
    %v1629 = vmul.f32 %v1542, %v1628
    %v1630 = vsub.f32 1.0, %v1629
    %v1631 = vmul.f32 %v1628, %v1630
    %v1632 = vadd.f32 %v1628, %v1631
    %vm1633 = vweird.f32 %v1542
    %vm1634 = vweird.f32 %v1628
    %vm1635 = vmor %vm1633, %vm1634
    %v1636 = vsel %vm1635, %v1628, %v1632
    %v1637 = vand.u32 2147483647, %v1542
    %vm1638 = vcmp.eq.f32.partialorder %v1637, 8.507059e+37
    %v1639 = vand.u32 %v1542, 2147483648
    %v1640 = vor.u32 1.1754944e-38, %v1639
    %v1641 = vsel %vm1638, %v1640, %v1636
    %v1642 = vmul.f32 1.0, %v1641
    %v1643 = vrcp.pop %v1543
    %v1644 = vmul.f32 %v1543, %v1643
    %v1645 = vsub.f32 1.0, %v1644
    %v1646 = vmul.f32 %v1643, %v1645
    %v1647 = vadd.f32 %v1643, %v1646
    %vm1648 = vweird.f32 %v1543
    %vm1649 = vweird.f32 %v1643
    %vm1650 = vmor %vm1648, %vm1649
    %v1651 = vsel %vm1650, %v1643, %v1647
    %v1652 = vand.u32 2147483647, %v1543
    %vm1653 = vcmp.eq.f32.partialorder %v1652, 8.507059e+37
    %v1654 = vand.u32 %v1543, 2147483648
    %v1655 = vor.u32 1.1754944e-38, %v1654
    %v1656 = vsel %vm1653, %v1655, %v1651
    %v1657 = vmul.f32 1.0, %v1656
    %v1658 = vrcp.pop %v1544
    %v1659 = vmul.f32 %v1544, %v1658
    %v1660 = vsub.f32 1.0, %v1659
    %v1661 = vmul.f32 %v1658, %v1660
    %v1662 = vadd.f32 %v1658, %v1661
    %vm1663 = vweird.f32 %v1544
    %vm1664 = vweird.f32 %v1658
    %vm1665 = vmor %vm1663, %vm1664
    %v1666 = vsel %vm1665, %v1658, %v1662
    %v1667 = vand.u32 2147483647, %v1544
    %vm1668 = vcmp.eq.f32.partialorder %v1667, 8.507059e+37
    %v1669 = vand.u32 %v1544, 2147483648
    %v1670 = vor.u32 1.1754944e-38, %v1669
    %v1671 = vsel %vm1668, %v1670, %v1666
    %v1672 = vmul.f32 1.0, %v1671
    %v1673 = vrcp.pop %v1545
    %v1674 = vmul.f32 %v1545, %v1673
    %v1675 = vsub.f32 1.0, %v1674
    %v1676 = vmul.f32 %v1673, %v1675
    %v1677 = vadd.f32 %v1673, %v1676
    %vm1678 = vweird.f32 %v1545
    %vm1679 = vweird.f32 %v1673
    %vm1680 = vmor %vm1678, %vm1679
    %v1681 = vsel %vm1680, %v1673, %v1677
    %v1682 = vand.u32 2147483647, %v1545
    %vm1683 = vcmp.eq.f32.partialorder %v1682, 8.507059e+37
    %v1684 = vand.u32 %v1545, 2147483648
    %v1685 = vor.u32 1.1754944e-38, %v1684
    %v1686 = vsel %vm1683, %v1685, %v1681
    %v1687 = vmul.f32 1.0, %v1686
    %v1688 = vrcp.pop %v1546
    %v1689 = vmul.f32 %v1546, %v1688
    %v1690 = vsub.f32 1.0, %v1689
    %v1691 = vmul.f32 %v1688, %v1690
    %v1692 = vadd.f32 %v1688, %v1691
    %vm1693 = vweird.f32 %v1546
    %vm1694 = vweird.f32 %v1688
    %vm1695 = vmor %vm1693, %vm1694
    %v1696 = vsel %vm1695, %v1688, %v1692
    %v1697 = vand.u32 2147483647, %v1546
    %vm1698 = vcmp.eq.f32.partialorder %v1697, 8.507059e+37
    %v1699 = vand.u32 %v1546, 2147483648
    %v1700 = vor.u32 1.1754944e-38, %v1699
    %v1701 = vsel %vm1698, %v1700, %v1696
    %v1702 = vmul.f32 1.0, %v1701
    %v1703 = vrcp.pop %v1547
    %v1704 = vmul.f32 %v1547, %v1703
    %v1705 = vsub.f32 1.0, %v1704
    %v1706 = vmul.f32 %v1703, %v1705
    %v1707 = vadd.f32 %v1703, %v1706
    %vm1708 = vweird.f32 %v1547
    %vm1709 = vweird.f32 %v1703
    %vm1710 = vmor %vm1708, %vm1709
    %v1711 = vsel %vm1710, %v1703, %v1707
    %v1712 = vand.u32 2147483647, %v1547
    %vm1713 = vcmp.eq.f32.partialorder %v1712, 8.507059e+37
    %v1714 = vand.u32 %v1547, 2147483648
    %v1715 = vor.u32 1.1754944e-38, %v1714
    %v1716 = vsel %vm1713, %v1715, %v1711
    %v1717 = vmul.f32 1.0, %v1716
    %v1718 = vrcp.pop %v1548
    %v1719 = vmul.f32 %v1548, %v1718
    %v1720 = vsub.f32 1.0, %v1719
    %v1721 = vmul.f32 %v1718, %v1720
    %v1722 = vadd.f32 %v1718, %v1721
    %vm1723 = vweird.f32 %v1548
    %vm1724 = vweird.f32 %v1718
    %vm1725 = vmor %vm1723, %vm1724
    %v1726 = vsel %vm1725, %v1718, %v1722
    %v1727 = vand.u32 2147483647, %v1548
    %vm1728 = vcmp.eq.f32.partialorder %v1727, 8.507059e+37
    %v1729 = vand.u32 %v1548, 2147483648
    %v1730 = vor.u32 1.1754944e-38, %v1729
    %v1731 = vsel %vm1728, %v1730, %v1726
    %v1732 = vmul.f32 1.0, %v1731
    %v1733 = vrcp.pop %v1549
    %v1734 = vmul.f32 %v1549, %v1733
    %v1735 = vsub.f32 1.0, %v1734
    %v1736 = vmul.f32 %v1733, %v1735
    %v1737 = vadd.f32 %v1733, %v1736
    %vm1738 = vweird.f32 %v1549
    %vm1739 = vweird.f32 %v1733
    %vm1740 = vmor %vm1738, %vm1739
    %v1741 = vsel %vm1740, %v1733, %v1737
    %v1742 = vand.u32 2147483647, %v1549
    %vm1743 = vcmp.eq.f32.partialorder %v1742, 8.507059e+37
    %v1744 = vand.u32 %v1549, 2147483648
    %v1745 = vor.u32 1.1754944e-38, %v1744
    %v1746 = vsel %vm1743, %v1745, %v1741
    %v1747 = vmul.f32 1.0, %v1746
    %v1748 = vrcp.pop %v1550
    %v1749 = vmul.f32 %v1550, %v1748
    %v1750 = vsub.f32 1.0, %v1749
    %v1751 = vmul.f32 %v1748, %v1750
    %v1752 = vadd.f32 %v1748, %v1751
    %vm1753 = vweird.f32 %v1550
    %vm1754 = vweird.f32 %v1748
    %vm1755 = vmor %vm1753, %vm1754
    %v1756 = vsel %vm1755, %v1748, %v1752
    %v1757 = vand.u32 2147483647, %v1550
    %vm1758 = vcmp.eq.f32.partialorder %v1757, 8.507059e+37
    %v1759 = vand.u32 %v1550, 2147483648
    %v1760 = vor.u32 1.1754944e-38, %v1759
    %v1761 = vsel %vm1758, %v1760, %v1756
    %v1762 = vmul.f32 1.0, %v1761
    %v1763 = vrcp.pop %v1551
    %v1764 = vmul.f32 %v1551, %v1763
    %v1765 = vsub.f32 1.0, %v1764
    %v1766 = vmul.f32 %v1763, %v1765
    %v1767 = vadd.f32 %v1763, %v1766
    %vm1768 = vweird.f32 %v1551
    %vm1769 = vweird.f32 %v1763
    %vm1770 = vmor %vm1768, %vm1769
    %v1771 = vsel %vm1770, %v1763, %v1767
    %v1772 = vand.u32 2147483647, %v1551
    %vm1773 = vcmp.eq.f32.partialorder %v1772, 8.507059e+37
    %v1774 = vand.u32 %v1551, 2147483648
    %v1775 = vor.u32 1.1754944e-38, %v1774
    %v1776 = vsel %vm1773, %v1775, %v1771
    %v1777 = vmul.f32 1.0, %v1776
    %v1778 = vrcp.pop %v1552
    %v1779 = vmul.f32 %v1552, %v1778
    %v1780 = vsub.f32 1.0, %v1779
    %v1781 = vmul.f32 %v1778, %v1780
    %v1782 = vadd.f32 %v1778, %v1781
    %vm1783 = vweird.f32 %v1552
    %vm1784 = vweird.f32 %v1778
    %vm1785 = vmor %vm1783, %vm1784
    %v1786 = vsel %vm1785, %v1778, %v1782
    %v1787 = vand.u32 2147483647, %v1552
    %vm1788 = vcmp.eq.f32.partialorder %v1787, 8.507059e+37
    %v1789 = vand.u32 %v1552, 2147483648
    %v1790 = vor.u32 1.1754944e-38, %v1789
    %v1791 = vsel %vm1788, %v1790, %v1786
    %v1792 = vmul.f32 1.0, %v1791
    %v1793 = vmul.f32 %v1473, %v1567
    %v1794 = vmul.f32 %v1474, %v1582
    %v1795 = vmul.f32 %v1475, %v1597
    %v1796 = vmul.f32 %v1476, %v1612
    %v1797 = vmul.f32 %v1477, %v1627
    %v1798 = vmul.f32 %v1478, %v1642
    %v1799 = vmul.f32 %v1479, %v1657
    %v1800 = vmul.f32 %v1480, %v1672
    %v1801 = vmul.f32 %v1481, %v1687
    %v1802 = vmul.f32 %v1482, %v1702
    %v1803 = vmul.f32 %v1483, %v1717
    %v1804 = vmul.f32 %v1484, %v1732
    %v1805 = vmul.f32 %v1485, %v1747
    %v1806 = vmul.f32 %v1486, %v1762
    %v1807 = vmul.f32 %v1487, %v1777
    %v1808 = vmul.f32 %v1488, %v1792
    %v1809 = vld [vmem:[%s5] sm:$0xff]
    %v1810 = vld [vmem:[%s5 + $0x8] sm:$0xff]
    %v1811 = vld [vmem:[%s5 + $0x10] sm:$0xff]
    %v1812 = vld [vmem:[%s5 + $0x18] sm:$0xff]
    %v1813 = vld [vmem:[%s6] sm:$0x1]
    %v1815 = vperm.slane %v1813, 0
    %v1818 = vsel %vm956, %v1793, 0
    %v1821 = vsel %vm956, %v1794, 0
    %v1824 = vsel %vm956, %v1795, 0
    %v1827 = vsel %vm956, %v1796, 0
    %v1830 = vsel %vm956, %v1797, 0
    %v1833 = vsel %vm956, %v1798, 0
    %v1836 = vsel %vm956, %v1799, 0
    %v1839 = vsel %vm956, %v1800, 0
    %v1842 = vsel %vm956, %v1801, 0
    %v1845 = vsel %vm956, %v1802, 0
    %v1848 = vsel %vm956, %v1803, 0
    %v1851 = vsel %vm956, %v1804, 0
    %v1854 = vsel %vm956, %v1805, 0
    %v1857 = vsel %vm956, %v1806, 0
    %v1860 = vsel %vm956, %v1807, 0
    %v1863 = vsel %vm956, %v1808, 0
    %1865 = vmatpush.msra.mxu0 0.0
    %1866 = vmatpush.msra.mxu0 0.0
    %1867 = vmatpush.msra.mxu0 0.0
    %1868 = vmatpush.msra.mxu0 0.0
    %1869 = vmatpush.msra.mxu0 0.0
    %1870 = vmatpush.msra.mxu0 0.0
    %1871 = vmatpush.msra.mxu0 0.0
    %1872 = vmatpush.msra.mxu0 0.0
    %1873 = vmatpush.msra.mxu0 0.0
    %1874 = vmatpush.msra.mxu0 0.0
    %1875 = vmatpush.msra.mxu0 0.0
    %1876 = vmatpush.msra.mxu0 0.0
    %1877 = vmatpush.msra.mxu0 %v1812
    %1878 = vmatpush.msra.mxu0 %v1811
    %1879 = vmatpush.msra.mxu0 %v1810
    %1880 = vmatpush.msra.mxu0 %v1809
    %1881 = vmatmul.f32.gmra.mxu0 %v1818
    %v1882 = vpop.f32.mrf.mxu0
    %v1883 = vadd.f32 %v1815, %v1882
    %1884 = vmatmul.f32.gmra.mxu0 %v1821
    %v1885 = vpop.f32.mrf.mxu0
    %v1886 = vadd.f32 %v1815, %v1885
    %1887 = vmatmul.f32.gmra.mxu0 %v1824
    %v1888 = vpop.f32.mrf.mxu0
    %v1889 = vadd.f32 %v1815, %v1888
    %1890 = vmatmul.f32.gmra.mxu0 %v1827
    %v1891 = vpop.f32.mrf.mxu0
    %v1892 = vadd.f32 %v1815, %v1891
    %1893 = vmatmul.f32.gmra.mxu0 %v1830
    %v1894 = vpop.f32.mrf.mxu0
    %v1895 = vadd.f32 %v1815, %v1894
    %1896 = vmatmul.f32.gmra.mxu0 %v1833
    %v1897 = vpop.f32.mrf.mxu0
    %v1898 = vadd.f32 %v1815, %v1897
    %1899 = vmatmul.f32.gmra.mxu0 %v1836
    %v1900 = vpop.f32.mrf.mxu0
    %v1901 = vadd.f32 %v1815, %v1900
    %1902 = vmatmul.f32.gmra.mxu0 %v1839
    %v1903 = vpop.f32.mrf.mxu0
    %v1904 = vadd.f32 %v1815, %v1903
    %1905 = vmatmul.f32.gmra.mxu0 %v1842
    %v1906 = vpop.f32.mrf.mxu0
    %v1907 = vadd.f32 %v1815, %v1906
    %1908 = vmatmul.f32.gmra.mxu0 %v1845
    %v1909 = vpop.f32.mrf.mxu0
    %v1910 = vadd.f32 %v1815, %v1909
    %1911 = vmatmul.f32.gmra.mxu0 %v1848
    %v1912 = vpop.f32.mrf.mxu0
    %v1913 = vadd.f32 %v1815, %v1912
    %1914 = vmatmul.f32.gmra.mxu0 %v1851
    %v1915 = vpop.f32.mrf.mxu0
    %v1916 = vadd.f32 %v1815, %v1915
    %1917 = vmatmul.f32.gmra.mxu0 %v1854
    %v1918 = vpop.f32.mrf.mxu0
    %v1919 = vadd.f32 %v1815, %v1918
    %1920 = vmatmul.f32.gmra.mxu0 %v1857
    %v1921 = vpop.f32.mrf.mxu0
    %v1922 = vadd.f32 %v1815, %v1921
    %1923 = vmatmul.f32.gmra.mxu0 %v1860
    %v1924 = vpop.f32.mrf.mxu0
    %v1925 = vadd.f32 %v1815, %v1924
    %1926 = vmatmul.f32.gmra.mxu0 %v1863
    %v1927 = vpop.f32.mrf.mxu0
    %v1928 = vadd.f32 %v1815, %v1927
    %1929 = vdwg.mxu0
    %v1930 = vxor.u32 %v1883, 2147483648
    %v1931 = vxor.u32 %v1886, 2147483648
    %v1932 = vxor.u32 %v1889, 2147483648
    %v1933 = vxor.u32 %v1892, 2147483648
    %v1934 = vxor.u32 %v1895, 2147483648
    %v1935 = vxor.u32 %v1898, 2147483648
    %v1936 = vxor.u32 %v1901, 2147483648
    %v1937 = vxor.u32 %v1904, 2147483648
    %v1938 = vxor.u32 %v1907, 2147483648
    %v1939 = vxor.u32 %v1910, 2147483648
    %v1940 = vxor.u32 %v1913, 2147483648
    %v1941 = vxor.u32 %v1916, 2147483648
    %v1942 = vxor.u32 %v1919, 2147483648
    %v1943 = vxor.u32 %v1922, 2147483648
    %v1944 = vxor.u32 %v1925, 2147483648
    %v1945 = vxor.u32 %v1928, 2147483648
    %v1946 = vmul.f32 %v1930, 1.442695
    %v1947 = vpow.pop %v1946
    %v1948 = vmul.f32 %v1931, 1.442695
    %v1949 = vpow.pop %v1948
    %v1950 = vmul.f32 %v1932, 1.442695
    %v1951 = vpow.pop %v1950
    %v1952 = vmul.f32 %v1933, 1.442695
    %v1953 = vpow.pop %v1952
    %v1954 = vmul.f32 %v1934, 1.442695
    %v1955 = vpow.pop %v1954
    %v1956 = vmul.f32 %v1935, 1.442695
    %v1957 = vpow.pop %v1956
    %v1958 = vmul.f32 %v1936, 1.442695
    %v1959 = vpow.pop %v1958
    %v1960 = vmul.f32 %v1937, 1.442695
    %v1961 = vpow.pop %v1960
    %v1962 = vmul.f32 %v1938, 1.442695
    %v1963 = vpow.pop %v1962
    %v1964 = vmul.f32 %v1939, 1.442695
    %v1965 = vpow.pop %v1964
    %v1966 = vmul.f32 %v1940, 1.442695
    %v1967 = vpow.pop %v1966
    %v1968 = vmul.f32 %v1941, 1.442695
    %v1969 = vpow.pop %v1968
    %v1970 = vmul.f32 %v1942, 1.442695
    %v1971 = vpow.pop %v1970
    %v1972 = vmul.f32 %v1943, 1.442695
    %v1973 = vpow.pop %v1972
    %v1974 = vmul.f32 %v1944, 1.442695
    %v1975 = vpow.pop %v1974
    %v1976 = vmul.f32 %v1945, 1.442695
    %v1977 = vpow.pop %v1976
    %v1978 = vadd.f32 %v1947, 1.0
    %v1979 = vadd.f32 %v1949, 1.0
    %v1980 = vadd.f32 %v1951, 1.0
    %v1981 = vadd.f32 %v1953, 1.0
    %v1982 = vadd.f32 %v1955, 1.0
    %v1983 = vadd.f32 %v1957, 1.0
    %v1984 = vadd.f32 %v1959, 1.0
    %v1985 = vadd.f32 %v1961, 1.0
    %v1986 = vadd.f32 %v1963, 1.0
    %v1987 = vadd.f32 %v1965, 1.0
    %v1988 = vadd.f32 %v1967, 1.0
    %v1989 = vadd.f32 %v1969, 1.0
    %v1990 = vadd.f32 %v1971, 1.0
    %v1991 = vadd.f32 %v1973, 1.0
    %v1992 = vadd.f32 %v1975, 1.0
    %v1993 = vadd.f32 %v1977, 1.0
    %v1994 = vrcp.pop %v1978
    %v1995 = vmul.f32 %v1978, %v1994
    %v1996 = vsub.f32 1.0, %v1995
    %v1997 = vmul.f32 %v1994, %v1996
    %v1998 = vadd.f32 %v1994, %v1997
    %vm1999 = vweird.f32 %v1978
    %vm2000 = vweird.f32 %v1994
    %vm2001 = vmor %vm1999, %vm2000
    %v2002 = vsel %vm2001, %v1994, %v1998
    %v2003 = vand.u32 2147483647, %v1978
    %vm2004 = vcmp.eq.f32.partialorder %v2003, 8.507059e+37
    %v2005 = vand.u32 %v1978, 2147483648
    %v2006 = vor.u32 1.1754944e-38, %v2005
    %v2007 = vsel %vm2004, %v2006, %v2002
    %v2008 = vmul.f32 1.0, %v2007
    %v2009 = vrcp.pop %v1979
    %v2010 = vmul.f32 %v1979, %v2009
    %v2011 = vsub.f32 1.0, %v2010
    %v2012 = vmul.f32 %v2009, %v2011
    %v2013 = vadd.f32 %v2009, %v2012
    %vm2014 = vweird.f32 %v1979
    %vm2015 = vweird.f32 %v2009
    %vm2016 = vmor %vm2014, %vm2015
    %v2017 = vsel %vm2016, %v2009, %v2013
    %v2018 = vand.u32 2147483647, %v1979
    %vm2019 = vcmp.eq.f32.partialorder %v2018, 8.507059e+37
    %v2020 = vand.u32 %v1979, 2147483648
    %v2021 = vor.u32 1.1754944e-38, %v2020
    %v2022 = vsel %vm2019, %v2021, %v2017
    %v2023 = vmul.f32 1.0, %v2022
    %v2024 = vrcp.pop %v1980
    %v2025 = vmul.f32 %v1980, %v2024
    %v2026 = vsub.f32 1.0, %v2025
    %v2027 = vmul.f32 %v2024, %v2026
    %v2028 = vadd.f32 %v2024, %v2027
    %vm2029 = vweird.f32 %v1980
    %vm2030 = vweird.f32 %v2024
    %vm2031 = vmor %vm2029, %vm2030
    %v2032 = vsel %vm2031, %v2024, %v2028
    %v2033 = vand.u32 2147483647, %v1980
    %vm2034 = vcmp.eq.f32.partialorder %v2033, 8.507059e+37
    %v2035 = vand.u32 %v1980, 2147483648
    %v2036 = vor.u32 1.1754944e-38, %v2035
    %v2037 = vsel %vm2034, %v2036, %v2032
    %v2038 = vmul.f32 1.0, %v2037
    %v2039 = vrcp.pop %v1981
    %v2040 = vmul.f32 %v1981, %v2039
    %v2041 = vsub.f32 1.0, %v2040
    %v2042 = vmul.f32 %v2039, %v2041
    %v2043 = vadd.f32 %v2039, %v2042
    %vm2044 = vweird.f32 %v1981
    %vm2045 = vweird.f32 %v2039
    %vm2046 = vmor %vm2044, %vm2045
    %v2047 = vsel %vm2046, %v2039, %v2043
    %v2048 = vand.u32 2147483647, %v1981
    %vm2049 = vcmp.eq.f32.partialorder %v2048, 8.507059e+37
    %v2050 = vand.u32 %v1981, 2147483648
    %v2051 = vor.u32 1.1754944e-38, %v2050
    %v2052 = vsel %vm2049, %v2051, %v2047
    %v2053 = vmul.f32 1.0, %v2052
    %v2054 = vrcp.pop %v1982
    %v2055 = vmul.f32 %v1982, %v2054
    %v2056 = vsub.f32 1.0, %v2055
    %v2057 = vmul.f32 %v2054, %v2056
    %v2058 = vadd.f32 %v2054, %v2057
    %vm2059 = vweird.f32 %v1982
    %vm2060 = vweird.f32 %v2054
    %vm2061 = vmor %vm2059, %vm2060
    %v2062 = vsel %vm2061, %v2054, %v2058
    %v2063 = vand.u32 2147483647, %v1982
    %vm2064 = vcmp.eq.f32.partialorder %v2063, 8.507059e+37
    %v2065 = vand.u32 %v1982, 2147483648
    %v2066 = vor.u32 1.1754944e-38, %v2065
    %v2067 = vsel %vm2064, %v2066, %v2062
    %v2068 = vmul.f32 1.0, %v2067
    %v2069 = vrcp.pop %v1983
    %v2070 = vmul.f32 %v1983, %v2069
    %v2071 = vsub.f32 1.0, %v2070
    %v2072 = vmul.f32 %v2069, %v2071
    %v2073 = vadd.f32 %v2069, %v2072
    %vm2074 = vweird.f32 %v1983
    %vm2075 = vweird.f32 %v2069
    %vm2076 = vmor %vm2074, %vm2075
    %v2077 = vsel %vm2076, %v2069, %v2073
    %v2078 = vand.u32 2147483647, %v1983
    %vm2079 = vcmp.eq.f32.partialorder %v2078, 8.507059e+37
    %v2080 = vand.u32 %v1983, 2147483648
    %v2081 = vor.u32 1.1754944e-38, %v2080
    %v2082 = vsel %vm2079, %v2081, %v2077
    %v2083 = vmul.f32 1.0, %v2082
    %v2084 = vrcp.pop %v1984
    %v2085 = vmul.f32 %v1984, %v2084
    %v2086 = vsub.f32 1.0, %v2085
    %v2087 = vmul.f32 %v2084, %v2086
    %v2088 = vadd.f32 %v2084, %v2087
    %vm2089 = vweird.f32 %v1984
    %vm2090 = vweird.f32 %v2084
    %vm2091 = vmor %vm2089, %vm2090
    %v2092 = vsel %vm2091, %v2084, %v2088
    %v2093 = vand.u32 2147483647, %v1984
    %vm2094 = vcmp.eq.f32.partialorder %v2093, 8.507059e+37
    %v2095 = vand.u32 %v1984, 2147483648
    %v2096 = vor.u32 1.1754944e-38, %v2095
    %v2097 = vsel %vm2094, %v2096, %v2092
    %v2098 = vmul.f32 1.0, %v2097
    %v2099 = vrcp.pop %v1985
    %v2100 = vmul.f32 %v1985, %v2099
    %v2101 = vsub.f32 1.0, %v2100
    %v2102 = vmul.f32 %v2099, %v2101
    %v2103 = vadd.f32 %v2099, %v2102
    %vm2104 = vweird.f32 %v1985
    %vm2105 = vweird.f32 %v2099
    %vm2106 = vmor %vm2104, %vm2105
    %v2107 = vsel %vm2106, %v2099, %v2103
    %v2108 = vand.u32 2147483647, %v1985
    %vm2109 = vcmp.eq.f32.partialorder %v2108, 8.507059e+37
    %v2110 = vand.u32 %v1985, 2147483648
    %v2111 = vor.u32 1.1754944e-38, %v2110
    %v2112 = vsel %vm2109, %v2111, %v2107
    %v2113 = vmul.f32 1.0, %v2112
    %v2114 = vrcp.pop %v1986
    %v2115 = vmul.f32 %v1986, %v2114
    %v2116 = vsub.f32 1.0, %v2115
    %v2117 = vmul.f32 %v2114, %v2116
    %v2118 = vadd.f32 %v2114, %v2117
    %vm2119 = vweird.f32 %v1986
    %vm2120 = vweird.f32 %v2114
    %vm2121 = vmor %vm2119, %vm2120
    %v2122 = vsel %vm2121, %v2114, %v2118
    %v2123 = vand.u32 2147483647, %v1986
    %vm2124 = vcmp.eq.f32.partialorder %v2123, 8.507059e+37
    %v2125 = vand.u32 %v1986, 2147483648
    %v2126 = vor.u32 1.1754944e-38, %v2125
    %v2127 = vsel %vm2124, %v2126, %v2122
    %v2128 = vmul.f32 1.0, %v2127
    %v2129 = vrcp.pop %v1987
    %v2130 = vmul.f32 %v1987, %v2129
    %v2131 = vsub.f32 1.0, %v2130
    %v2132 = vmul.f32 %v2129, %v2131
    %v2133 = vadd.f32 %v2129, %v2132
    %vm2134 = vweird.f32 %v1987
    %vm2135 = vweird.f32 %v2129
    %vm2136 = vmor %vm2134, %vm2135
    %v2137 = vsel %vm2136, %v2129, %v2133
    %v2138 = vand.u32 2147483647, %v1987
    %vm2139 = vcmp.eq.f32.partialorder %v2138, 8.507059e+37
    %v2140 = vand.u32 %v1987, 2147483648
    %v2141 = vor.u32 1.1754944e-38, %v2140
    %v2142 = vsel %vm2139, %v2141, %v2137
    %v2143 = vmul.f32 1.0, %v2142
    %v2144 = vrcp.pop %v1988
    %v2145 = vmul.f32 %v1988, %v2144
    %v2146 = vsub.f32 1.0, %v2145
    %v2147 = vmul.f32 %v2144, %v2146
    %v2148 = vadd.f32 %v2144, %v2147
    %vm2149 = vweird.f32 %v1988
    %vm2150 = vweird.f32 %v2144
    %vm2151 = vmor %vm2149, %vm2150
    %v2152 = vsel %vm2151, %v2144, %v2148
    %v2153 = vand.u32 2147483647, %v1988
    %vm2154 = vcmp.eq.f32.partialorder %v2153, 8.507059e+37
    %v2155 = vand.u32 %v1988, 2147483648
    %v2156 = vor.u32 1.1754944e-38, %v2155
    %v2157 = vsel %vm2154, %v2156, %v2152
    %v2158 = vmul.f32 1.0, %v2157
    %v2159 = vrcp.pop %v1989
    %v2160 = vmul.f32 %v1989, %v2159
    %v2161 = vsub.f32 1.0, %v2160
    %v2162 = vmul.f32 %v2159, %v2161
    %v2163 = vadd.f32 %v2159, %v2162
    %vm2164 = vweird.f32 %v1989
    %vm2165 = vweird.f32 %v2159
    %vm2166 = vmor %vm2164, %vm2165
    %v2167 = vsel %vm2166, %v2159, %v2163
    %v2168 = vand.u32 2147483647, %v1989
    %vm2169 = vcmp.eq.f32.partialorder %v2168, 8.507059e+37
    %v2170 = vand.u32 %v1989, 2147483648
    %v2171 = vor.u32 1.1754944e-38, %v2170
    %v2172 = vsel %vm2169, %v2171, %v2167
    %v2173 = vmul.f32 1.0, %v2172
    %v2174 = vrcp.pop %v1990
    %v2175 = vmul.f32 %v1990, %v2174
    %v2176 = vsub.f32 1.0, %v2175
    %v2177 = vmul.f32 %v2174, %v2176
    %v2178 = vadd.f32 %v2174, %v2177
    %vm2179 = vweird.f32 %v1990
    %vm2180 = vweird.f32 %v2174
    %vm2181 = vmor %vm2179, %vm2180
    %v2182 = vsel %vm2181, %v2174, %v2178
    %v2183 = vand.u32 2147483647, %v1990
    %vm2184 = vcmp.eq.f32.partialorder %v2183, 8.507059e+37
    %v2185 = vand.u32 %v1990, 2147483648
    %v2186 = vor.u32 1.1754944e-38, %v2185
    %v2187 = vsel %vm2184, %v2186, %v2182
    %v2188 = vmul.f32 1.0, %v2187
    %v2189 = vrcp.pop %v1991
    %v2190 = vmul.f32 %v1991, %v2189
    %v2191 = vsub.f32 1.0, %v2190
    %v2192 = vmul.f32 %v2189, %v2191
    %v2193 = vadd.f32 %v2189, %v2192
    %vm2194 = vweird.f32 %v1991
    %vm2195 = vweird.f32 %v2189
    %vm2196 = vmor %vm2194, %vm2195
    %v2197 = vsel %vm2196, %v2189, %v2193
    %v2198 = vand.u32 2147483647, %v1991
    %vm2199 = vcmp.eq.f32.partialorder %v2198, 8.507059e+37
    %v2200 = vand.u32 %v1991, 2147483648
    %v2201 = vor.u32 1.1754944e-38, %v2200
    %v2202 = vsel %vm2199, %v2201, %v2197
    %v2203 = vmul.f32 1.0, %v2202
    %v2204 = vrcp.pop %v1992
    %v2205 = vmul.f32 %v1992, %v2204
    %v2206 = vsub.f32 1.0, %v2205
    %v2207 = vmul.f32 %v2204, %v2206
    %v2208 = vadd.f32 %v2204, %v2207
    %vm2209 = vweird.f32 %v1992
    %vm2210 = vweird.f32 %v2204
    %vm2211 = vmor %vm2209, %vm2210
    %v2212 = vsel %vm2211, %v2204, %v2208
    %v2213 = vand.u32 2147483647, %v1992
    %vm2214 = vcmp.eq.f32.partialorder %v2213, 8.507059e+37
    %v2215 = vand.u32 %v1992, 2147483648
    %v2216 = vor.u32 1.1754944e-38, %v2215
    %v2217 = vsel %vm2214, %v2216, %v2212
    %v2218 = vmul.f32 1.0, %v2217
    %v2219 = vrcp.pop %v1993
    %v2220 = vmul.f32 %v1993, %v2219
    %v2221 = vsub.f32 1.0, %v2220
    %v2222 = vmul.f32 %v2219, %v2221
    %v2223 = vadd.f32 %v2219, %v2222
    %vm2224 = vweird.f32 %v1993
    %vm2225 = vweird.f32 %v2219
    %vm2226 = vmor %vm2224, %vm2225
    %v2227 = vsel %vm2226, %v2219, %v2223
    %v2228 = vand.u32 2147483647, %v1993
    %vm2229 = vcmp.eq.f32.partialorder %v2228, 8.507059e+37
    %v2230 = vand.u32 %v1993, 2147483648
    %v2231 = vor.u32 1.1754944e-38, %v2230
    %v2232 = vsel %vm2229, %v2231, %v2227
    %v2233 = vmul.f32 1.0, %v2232
    %v2234 = vmul.f32 %v1883, %v2008
    %v2235 = vmul.f32 %v1886, %v2023
    %v2236 = vmul.f32 %v1889, %v2038
    %v2237 = vmul.f32 %v1892, %v2053
    %v2238 = vmul.f32 %v1895, %v2068
    %v2239 = vmul.f32 %v1898, %v2083
    %v2240 = vmul.f32 %v1901, %v2098
    %v2241 = vmul.f32 %v1904, %v2113
    %v2242 = vmul.f32 %v1907, %v2128
    %v2243 = vmul.f32 %v1910, %v2143
    %v2244 = vmul.f32 %v1913, %v2158
    %v2245 = vmul.f32 %v1916, %v2173
    %v2246 = vmul.f32 %v1919, %v2188
    %v2247 = vmul.f32 %v1922, %v2203
    %v2248 = vmul.f32 %v1925, %v2218
    %v2249 = vmul.f32 %v1928, %v2233
    %vm2250 = vcmask 785408
    %2251 = vst.msk [vmem:[#allocation3] sm:$0xff] %vm2250, 0.0
    %vm2252 = vcmask 779264
    %2253 = vst.msk [vmem:[#allocation3 + $0x8] sm:$0x3] %vm2252, 0.0
    %2254 = vst.msk [vmem:[#allocation3 + $0xa0] sm:$0xff] %vm2250, 0.0
    %2255 = vst.msk [vmem:[#allocation3 + $0xa8] sm:$0x3] %vm2252, 0.0
    %s2256 = scalar_lea.vmem [#allocation3], 144
    %2257 = vst.msk [vmem:[%s2256] sm:$0xff] %vm2250, 0.0
    %2258 = vst.msk [vmem:[%s2256 + $0x8] sm:$0x3] %vm2252, 0.0
    %2259 = vst.msk [vmem:[%s2256 + $0xa0] sm:$0xff] %vm2250, 0.0
    %2260 = vst.msk [vmem:[%s2256 + $0xa8] sm:$0x3] %vm2252, 0.0
    %vm2261 = vcmask 778240
    %2262 = vst.msk [vmem:[#allocation3] sm:$0x1] %vm2261, 0.0
    %2263 = vst.msk [vmem:[#allocation3 + $0x10] sm:$0x1] %vm2261, 0.0
    %2264 = vst.msk [vmem:[#allocation3 + $0x20] sm:$0x1] %vm2261, 0.0
    %2265 = vst.msk [vmem:[#allocation3 + $0x30] sm:$0x1] %vm2261, 0.0
    %2266 = vst.msk [vmem:[#allocation3 + $0x40] sm:$0x1] %vm2261, 0.0
    %2267 = vst.msk [vmem:[#allocation3 + $0x50] sm:$0x1] %vm2261, 0.0
    %2268 = vst.msk [vmem:[#allocation3 + $0x60] sm:$0x1] %vm2261, 0.0
    %2269 = vst.msk [vmem:[#allocation3 + $0x70] sm:$0x1] %vm2261, 0.0
    %2270 = vst.msk [vmem:[#allocation3 + $0x80] sm:$0x1] %vm2261, 0.0
    %2271 = vst.msk [vmem:[#allocation3 + $0x90] sm:$0x1] %vm2261, 0.0
    %2272 = vst.msk [vmem:[#allocation3 + $0xa0] sm:$0x1] %vm2261, 0.0
    %2273 = vst.msk [vmem:[#allocation3 + $0xb0] sm:$0x1] %vm2261, 0.0
    %2274 = vst.msk [vmem:[#allocation3 + $0xc0] sm:$0x1] %vm2261, 0.0
    %2275 = vst.msk [vmem:[#allocation3 + $0xd0] sm:$0x1] %vm2261, 0.0
    %2276 = vst.msk [vmem:[#allocation3 + $0xe0] sm:$0x1] %vm2261, 0.0
    %2277 = vst.msk [vmem:[#allocation3 + $0xf0] sm:$0x1] %vm2261, 0.0
    %2278 = vst.msk [vmem:[#allocation3 + $0x100] sm:$0x1] %vm2261, 0.0
    %2279 = vst.msk [vmem:[#allocation3 + $0x110] sm:$0x1] %vm2261, 0.0
    %2280 = vst.msk [vmem:[#allocation3 + $0x120] sm:$0x1] %vm2261, 0.0
    %2281 = vst.msk [vmem:[#allocation3 + $0x130] sm:$0x1] %vm2261, 0.0
    %2282 = vst.msk [vmem:[#allocation3 + $0x9] sm:$0x1] %vm2261, 0.0
    %2283 = vst.msk [vmem:[#allocation3 + $0x19] sm:$0x1] %vm2261, 0.0
    %2284 = vst.msk [vmem:[#allocation3 + $0x29] sm:$0x1] %vm2261, 0.0
    %2285 = vst.msk [vmem:[#allocation3 + $0x39] sm:$0x1] %vm2261, 0.0
    %2286 = vst.msk [vmem:[#allocation3 + $0x49] sm:$0x1] %vm2261, 0.0
    %2287 = vst.msk [vmem:[#allocation3 + $0x59] sm:$0x1] %vm2261, 0.0
    %2288 = vst.msk [vmem:[#allocation3 + $0x69] sm:$0x1] %vm2261, 0.0
    %2289 = vst.msk [vmem:[#allocation3 + $0x79] sm:$0x1] %vm2261, 0.0
    %2290 = vst.msk [vmem:[#allocation3 + $0x89] sm:$0x1] %vm2261, 0.0
    %2291 = vst.msk [vmem:[#allocation3 + $0x99] sm:$0x1] %vm2261, 0.0
    %2292 = vst.msk [vmem:[#allocation3 + $0xa9] sm:$0x1] %vm2261, 0.0
    %2293 = vst.msk [vmem:[#allocation3 + $0xb9] sm:$0x1] %vm2261, 0.0
    %2294 = vst.msk [vmem:[#allocation3 + $0xc9] sm:$0x1] %vm2261, 0.0
    %2295 = vst.msk [vmem:[#allocation3 + $0xd9] sm:$0x1] %vm2261, 0.0
    %2296 = vst.msk [vmem:[#allocation3 + $0xe9] sm:$0x1] %vm2261, 0.0
    %2297 = vst.msk [vmem:[#allocation3 + $0xf9] sm:$0x1] %vm2261, 0.0
    %2298 = vst.msk [vmem:[#allocation3 + $0x109] sm:$0x1] %vm2261, 0.0
    %2299 = vst.msk [vmem:[#allocation3 + $0x119] sm:$0x1] %vm2261, 0.0
    %2300 = vst.msk [vmem:[#allocation3 + $0x129] sm:$0x1] %vm2261, 0.0
    %2301 = vst.msk [vmem:[#allocation3 + $0x139] sm:$0x1] %vm2261, 0.0
    %s2302 = scalar_lea.vmem [#allocation3], 16
    %2303 = vst.msk [vmem:[%s2302 + $0x1] sm:$0xff] %vm2250, %v2234
    %2304 = vst.msk [vmem:[%s2302 + $0x11] sm:$0xff] %vm2250, %v2235
    %2305 = vst.msk [vmem:[%s2302 + $0x21] sm:$0xff] %vm2250, %v2236
    %2306 = vst.msk [vmem:[%s2302 + $0x31] sm:$0xff] %vm2250, %v2237
    %2307 = vst.msk [vmem:[%s2302 + $0x41] sm:$0xff] %vm2250, %v2238
    %2308 = vst.msk [vmem:[%s2302 + $0x51] sm:$0xff] %vm2250, %v2239
    %2309 = vst.msk [vmem:[%s2302 + $0x61] sm:$0xff] %vm2250, %v2240
    %2310 = vst.msk [vmem:[%s2302 + $0x71] sm:$0xff] %vm2250, %v2241
    %2311 = vst.msk [vmem:[%s2302 + $0xa1] sm:$0xff] %vm2250, %v2242
    %2312 = vst.msk [vmem:[%s2302 + $0xb1] sm:$0xff] %vm2250, %v2243
    %2313 = vst.msk [vmem:[%s2302 + $0xc1] sm:$0xff] %vm2250, %v2244
    %2314 = vst.msk [vmem:[%s2302 + $0xd1] sm:$0xff] %vm2250, %v2245
    %2315 = vst.msk [vmem:[%s2302 + $0xe1] sm:$0xff] %vm2250, %v2246
    %2316 = vst.msk [vmem:[%s2302 + $0xf1] sm:$0xff] %vm2250, %v2247
    %2317 = vst.msk [vmem:[%s2302 + $0x101] sm:$0xff] %vm2250, %v2248
    %2318 = vst.msk [vmem:[%s2302 + $0x111] sm:$0xff] %vm2250, %v2249
    %v2319 = vld [vmem:[%s7] sm:$0xff]
    %v2320 = vld [vmem:[%s7 + $0x8] sm:$0x1]
    %v2321 = vld [vmem:[#allocation3] sm:$0xff]
    %v2322 = vld [vmem:[#allocation3 + $0x20] sm:$0xff]
    %v2323 = vld [vmem:[#allocation3 + $0x40] sm:$0xff]
    %v2324 = vld [vmem:[#allocation3 + $0x60] sm:$0xff]
    %v2325 = vld [vmem:[#allocation3 + $0xa0] sm:$0xff]
    %v2326 = vld [vmem:[#allocation3 + $0xc0] sm:$0xff]
    %v2327 = vld [vmem:[#allocation3 + $0xe0] sm:$0xff]
    %v2328 = vld [vmem:[#allocation3 + $0x100] sm:$0xff]
    %v2329 = vperm.slane %v2319, 0
    %v2330 = vmul.f32 %v2321, %v2329
    %v2331 = vmul.f32 %v2322, %v2329
    %v2332 = vmul.f32 %v2323, %v2329
    %v2333 = vmul.f32 %v2324, %v2329
    %v2334 = vmul.f32 %v2325, %v2329
    %v2335 = vmul.f32 %v2326, %v2329
    %v2336 = vmul.f32 %v2327, %v2329
    %v2337 = vmul.f32 %v2328, %v2329
    %v2338 = vadd.f32 %v2330, 0.0
    %v2339 = vadd.f32 %v2331, 0.0
    %v2340 = vadd.f32 %v2332, 0.0
    %v2341 = vadd.f32 %v2333, 0.0
    %v2342 = vadd.f32 %v2334, 0.0
    %v2343 = vadd.f32 %v2335, 0.0
    %v2344 = vadd.f32 %v2336, 0.0
    %v2345 = vadd.f32 %v2337, 0.0
    %v2346 = vld [vmem:[#allocation3 + $0x1] sm:$0xff]
    %v2347 = vld [vmem:[#allocation3 + $0x21] sm:$0xff]
    %v2348 = vld [vmem:[#allocation3 + $0x41] sm:$0xff]
    %v2349 = vld [vmem:[#allocation3 + $0x61] sm:$0xff]
    %v2350 = vld [vmem:[#allocation3 + $0xa1] sm:$0xff]
    %v2351 = vld [vmem:[#allocation3 + $0xc1] sm:$0xff]
    %v2352 = vld [vmem:[#allocation3 + $0xe1] sm:$0xff]
    %v2353 = vld [vmem:[#allocation3 + $0x101] sm:$0xff]
    %v2354 = vperm.slane %v2319, 1
    %v2355 = vmul.f32 %v2346, %v2354
    %v2356 = vmul.f32 %v2347, %v2354
    %v2357 = vmul.f32 %v2348, %v2354
    %v2358 = vmul.f32 %v2349, %v2354
    %v2359 = vmul.f32 %v2350, %v2354
    %v2360 = vmul.f32 %v2351, %v2354
    %v2361 = vmul.f32 %v2352, %v2354
    %v2362 = vmul.f32 %v2353, %v2354
    %v2363 = vadd.f32 %v2338, %v2355
    %v2364 = vadd.f32 %v2339, %v2356
    %v2365 = vadd.f32 %v2340, %v2357
    %v2366 = vadd.f32 %v2341, %v2358
    %v2367 = vadd.f32 %v2342, %v2359
    %v2368 = vadd.f32 %v2343, %v2360
    %v2369 = vadd.f32 %v2344, %v2361
    %v2370 = vadd.f32 %v2345, %v2362
    %v2371 = vld [vmem:[#allocation3 + $0x2] sm:$0xff]
    %v2372 = vld [vmem:[#allocation3 + $0x22] sm:$0xff]
    %v2373 = vld [vmem:[#allocation3 + $0x42] sm:$0xff]
    %v2374 = vld [vmem:[#allocation3 + $0x62] sm:$0xff]
    %v2375 = vld [vmem:[#allocation3 + $0xa2] sm:$0xff]
    %v2376 = vld [vmem:[#allocation3 + $0xc2] sm:$0xff]
    %v2377 = vld [vmem:[#allocation3 + $0xe2] sm:$0xff]
    %v2378 = vld [vmem:[#allocation3 + $0x102] sm:$0xff]
    %v2379 = vperm.slane %v2319, 2
    %v2380 = vmul.f32 %v2371, %v2379
    %v2381 = vmul.f32 %v2372, %v2379
    %v2382 = vmul.f32 %v2373, %v2379
    %v2383 = vmul.f32 %v2374, %v2379
    %v2384 = vmul.f32 %v2375, %v2379
    %v2385 = vmul.f32 %v2376, %v2379
    %v2386 = vmul.f32 %v2377, %v2379
    %v2387 = vmul.f32 %v2378, %v2379
    %v2388 = vadd.f32 %v2363, %v2380
    %v2389 = vadd.f32 %v2364, %v2381
    %v2390 = vadd.f32 %v2365, %v2382
    %v2391 = vadd.f32 %v2366, %v2383
    %v2392 = vadd.f32 %v2367, %v2384
    %v2393 = vadd.f32 %v2368, %v2385
    %v2394 = vadd.f32 %v2369, %v2386
    %v2395 = vadd.f32 %v2370, %v2387
    %v2396 = vld [vmem:[%s2302] sm:$0xff]
    %v2397 = vld [vmem:[%s2302 + $0x20] sm:$0xff]
    %v2398 = vld [vmem:[%s2302 + $0x40] sm:$0xff]
    %v2399 = vld [vmem:[%s2302 + $0x60] sm:$0xff]
    %v2400 = vld [vmem:[%s2302 + $0xa0] sm:$0xff]
    %v2401 = vld [vmem:[%s2302 + $0xc0] sm:$0xff]
    %v2402 = vld [vmem:[%s2302 + $0xe0] sm:$0xff]
    %v2403 = vld [vmem:[%s2302 + $0x100] sm:$0xff]
    %v2404 = vperm.slane %v2319, 3
    %v2405 = vmul.f32 %v2396, %v2404
    %v2406 = vmul.f32 %v2397, %v2404
    %v2407 = vmul.f32 %v2398, %v2404
    %v2408 = vmul.f32 %v2399, %v2404
    %v2409 = vmul.f32 %v2400, %v2404
    %v2410 = vmul.f32 %v2401, %v2404
    %v2411 = vmul.f32 %v2402, %v2404
    %v2412 = vmul.f32 %v2403, %v2404
    %v2413 = vadd.f32 %v2388, %v2405
    %v2414 = vadd.f32 %v2389, %v2406
    %v2415 = vadd.f32 %v2390, %v2407
    %v2416 = vadd.f32 %v2391, %v2408
    %v2417 = vadd.f32 %v2392, %v2409
    %v2418 = vadd.f32 %v2393, %v2410
    %v2419 = vadd.f32 %v2394, %v2411
    %v2420 = vadd.f32 %v2395, %v2412
    %v2421 = vld [vmem:[%s2302 + $0x1] sm:$0xff]
    %v2422 = vld [vmem:[%s2302 + $0x21] sm:$0xff]
    %v2423 = vld [vmem:[%s2302 + $0x41] sm:$0xff]
    %v2424 = vld [vmem:[%s2302 + $0x61] sm:$0xff]
    %v2425 = vld [vmem:[%s2302 + $0xa1] sm:$0xff]
    %v2426 = vld [vmem:[%s2302 + $0xc1] sm:$0xff]
    %v2427 = vld [vmem:[%s2302 + $0xe1] sm:$0xff]
    %v2428 = vld [vmem:[%s2302 + $0x101] sm:$0xff]
    %v2429 = vperm.slane %v2319, 4
    %v2430 = vmul.f32 %v2421, %v2429
    %v2431 = vmul.f32 %v2422, %v2429
    %v2432 = vmul.f32 %v2423, %v2429
    %v2433 = vmul.f32 %v2424, %v2429
    %v2434 = vmul.f32 %v2425, %v2429
    %v2435 = vmul.f32 %v2426, %v2429
    %v2436 = vmul.f32 %v2427, %v2429
    %v2437 = vmul.f32 %v2428, %v2429
    %v2438 = vadd.f32 %v2413, %v2430
    %v2439 = vadd.f32 %v2414, %v2431
    %v2440 = vadd.f32 %v2415, %v2432
    %v2441 = vadd.f32 %v2416, %v2433
    %v2442 = vadd.f32 %v2417, %v2434
    %v2443 = vadd.f32 %v2418, %v2435
    %v2444 = vadd.f32 %v2419, %v2436
    %v2445 = vadd.f32 %v2420, %v2437
    %v2446 = vld [vmem:[%s2302 + $0x2] sm:$0xff]
    %v2447 = vld [vmem:[%s2302 + $0x22] sm:$0xff]
    %v2448 = vld [vmem:[%s2302 + $0x42] sm:$0xff]
    %v2449 = vld [vmem:[%s2302 + $0x62] sm:$0xff]
    %v2450 = vld [vmem:[%s2302 + $0xa2] sm:$0xff]
    %v2451 = vld [vmem:[%s2302 + $0xc2] sm:$0xff]
    %v2452 = vld [vmem:[%s2302 + $0xe2] sm:$0xff]
    %v2453 = vld [vmem:[%s2302 + $0x102] sm:$0xff]
    %v2454 = vperm.slane %v2319, 5
    %v2455 = vmul.f32 %v2446, %v2454
    %v2456 = vmul.f32 %v2447, %v2454
    %v2457 = vmul.f32 %v2448, %v2454
    %v2458 = vmul.f32 %v2449, %v2454
    %v2459 = vmul.f32 %v2450, %v2454
    %v2460 = vmul.f32 %v2451, %v2454
    %v2461 = vmul.f32 %v2452, %v2454
    %v2462 = vmul.f32 %v2453, %v2454
    %v2463 = vadd.f32 %v2438, %v2455
    %v2464 = vadd.f32 %v2439, %v2456
    %v2465 = vadd.f32 %v2440, %v2457
    %v2466 = vadd.f32 %v2441, %v2458
    %v2467 = vadd.f32 %v2442, %v2459
    %v2468 = vadd.f32 %v2443, %v2460
    %v2469 = vadd.f32 %v2444, %v2461
    %v2470 = vadd.f32 %v2445, %v2462
    %s2471 = scalar_lea.vmem [#allocation3], 32
    %v2472 = vld [vmem:[%s2471] sm:$0xff]
    %v2473 = vld [vmem:[%s2471 + $0x20] sm:$0xff]
    %v2474 = vld [vmem:[%s2471 + $0x40] sm:$0xff]
    %v2475 = vld [vmem:[%s2471 + $0x60] sm:$0xff]
    %v2476 = vld [vmem:[%s2471 + $0xa0] sm:$0xff]
    %v2477 = vld [vmem:[%s2471 + $0xc0] sm:$0xff]
    %v2478 = vld [vmem:[%s2471 + $0xe0] sm:$0xff]
    %v2479 = vld [vmem:[%s2471 + $0x100] sm:$0xff]
    %v2480 = vperm.slane %v2319, 6
    %v2481 = vmul.f32 %v2472, %v2480
    %v2482 = vmul.f32 %v2473, %v2480
    %v2483 = vmul.f32 %v2474, %v2480
    %v2484 = vmul.f32 %v2475, %v2480
    %v2485 = vmul.f32 %v2476, %v2480
    %v2486 = vmul.f32 %v2477, %v2480
    %v2487 = vmul.f32 %v2478, %v2480
    %v2488 = vmul.f32 %v2479, %v2480
    %v2489 = vadd.f32 %v2463, %v2481
    %v2490 = vadd.f32 %v2464, %v2482
    %v2491 = vadd.f32 %v2465, %v2483
    %v2492 = vadd.f32 %v2466, %v2484
    %v2493 = vadd.f32 %v2467, %v2485
    %v2494 = vadd.f32 %v2468, %v2486
    %v2495 = vadd.f32 %v2469, %v2487
    %v2496 = vadd.f32 %v2470, %v2488
    %v2497 = vld [vmem:[%s2471 + $0x1] sm:$0xff]
    %v2498 = vld [vmem:[%s2471 + $0x21] sm:$0xff]
    %v2499 = vld [vmem:[%s2471 + $0x41] sm:$0xff]
    %v2500 = vld [vmem:[%s2471 + $0x61] sm:$0xff]
    %v2501 = vld [vmem:[%s2471 + $0xa1] sm:$0xff]
    %v2502 = vld [vmem:[%s2471 + $0xc1] sm:$0xff]
    %v2503 = vld [vmem:[%s2471 + $0xe1] sm:$0xff]
    %v2504 = vld [vmem:[%s2471 + $0x101] sm:$0xff]
    %v2505 = vperm.slane %v2319, 7
    %v2506 = vmul.f32 %v2497, %v2505
    %v2507 = vmul.f32 %v2498, %v2505
    %v2508 = vmul.f32 %v2499, %v2505
    %v2509 = vmul.f32 %v2500, %v2505
    %v2510 = vmul.f32 %v2501, %v2505
    %v2511 = vmul.f32 %v2502, %v2505
    %v2512 = vmul.f32 %v2503, %v2505
    %v2513 = vmul.f32 %v2504, %v2505
    %v2514 = vadd.f32 %v2489, %v2506
    %v2515 = vadd.f32 %v2490, %v2507
    %v2516 = vadd.f32 %v2491, %v2508
    %v2517 = vadd.f32 %v2492, %v2509
    %v2518 = vadd.f32 %v2493, %v2510
    %v2519 = vadd.f32 %v2494, %v2511
    %v2520 = vadd.f32 %v2495, %v2512
    %v2521 = vadd.f32 %v2496, %v2513
    %v2522 = vld [vmem:[%s2471 + $0x2] sm:$0xff]
    %v2523 = vld [vmem:[%s2471 + $0x22] sm:$0xff]
    %v2524 = vld [vmem:[%s2471 + $0x42] sm:$0xff]
    %v2525 = vld [vmem:[%s2471 + $0x62] sm:$0xff]
    %v2526 = vld [vmem:[%s2471 + $0xa2] sm:$0xff]
    %v2527 = vld [vmem:[%s2471 + $0xc2] sm:$0xff]
    %v2528 = vld [vmem:[%s2471 + $0xe2] sm:$0xff]
    %v2529 = vld [vmem:[%s2471 + $0x102] sm:$0xff]
    %v2530 = vperm.slane %v2320, 0
    %v2531 = vmul.f32 %v2522, %v2530
    %v2532 = vmul.f32 %v2523, %v2530
    %v2533 = vmul.f32 %v2524, %v2530
    %v2534 = vmul.f32 %v2525, %v2530
    %v2535 = vmul.f32 %v2526, %v2530
    %v2536 = vmul.f32 %v2527, %v2530
    %v2537 = vmul.f32 %v2528, %v2530
    %v2538 = vmul.f32 %v2529, %v2530
    %v2539 = vadd.f32 %v2514, %v2531
    %v2540 = vadd.f32 %v2515, %v2532
    %v2541 = vadd.f32 %v2516, %v2533
    %v2542 = vadd.f32 %v2517, %v2534
    %v2543 = vadd.f32 %v2518, %v2535
    %v2544 = vadd.f32 %v2519, %v2536
    %v2545 = vadd.f32 %v2520, %v2537
    %v2546 = vadd.f32 %v2521, %v2538
    %v2555 = vrot.slane %v2539, 1
    %v2556 = vrot.slane %v2540, 1
    %v2557 = vrot.slane %v2541, 1
    %v2558 = vrot.slane %v2542, 1
    %v2559 = vrot.slane %v2543, 1
    %v2560 = vrot.slane %v2544, 1
    %v2561 = vrot.slane %v2545, 1
    %v2562 = vrot.slane %v2546, 1
    %v2571 = vrot.slane %v2539, 2
    %v2572 = vrot.slane %v2540, 2
    %v2573 = vrot.slane %v2541, 2
    %v2574 = vrot.slane %v2542, 2
    %v2575 = vrot.slane %v2543, 2
    %v2576 = vrot.slane %v2544, 2
    %v2577 = vrot.slane %v2545, 2
    %v2578 = vrot.slane %v2546, 2
    %v2587 = vrot.slane %v2539, 3
    %v2588 = vrot.slane %v2540, 3
    %v2589 = vrot.slane %v2541, 3
    %v2590 = vrot.slane %v2542, 3
    %v2591 = vrot.slane %v2543, 3
    %v2592 = vrot.slane %v2544, 3
    %v2593 = vrot.slane %v2545, 3
    %v2594 = vrot.slane %v2546, 3
    %vm2603 = vcmask 1040384
    %v2604 = vsel %vm2603, %v2539, %v2555
    %v2605 = vsel %vm2603, %v2540, %v2556
    %v2606 = vsel %vm2603, %v2541, %v2557
    %v2607 = vsel %vm2603, %v2542, %v2558
    %v2608 = vsel %vm2603, %v2543, %v2559
    %v2609 = vsel %vm2603, %v2544, %v2560
    %v2610 = vsel %vm2603, %v2545, %v2561
    %v2611 = vsel %vm2603, %v2546, %v2562
    %vm2612 = vcmask 1041408
    %v2613 = vsel %vm2612, %v2604, %v2571
    %v2614 = vsel %vm2612, %v2605, %v2572
    %v2615 = vsel %vm2612, %v2606, %v2573
    %v2616 = vsel %vm2612, %v2607, %v2574
    %v2617 = vsel %vm2612, %v2608, %v2575
    %v2618 = vsel %vm2612, %v2609, %v2576
    %v2619 = vsel %vm2612, %v2610, %v2577
    %v2620 = vsel %vm2612, %v2611, %v2578
    %vm2621 = vcmask 1042432
    %v2622 = vsel %vm2621, %v2613, %v2587
    %v2623 = vsel %vm2621, %v2614, %v2588
    %v2624 = vsel %vm2621, %v2615, %v2589
    %v2625 = vsel %vm2621, %v2616, %v2590
    %v2626 = vsel %vm2621, %v2617, %v2591
    %v2627 = vsel %vm2621, %v2618, %v2592
    %v2628 = vsel %vm2621, %v2619, %v2593
    %v2629 = vsel %vm2621, %v2620, %v2594
    %v2630 = vld [vmem:[%s8] sm:$0x1]
    %v2632 = vperm.slane %v2630, 0
    %v2634 = vadd.f32 %v2622, %v2632
    %v2635 = vadd.f32 %v2623, %v2632
    %v2636 = vadd.f32 %v2624, %v2632
    %v2637 = vadd.f32 %v2625, %v2632
    %v2638 = vadd.f32 %v2626, %v2632
    %v2639 = vadd.f32 %v2627, %v2632
    %v2640 = vadd.f32 %v2628, %v2632
    %v2641 = vadd.f32 %v2629, %v2632
    %v2642 = vxor.u32 %v2634, 2147483648
    %v2643 = vxor.u32 %v2635, 2147483648
    %v2644 = vxor.u32 %v2636, 2147483648
    %v2645 = vxor.u32 %v2637, 2147483648
    %v2646 = vxor.u32 %v2638, 2147483648
    %v2647 = vxor.u32 %v2639, 2147483648
    %v2648 = vxor.u32 %v2640, 2147483648
    %v2649 = vxor.u32 %v2641, 2147483648
    %v2650 = vmul.f32 %v2642, 1.442695
    %v2651 = vpow.pop %v2650
    %v2652 = vmul.f32 %v2643, 1.442695
    %v2653 = vpow.pop %v2652
    %v2654 = vmul.f32 %v2644, 1.442695
    %v2655 = vpow.pop %v2654
    %v2656 = vmul.f32 %v2645, 1.442695
    %v2657 = vpow.pop %v2656
    %v2658 = vmul.f32 %v2646, 1.442695
    %v2659 = vpow.pop %v2658
    %v2660 = vmul.f32 %v2647, 1.442695
    %v2661 = vpow.pop %v2660
    %v2662 = vmul.f32 %v2648, 1.442695
    %v2663 = vpow.pop %v2662
    %v2664 = vmul.f32 %v2649, 1.442695
    %v2665 = vpow.pop %v2664
    %v2666 = vadd.f32 %v2651, 1.0
    %v2667 = vadd.f32 %v2653, 1.0
    %v2668 = vadd.f32 %v2655, 1.0
    %v2669 = vadd.f32 %v2657, 1.0
    %v2670 = vadd.f32 %v2659, 1.0
    %v2671 = vadd.f32 %v2661, 1.0
    %v2672 = vadd.f32 %v2663, 1.0
    %v2673 = vadd.f32 %v2665, 1.0
    %v2674 = vrcp.pop %v2666
    %v2675 = vmul.f32 %v2666, %v2674
    %v2676 = vsub.f32 1.0, %v2675
    %v2677 = vmul.f32 %v2674, %v2676
    %v2678 = vadd.f32 %v2674, %v2677
    %vm2679 = vweird.f32 %v2666
    %vm2680 = vweird.f32 %v2674
    %vm2681 = vmor %vm2679, %vm2680
    %v2682 = vsel %vm2681, %v2674, %v2678
    %v2683 = vand.u32 2147483647, %v2666
    %vm2684 = vcmp.eq.f32.partialorder %v2683, 8.507059e+37
    %v2685 = vand.u32 %v2666, 2147483648
    %v2686 = vor.u32 1.1754944e-38, %v2685
    %v2687 = vsel %vm2684, %v2686, %v2682
    %v2688 = vmul.f32 1.0, %v2687
    %v2689 = vrcp.pop %v2667
    %v2690 = vmul.f32 %v2667, %v2689
    %v2691 = vsub.f32 1.0, %v2690
    %v2692 = vmul.f32 %v2689, %v2691
    %v2693 = vadd.f32 %v2689, %v2692
    %vm2694 = vweird.f32 %v2667
    %vm2695 = vweird.f32 %v2689
    %vm2696 = vmor %vm2694, %vm2695
    %v2697 = vsel %vm2696, %v2689, %v2693
    %v2698 = vand.u32 2147483647, %v2667
    %vm2699 = vcmp.eq.f32.partialorder %v2698, 8.507059e+37
    %v2700 = vand.u32 %v2667, 2147483648
    %v2701 = vor.u32 1.1754944e-38, %v2700
    %v2702 = vsel %vm2699, %v2701, %v2697
    %v2703 = vmul.f32 1.0, %v2702
    %v2704 = vrcp.pop %v2668
    %v2705 = vmul.f32 %v2668, %v2704
    %v2706 = vsub.f32 1.0, %v2705
    %v2707 = vmul.f32 %v2704, %v2706
    %v2708 = vadd.f32 %v2704, %v2707
    %vm2709 = vweird.f32 %v2668
    %vm2710 = vweird.f32 %v2704
    %vm2711 = vmor %vm2709, %vm2710
    %v2712 = vsel %vm2711, %v2704, %v2708
    %v2713 = vand.u32 2147483647, %v2668
    %vm2714 = vcmp.eq.f32.partialorder %v2713, 8.507059e+37
    %v2715 = vand.u32 %v2668, 2147483648
    %v2716 = vor.u32 1.1754944e-38, %v2715
    %v2717 = vsel %vm2714, %v2716, %v2712
    %v2718 = vmul.f32 1.0, %v2717
    %v2719 = vrcp.pop %v2669
    %v2720 = vmul.f32 %v2669, %v2719
    %v2721 = vsub.f32 1.0, %v2720
    %v2722 = vmul.f32 %v2719, %v2721
    %v2723 = vadd.f32 %v2719, %v2722
    %vm2724 = vweird.f32 %v2669
    %vm2725 = vweird.f32 %v2719
    %vm2726 = vmor %vm2724, %vm2725
    %v2727 = vsel %vm2726, %v2719, %v2723
    %v2728 = vand.u32 2147483647, %v2669
    %vm2729 = vcmp.eq.f32.partialorder %v2728, 8.507059e+37
    %v2730 = vand.u32 %v2669, 2147483648
    %v2731 = vor.u32 1.1754944e-38, %v2730
    %v2732 = vsel %vm2729, %v2731, %v2727
    %v2733 = vmul.f32 1.0, %v2732
    %v2734 = vrcp.pop %v2670
    %v2735 = vmul.f32 %v2670, %v2734
    %v2736 = vsub.f32 1.0, %v2735
    %v2737 = vmul.f32 %v2734, %v2736
    %v2738 = vadd.f32 %v2734, %v2737
    %vm2739 = vweird.f32 %v2670
    %vm2740 = vweird.f32 %v2734
    %vm2741 = vmor %vm2739, %vm2740
    %v2742 = vsel %vm2741, %v2734, %v2738
    %v2743 = vand.u32 2147483647, %v2670
    %vm2744 = vcmp.eq.f32.partialorder %v2743, 8.507059e+37
    %v2745 = vand.u32 %v2670, 2147483648
    %v2746 = vor.u32 1.1754944e-38, %v2745
    %v2747 = vsel %vm2744, %v2746, %v2742
    %v2748 = vmul.f32 1.0, %v2747
    %v2749 = vrcp.pop %v2671
    %v2750 = vmul.f32 %v2671, %v2749
    %v2751 = vsub.f32 1.0, %v2750
    %v2752 = vmul.f32 %v2749, %v2751
    %v2753 = vadd.f32 %v2749, %v2752
    %vm2754 = vweird.f32 %v2671
    %vm2755 = vweird.f32 %v2749
    %vm2756 = vmor %vm2754, %vm2755
    %v2757 = vsel %vm2756, %v2749, %v2753
    %v2758 = vand.u32 2147483647, %v2671
    %vm2759 = vcmp.eq.f32.partialorder %v2758, 8.507059e+37
    %v2760 = vand.u32 %v2671, 2147483648
    %v2761 = vor.u32 1.1754944e-38, %v2760
    %v2762 = vsel %vm2759, %v2761, %v2757
    %v2763 = vmul.f32 1.0, %v2762
    %v2764 = vrcp.pop %v2672
    %v2765 = vmul.f32 %v2672, %v2764
    %v2766 = vsub.f32 1.0, %v2765
    %v2767 = vmul.f32 %v2764, %v2766
    %v2768 = vadd.f32 %v2764, %v2767
    %vm2769 = vweird.f32 %v2672
    %vm2770 = vweird.f32 %v2764
    %vm2771 = vmor %vm2769, %vm2770
    %v2772 = vsel %vm2771, %v2764, %v2768
    %v2773 = vand.u32 2147483647, %v2672
    %vm2774 = vcmp.eq.f32.partialorder %v2773, 8.507059e+37
    %v2775 = vand.u32 %v2672, 2147483648
    %v2776 = vor.u32 1.1754944e-38, %v2775
    %v2777 = vsel %vm2774, %v2776, %v2772
    %v2778 = vmul.f32 1.0, %v2777
    %v2779 = vrcp.pop %v2673
    %v2780 = vmul.f32 %v2673, %v2779
    %v2781 = vsub.f32 1.0, %v2780
    %v2782 = vmul.f32 %v2779, %v2781
    %v2783 = vadd.f32 %v2779, %v2782
    %vm2784 = vweird.f32 %v2673
    %vm2785 = vweird.f32 %v2779
    %vm2786 = vmor %vm2784, %vm2785
    %v2787 = vsel %vm2786, %v2779, %v2783
    %v2788 = vand.u32 2147483647, %v2673
    %vm2789 = vcmp.eq.f32.partialorder %v2788, 8.507059e+37
    %v2790 = vand.u32 %v2673, 2147483648
    %v2791 = vor.u32 1.1754944e-38, %v2790
    %v2792 = vsel %vm2789, %v2791, %v2787
    %v2793 = vmul.f32 1.0, %v2792
    %v2794 = vmul.f32 %v2634, %v2688
    %v2795 = vmul.f32 %v2635, %v2703
    %v2796 = vmul.f32 %v2636, %v2718
    %v2797 = vmul.f32 %v2637, %v2733
    %v2798 = vmul.f32 %v2638, %v2748
    %v2799 = vmul.f32 %v2639, %v2763
    %v2800 = vmul.f32 %v2640, %v2778
    %v2801 = vmul.f32 %v2641, %v2793
    %v2802 = vld [vmem:[%s9] sm:$0xff]
    %v2803 = vld [vmem:[%s9 + $0x8] sm:$0xff]
    %v2804 = vld [vmem:[%s9 + $0x10] sm:$0xff]
    %v2805 = vld [vmem:[%s9 + $0x18] sm:$0xff]
    %v2806 = vld [vmem:[%s9 + $0x20] sm:$0xff]
    %v2807 = vld [vmem:[%s9 + $0x28] sm:$0xff]
    %v2808 = vld [vmem:[%s9 + $0x30] sm:$0xff]
    %v2809 = vld [vmem:[%s9 + $0x38] sm:$0xff]
    %v2810 = vld [vmem:[%s9 + $0x40] sm:$0xff]
    %v2811 = vld [vmem:[%s9 + $0x48] sm:$0xff]
    %v2812 = vld [vmem:[%s9 + $0x50] sm:$0xff]
    %v2813 = vld [vmem:[%s9 + $0x58] sm:$0xff]
    %v2814 = vld [vmem:[%s10] sm:$0x1]
    %v2816 = vperm.slane %v2814, 0
    %2826 = vst [vmem:[#allocation1] ss:$2 sm:$0xff] %v2794
    %s2827 = scalar_lea.vmem [#allocation1], 1
    %2828 = vst [vmem:[%s2827] ss:$2 sm:$0xff] %v2795
    %s2829 = scalar_lea.vmem [#allocation1], 16
    %2830 = vst [vmem:[%s2829] ss:$2 sm:$0xff] %v2796
    %s2831 = scalar_lea.vmem [#allocation1], 17
    %2832 = vst [vmem:[%s2831] ss:$2 sm:$0xff] %v2797
    %s2833 = scalar_lea.vmem [#allocation1], 32
    %2834 = vst [vmem:[%s2833] ss:$2 sm:$0xff] %v2798
    %s2835 = scalar_lea.vmem [#allocation1], 33
    %2836 = vst [vmem:[%s2835] ss:$2 sm:$0xff] %v2799
    %s2837 = scalar_lea.vmem [#allocation1], 48
    %2838 = vst [vmem:[%s2837] ss:$2 sm:$0xff] %v2800
    %s2839 = scalar_lea.vmem [#allocation1], 49
    %2840 = vst [vmem:[%s2839] ss:$2 sm:$0xff] %v2801
    %v2841 = vld.sshfl [vmem:[#allocation1] sm:$0xff pattern:$0x75316420]
    %v2842 = vld.sshfl [vmem:[#allocation1 + $0x10] sm:$0xff pattern:$0x75316420]
    %v2843 = vld.sshfl [vmem:[#allocation1 + $0x20] sm:$0xff pattern:$0x75316420]
    %v2844 = vld.sshfl [vmem:[#allocation1 + $0x30] sm:$0xff pattern:$0x75316420]
    %v2845 = vsel %vm2250, %v2841, 0
    %v2847 = vsel %vm2250, %v2842, 0
    %v2849 = vsel %vm2250, %v2843, 0
    %v2851 = vsel %vm2250, %v2844, 0
    %2853 = vmatpush.msra.mxu0 0.0
    %2854 = vmatpush.msra.mxu0 0.0
    %2855 = vmatpush.msra.mxu0 0.0
    %2856 = vmatpush.msra.mxu0 0.0
    %2857 = vmatpush.msra.mxu0 %v2813
    %2858 = vmatpush.msra.mxu0 %v2812
    %2859 = vmatpush.msra.mxu0 %v2811
    %2860 = vmatpush.msra.mxu0 %v2810
    %2861 = vmatpush.msra.mxu0 %v2809
    %2862 = vmatpush.msra.mxu0 %v2808
    %2863 = vmatpush.msra.mxu0 %v2807
    %2864 = vmatpush.msra.mxu0 %v2806
    %2865 = vmatpush.msra.mxu0 %v2805
    %2866 = vmatpush.msra.mxu0 %v2804
    %2867 = vmatpush.msra.mxu0 %v2803
    %2868 = vmatpush.msra.mxu0 %v2802
    %2869 = vmatmul.f32.gmra.mxu0 %v2845
    %v2870 = vpop.f32.mrf.mxu0
    %v2871 = vadd.f32 %v2816, %v2870
    %2872 = vmatmul.f32.gmra.mxu0 %v2847
    %v2873 = vpop.f32.mrf.mxu0
    %v2874 = vadd.f32 %v2816, %v2873
    %2875 = vmatmul.f32.gmra.mxu0 %v2849
    %v2876 = vpop.f32.mrf.mxu0
    %v2877 = vadd.f32 %v2816, %v2876
    %2878 = vmatmul.f32.gmra.mxu0 %v2851
    %v2879 = vpop.f32.mrf.mxu0
    %v2880 = vadd.f32 %v2816, %v2879
    %2881 = vdwg.mxu0
    %vm2882 = vcmask 195584
    %2883 = vst.msk [vmem:[#allocation4] sm:$0xff] %vm2882, %v2871
    %2884 = vst.msk [vmem:[#allocation4 + $0x8] sm:$0xff] %vm2882, %v2874
    %2885 = vst.msk [vmem:[#allocation4 + $0x10] sm:$0xff] %vm2882, %v2877
    %2886 = vst.msk [vmem:[#allocation4 + $0x18] sm:$0xff] %vm2882, %v2880
    // Predicated region
    $region46: #{variable_length_efficientnet_features.1} parent=1 // pred_check
      _
    $region47: #{variable_length_efficientnet_features.1} parent=1 // pred_check_branch
      %2888 = sbr.rel (0) target = $region49
    $region48: #{variable_length_efficientnet_features.1} parent=1 // pred_region
      %2890 = vsyncadd [#allocation5], 0
      %s2891 = sshll.u32 [#allocation4], 4
      %s2892 = int_to_ptr.vmem [resolvable:$true] %s2891
      %s2893 = sshll.u32 %s11, 4
      %s2894 = int_to_ptr.hbm [resolvable:$true] %s2893
      %2899 = dma.vmem_to_hbm [thread:$0]  %s2892, 512, %s2894, [#allocation5], 128, 128, 8
    $region49: #{variable_length_efficientnet_features.1} parent=1 // pred_fallthru
      _
    // Predicated region
    $region50: #{variable_length_efficientnet_features.1} parent=1 // pred_check
      _
    $region51: #{variable_length_efficientnet_features.1} parent=1 // pred_check_branch
      %2901 = sbr.rel (0) target = $region53
    $region52: #{variable_length_efficientnet_features.1} parent=1 // pred_region
      %2903 = dma.done [#allocation5], 512
    $region53: #{variable_length_efficientnet_features.1} parent=1 // pred_fallthru
      _
    %2904 = vsyncpa [#allocation5], 1

</llo_original>
